<compile_context>
chip_gen: v7x
topology: tpu7x:2x2x1
jax: 0.10.0
libtpu: 0.0.40
codegen_flags: <defaults>
</compile_context>

<pallas_src>
import numpy as np
import jax
import jax.numpy as jnp
from jax import lax
from jax.experimental import pallas as pl
from jax.experimental.pallas import tpu as pltpu


# --------------------------------------------------------------------------------------
# Host-side setup: folded DFT matrices (pad/ifftshift on input side, fftshift/crop on
# output side folded into row/column selections of the ortho DFT matrices).
# --------------------------------------------------------------------------------------
def folded_dft_matrices(Hh, Ww):
    M, N = 2 * Hh, 2 * Ww
    m = np.arange(M)
    n = np.arange(N)
    FM = np.exp(-2j * np.pi * np.outer(m, m) / M) / np.sqrt(M)
    FN = np.exp(-2j * np.pi * np.outer(n, n) / N) / np.sqrt(N)
    rmap = (np.arange(Hh) - Hh // 2) % M
    cmap = (np.arange(Ww) - Ww // 2) % N
    A = FM[:, rmap]             # [2H, H]
    B = FN[cmap, :]             # [W, 2W]
    C = np.conj(FM)[rmap, :]    # [H, 2H]
    D = np.conj(FN)[:, cmap]    # [2W, W]
    return A, B, C, D


def _pick_strip(n, max_strip=512):
    """Largest multiple-of-128 divisor of n that is <= max_strip, else n (full width)."""
    if n <= max_strip:
        return n
    c = (max_strip // 128) * 128
    while c >= 128:
        if n % c == 0:
            return c
        c -= 128
    return n


# --------------------------------------------------------------------------------------
# Pallas kernel
# --------------------------------------------------------------------------------------
def partial_prop_kernel(ph_ref, sp_ref, hr_ref, hi_ref,
                        ar_ref, ai_ref, br_ref, bi_ref,
                        cr_ref, ci_ref, dr_ref, di_ref,
                        out_ref,
                        tr_ref, ti_ref, ur_ref, ui_ref):
    k = pl.program_id(0)          # sample index (reduction, folded into output)
    b = pl.program_id(1)          # batch index  (reduction, folded into output)
    s = pl.program_id(2)          # column strip of the padded [2H, 2W] grid
    n_s = pl.num_programs(2)

    # Resident output accumulator over the whole grid: zero once at the very start.
    @pl.when((k == 0) & (b == 0) & (s == 0))
    def _():
        out_ref[...] = jnp.zeros_like(out_ref)

    # ---- bf16x3 complex matmul helpers (MXU is bf16-native) --------------------------
    def _split(x):
        hi_p = x.astype(jnp.bfloat16)
        lo_p = (x - hi_p.astype(jnp.float32)).astype(jnp.bfloat16)
        return hi_p, lo_p

    def _dot(a, c):
        return jnp.dot(a, c, preferred_element_type=jnp.float32)

    def _dot3(ah, al, bh, bl):
        # hi*hi + hi*lo + lo*hi  (lo*lo dropped, ~2^-16 relative)
        return _dot(ah, bh) + (_dot(ah, bl) + _dot(al, bh))

    def cmatmul(lr, li, rr, ri):
        lrh, lrl = _split(lr)
        lih, lil = _split(li)
        rrh, rrl = _split(rr)
        rih, ril = _split(ri)
        out_r = _dot3(lrh, lrl, rrh, rrl) - _dot3(lih, lil, rih, ril)
        out_i = _dot3(lrh, lrl, rih, ril) + _dot3(lih, lil, rrh, rrl)
        return out_r, out_i

    # ---- per-(k,b) prologue on the first strip: field + left DFT, reset accumulators --
    @pl.when(s == 0)
    def _():
        phi = ph_ref[0, 0] + sp_ref[0, 0]                       # [H, W]
        xr = jnp.cos(phi)
        xi = jnp.sin(phi)
        t_r, t_i = cmatmul(ar_ref[...], ai_ref[...], xr, xi)    # [2H, W]
        tr_ref[...] = t_r
        ti_ref[...] = t_i
        ur_ref[...] = jnp.zeros_like(ur_ref)
        ui_ref[...] = jnp.zeros_like(ui_ref)

    # ---- one column strip of the padded stage ----------------------------------------
    # u1_strip = t @ B[:, strip]
    u1r, u1i = cmatmul(tr_ref[...], ti_ref[...], br_ref[...], bi_ref[...])   # [2H, Wc]
    # u2_strip = Hs[:, strip] * u1_strip   (Hs already carries sqrt(q_wv*a_ang/K))
    hr = hr_ref[0, 0]
    hi = hi_ref[0, 0]
    u2r = hr * u1r - hi * u1i
    u2i = hr * u1i + hi * u1r
    # s_strip = C @ u2_strip
    sr, si = cmatmul(cr_ref[...], ci_ref[...], u2r, u2i)                     # [H, Wc]
    # u += s_strip @ D[strip, :]
    vr, vi = cmatmul(sr, si, dr_ref[...], di_ref[...])                       # [H, W]
    ur_ref[...] += vr
    ui_ref[...] += vi

    # ---- per-(k,b) epilogue on the last strip: accumulate partial intensity ----------
    @pl.when(s == n_s - 1)
    def _():
        uf_r = ur_ref[...]
        uf_i = ui_ref[...]
        out_ref[0, 0] += uf_r * uf_r + uf_i * uf_i


def partial_prop_pallas(phases, src_phase, h_real, h_imag, dft_parts, weights,
                        max_strip=512):
    """phases:    [B, 1, H, W]   float32  (SLM phase)
       src_phase: [1, K, H, W]   float32  (sampled tilted-plane-wave phases)
       h_real/h_imag: [1, K, 2H, 2W] float32 (sampled ASM transfer functions)
       dft_parts: 8 float32 matrices (real/imag of A, B, C, D)
       weights:   [K] float32 (q_wv * a_ang)
       returns [1, 1, H, W] complex64 (amplitude, zero phase), like the module."""
    Bn, _, Hh, Ww = phases.shape
    _, K, M, N = h_real.shape
    Ar, Ai, Br, Bi, Cr, Ci, Dr, Di = dft_parts

    # Fold the per-sample scalar weight (q_wv*a_ang/K) into H: scaling H by sqrt(w)
    # scales |u|^2 by w exactly (weights are non-negative).
    wscale = jnp.sqrt(weights.astype(jnp.float32) / K).reshape(1, K, 1, 1)
    h_real = h_real.astype(jnp.float32) * wscale
    h_imag = h_imag.astype(jnp.float32) * wscale

    Wc = _pick_strip(N, max_strip)      # column-strip width on the padded grid
    S = N // Wc

    # Constant DFT operands (A, C): single-buffered, never re-fetched.
    def const_spec(shape):
        return pl.BlockSpec(shape, lambda k, b, s_: (0, 0),
                            pipeline_mode=pl.Buffered(1))

    # --- VMEM budget: double-buffered per-step blocks + single-buffered constants +
    #     scratch + resident output + live intermediates + Mosaic internal slack.
    f32b = 4
    step_in = 2 * (2 * Hh * Ww + 2 * M * Wc + 4 * Ww * Wc) * f32b
    consts = 4 * M * Hh * f32b                       # A,C re/im, single buffer
    scratch = (2 * M * Ww + 2 * Hh * Ww) * f32b      # t re/im, u re/im
    out_buf = 2 * Hh * Ww * f32b
    interm = (6 * M * Wc + 4 * Hh * Wc + 4 * Hh * Ww + 3 * M * Hh) * f32b
    needed = step_in + consts + scratch + out_buf + interm + (4 << 20)
    try:
        cap = int(pltpu.get_tpu_info().vmem_capacity_bytes)
    except Exception:
        cap = 64 << 20                                # v7x per-TC capacity (smallest)
    vmem_limit = int(min(cap - (8 << 20), max(32 << 20, needed)))

    out = pl.pallas_call(
        partial_prop_kernel,
        out_shape=jax.ShapeDtypeStruct((1, 1, Hh, Ww), jnp.float32),
        grid_spec=pltpu.PrefetchScalarGridSpec(
            num_scalar_prefetch=0,
            grid=(K, Bn, S),
            in_specs=[
                pl.BlockSpec((1, 1, Hh, Ww), lambda k, b, s_: (b, 0, 0, 0)),   # slm phase
                pl.BlockSpec((1, 1, Hh, Ww), lambda k, b, s_: (0, k, 0, 0)),   # src phase
                pl.BlockSpec((1, 1, M, Wc), lambda k, b, s_: (0, k, 0, s_)),   # H real strip
                pl.BlockSpec((1, 1, M, Wc), lambda k, b, s_: (0, k, 0, s_)),   # H imag strip
                const_spec((M, Hh)), const_spec((M, Hh)),                      # A re/im
                pl.BlockSpec((Ww, Wc), lambda k, b, s_: (0, s_)),              # B re strip
                pl.BlockSpec((Ww, Wc), lambda k, b, s_: (0, s_)),              # B im strip
                const_spec((Hh, M)), const_spec((Hh, M)),                      # C re/im
                pl.BlockSpec((Wc, Ww), lambda k, b, s_: (s_, 0)),              # D re strip
                pl.BlockSpec((Wc, Ww), lambda k, b, s_: (s_, 0)),              # D im strip
            ],
            out_specs=pl.BlockSpec((1, 1, Hh, Ww), lambda k, b, s_: (0, 0, 0, 0)),
            scratch_shapes=[
                pltpu.VMEM((M, Ww), jnp.float32),    # t real
                pltpu.VMEM((M, Ww), jnp.float32),    # t imag
                pltpu.VMEM((Hh, Ww), jnp.float32),   # u real accumulator
                pltpu.VMEM((Hh, Ww), jnp.float32),   # u imag accumulator
            ],
        ),
        compiler_params=pltpu.CompilerParams(
            dimension_semantics=("arbitrary", "arbitrary", "arbitrary"),
            vmem_limit_bytes=vmem_limit),
    )(phases, src_phase, h_real, h_imag, Ar, Ai, Br, Bi, Cr, Ci, Dr, Di)

    amp = jnp.sqrt(out)                               # [1, 1, H, W]
    return lax.complex(amp, jnp.zeros_like(amp))


# --------------------------------------------------------------------------------------
# Deterministic construction of the module's buffers + run + self-check
# --------------------------------------------------------------------------------------
if __name__ == "__main__":
    # Small, forward-consistent hyper-parameters
    distance = 5e-3
    feature_size = (6.4e-6, 6.4e-6)
    wv_center = 5.32e-7
    sample_wv_rate = 1e-9
    source_diameter = 1e-4
    f_col = 0.2
    image_res = (16, 16)
    num_wvls = 3           # wavelength pool size
    num_angs = 2           # angle pool size
    batch_size = 2
    source_amp_sigma = 1e-5
    fwhm = 1e-8            # -> Gaussian spectral transmission (avoids measured LUT)

    Hh, Ww = image_res
    M, N = 2 * Hh, 2 * Ww
    B = batch_size
    K = batch_size

    rng = np.random.RandomState(0)

    # pick_wvs: evenly sampled wavelengths around the center + normalized transmission
    wvls = np.array([wv_center + d * sample_wv_rate
                     for d in range(round((-num_wvls + 1) / 2), round((num_wvls + 1) / 2))])
    sigma_wv = fwhm / (2 * np.sqrt(2 * np.log(2)))
    trans = np.exp(-(wvls - wv_center) ** 2 / (2 * sigma_wv ** 2))
    trans = trans / trans.max()

    # LED angular sampling pool (use_sampling_pool=True branch)
    w_max = 2 * np.pi / wv_center * source_diameter / 2 / f_col
    sigma_w = 2 * np.pi / wv_center * source_amp_sigma / f_col
    r = w_max * rng.random_sample(num_angs)
    theta = 2 * np.pi * rng.random_sample(num_angs)
    ws = np.stack([r * np.cos(theta), r * np.sin(theta)], axis=1)          # (wx, wy)
    source_amp_angular = np.exp(-(ws[:, 0] ** 2 + ws[:, 1] ** 2)
                                / (2.0 * 2.0 * sigma_w ** 2))

    # source_field / tilted_plane_wave phases (replicating the module's (wy, wx) unpack)
    dy, dx = feature_size
    yy = np.linspace(-dy * Hh / 2, dy * Hh / 2, Hh)
    xx = np.linspace(-dx * Ww / 2, dx * Ww / 2, Ww)
    X, Y = np.meshgrid(xx, yy)
    src_phase_pool = np.stack(
        [np.arctan2(np.sin(wy_ * X + wx_ * Y), np.cos(wy_ * X + wx_ * Y))
         for wx_, wy_ in ws])[None]                                        # [1, A, H, W]

    # calculate_Hs: band-limited ASM transfer function per wavelength on padded grid
    def asm_H(wavelength):
        y_len, x_len = dy * M, dx * N
        fy = np.linspace(-1 / (2 * dy) + 0.5 / (2 * y_len),
                         1 / (2 * dy) - 0.5 / (2 * y_len), M)
        fx = np.linspace(-1 / (2 * dx) + 0.5 / (2 * x_len),
                         1 / (2 * dx) - 0.5 / (2 * x_len), N)
        FX, FY = np.meshgrid(fx, fy)
        HH = 2 * np.pi * np.sqrt(
            np.maximum(1.0 / wavelength ** 2 - (FX ** 2 + FY ** 2), 0.0))
        fy_max = 1 / np.sqrt((2 * distance * (1 / y_len)) ** 2 + 1) / wavelength
        fx_max = 1 / np.sqrt((2 * distance * (1 / x_len)) ** 2 + 1) / wavelength
        filt = ((np.abs(FX) < fx_max) & (np.abs(FY) < fy_max)).astype(np.float64)
        return np.fft.ifftshift(filt * np.exp(1j * HH * distance))

    precomped_H = np.stack([asm_H(w_) for w_ in wvls])[None]               # [1, W, 2H, 2W]

    # sample_ang_wvs: deterministic stand-in for python random.choices
    m = [0, 2]                               # wavelength indices, k=batch_size
    n = [1, 0]                               # angle indices,      k=batch_size
    src_phase = src_phase_pool[:, n]         # [1, K, H, W]
    a_ang = source_amp_angular[n]            # [K]
    q_wv = trans[m]                          # num_wvls > num_angs -> index by m
    weights = (q_wv * a_ang).astype(np.float32)

    A, Bm, C, D = folded_dft_matrices(Hh, Ww)
    dft_parts = tuple(jnp.asarray(p, jnp.float32) for p in
                      (A.real, A.imag, Bm.real, Bm.imag,
                       C.real, C.imag, D.real, D.imag))

    # SLM phase input [batch, 1, H, W]
    key = jax.random.PRNGKey(0)
    phases = jax.random.uniform(key, (B, 1, Hh, Ww), jnp.float32,
                                minval=-np.pi, maxval=np.pi)

    src_phase_j = jnp.asarray(src_phase, jnp.float32)
    h_real = jnp.asarray(precomped_H[:, m].real, jnp.float32)
    h_imag = jnp.asarray(precomped_H[:, m].imag, jnp.float32)
    weights_j = jnp.asarray(weights)

    out = partial_prop_pallas(phases, src_phase_j, h_real, h_imag, dft_parts, weights_j)
    out = jax.block_until_ready(out)

    # Pure-JAX reference (FFT-based, mirrors the PyTorch forward)
    phi = phases + src_phase_j                                             # [B, K, H, W]
    x = lax.complex(jnp.cos(phi), jnp.sin(phi))
    xp = jnp.pad(x, ((0, 0), (0, 0), (Hh // 2, Hh // 2), (Ww // 2, Ww // 2)))
    U1 = jnp.fft.fftn(jnp.fft.ifftshift(xp, axes=(-2, -1)),
                      axes=(-2, -1), norm='ortho')
    Hc = lax.complex(h_real, h_imag)
    u_full = jnp.fft.fftshift(jnp.fft.ifftn(Hc * U1, axes=(-2, -1), norm='ortho'),
                              axes=(-2, -1))
    u_crop = u_full[:, :, Hh // 2:Hh // 2 + Hh, Ww // 2:Ww // 2 + Ww]
    inten = weights_j[None, :, None, None] * jnp.abs(u_crop) ** 2
    inten = jnp.sum(jnp.mean(inten, axis=1, keepdims=True), axis=0, keepdims=True)
    ref_amp = jnp.sqrt(inten)

    err = float(jnp.max(jnp.abs(jnp.real(out) - ref_amp)))
    scale = float(jnp.max(ref_amp)) + 1e-12
    assert out.shape == (1, 1, Hh, Ww) and out.dtype == jnp.complex64
    assert float(jnp.max(jnp.abs(jnp.imag(out)))) == 0.0
    assert err <= 1e-3 * scale + 1e-6, f"mismatch: err={err}, scale={scale}"

    print("KERNEL_OK")
</pallas_src>

<mosaic_0001>
module attributes {stable_mosaic.version = 11 : i64} {
  func.func @partial_prop_kernel(%arg0: i32, %arg1: i32, %arg2: i32, %arg3: memref<1x1x16x16xf32, #tpu.memory_space<vmem>>, %arg4: memref<1x1x16x16xf32, #tpu.memory_space<vmem>>, %arg5: memref<1x1x32x32xf32, #tpu.memory_space<vmem>>, %arg6: memref<1x1x32x32xf32, #tpu.memory_space<vmem>>, %arg7: memref<32x16xf32, #tpu.memory_space<vmem>>, %arg8: memref<32x16xf32, #tpu.memory_space<vmem>>, %arg9: memref<16x32xf32, #tpu.memory_space<vmem>>, %arg10: memref<16x32xf32, #tpu.memory_space<vmem>>, %arg11: memref<16x32xf32, #tpu.memory_space<vmem>>, %arg12: memref<16x32xf32, #tpu.memory_space<vmem>>, %arg13: memref<32x16xf32, #tpu.memory_space<vmem>>, %arg14: memref<32x16xf32, #tpu.memory_space<vmem>>, %arg15: memref<1x1x16x16xf32, #tpu.memory_space<vmem>>, %arg16: memref<32x16xf32, #tpu.memory_space<vmem>>, %arg17: memref<32x16xf32, #tpu.memory_space<vmem>>, %arg18: memref<16x16xf32, #tpu.memory_space<vmem>>, %arg19: memref<16x16xf32, #tpu.memory_space<vmem>>) attributes {dimension_semantics = [#tpu.dimension_semantics<arbitrary>, #tpu.dimension_semantics<arbitrary>, #tpu.dimension_semantics<arbitrary>], iteration_bounds = array<i64: 2, 2, 1>, scalar_prefetch = 0 : i64, scratch_operands = 4 : i64, tpu.core_type = #tpu.core_type<tc>, window_params = [{transform_indices = @transform_0, window_bounds = array<i64: 1, 1, 16, 16>}, {transform_indices = @transform_1, window_bounds = array<i64: 1, 1, 16, 16>}, {transform_indices = @transform_2, window_bounds = array<i64: 1, 1, 32, 32>}, {transform_indices = @transform_3, window_bounds = array<i64: 1, 1, 32, 32>}, {pipeline_mode = #tpu.pipeline_mode<synchronous>, transform_indices = @transform_4, window_bounds = array<i64: 32, 16>}, {pipeline_mode = #tpu.pipeline_mode<synchronous>, transform_indices = @transform_5, window_bounds = array<i64: 32, 16>}, {transform_indices = @transform_6, window_bounds = array<i64: 16, 32>}, {transform_indices = @transform_7, window_bounds = array<i64: 16, 32>}, {pipeline_mode = #tpu.pipeline_mode<synchronous>, transform_indices = @transform_8, window_bounds = array<i64: 16, 32>}, {pipeline_mode = #tpu.pipeline_mode<synchronous>, transform_indices = @transform_9, window_bounds = array<i64: 16, 32>}, {transform_indices = @transform_10, window_bounds = array<i64: 32, 16>}, {transform_indices = @transform_11, window_bounds = array<i64: 32, 16>}, {pipeline_mode = #tpu.pipeline_mode<synchronous>, transform_indices = @transform_12, window_bounds = array<i64: 1, 1, 16, 16>}]} {
    %c0_i32 = arith.constant 0 : i32
    %0 = arith.cmpi eq, %arg0, %c0_i32 : i32
    %c0_i32_0 = arith.constant 0 : i32
    %1 = arith.cmpi eq, %arg1, %c0_i32_0 : i32
    %2 = arith.andi %0, %1 : i1
    %c0_i32_1 = arith.constant 0 : i32
    %3 = arith.cmpi eq, %arg2, %c0_i32_1 : i32
    %4 = arith.andi %2, %3 : i1
    %5 = arith.extui %4 : i1 to i32
    %c0_i32_2 = arith.constant 0 : i32
    %6 = arith.cmpi ne, %5, %c0_i32_2 : i32
    scf.if %6 {
      %cst_73 = arith.constant 0.000000e+00 : f32
      %151 = vector.broadcast %cst_73 : f32 to vector<1x1x16x16xf32>
      %c0_74 = arith.constant 0 : index
      %c0_75 = arith.constant 0 : index
      %c0_76 = arith.constant 0 : index
      %c0_77 = arith.constant 0 : index
      %152 = vector.load %arg15[%c0_74, %c0_75, %c0_76, %c0_77] : memref<1x1x16x16xf32, #tpu.memory_space<vmem>>, vector<1x1x16x16xf32>
      tpu.vector_store %arg15[%c0_74, %c0_75, %c0_76, %c0_77], %151 {strides = array<i32>} : memref<1x1x16x16xf32, #tpu.memory_space<vmem>>, vector<1x1x16x16xf32>,
    } else {
    }
    %c0_i32_3 = arith.constant 0 : i32
    %7 = arith.cmpi eq, %arg2, %c0_i32_3 : i32
    %8 = arith.extui %7 : i1 to i32
    %c0_i32_4 = arith.constant 0 : i32
    %9 = arith.cmpi ne, %8, %c0_i32_4 : i32
    scf.if %9 {
      %c0_73 = arith.constant 0 : index
      %c0_74 = arith.constant 0 : index
      %c0_75 = arith.constant 0 : index
      %c0_76 = arith.constant 0 : index
      %151 = vector.load %arg3[%c0_73, %c0_74, %c0_75, %c0_76] : memref<1x1x16x16xf32, #tpu.memory_space<vmem>>, vector<1x1x16x16xf32>
      %152 = vector.shape_cast %151 : vector<1x1x16x16xf32> to vector<16x16xf32>
      %c0_77 = arith.constant 0 : index
      %c0_78 = arith.constant 0 : index
      %c0_79 = arith.constant 0 : index
      %c0_80 = arith.constant 0 : index
      %153 = vector.load %arg4[%c0_77, %c0_78, %c0_79, %c0_80] : memref<1x1x16x16xf32, #tpu.memory_space<vmem>>, vector<1x1x16x16xf32>
      %154 = vector.shape_cast %153 : vector<1x1x16x16xf32> to vector<16x16xf32>
      %155 = arith.addf %152, %154 : vector<16x16xf32>
      %156 = math.cos %155 : vector<16x16xf32>
      %157 = math.sin %155 : vector<16x16xf32>
      %c0_81 = arith.constant 0 : index
      %c0_82 = arith.constant 0 : index
      %158 = vector.load %arg7[%c0_81, %c0_82] : memref<32x16xf32, #tpu.memory_space<vmem>>, vector<32x16xf32>
      %c0_83 = arith.constant 0 : index
      %c0_84 = arith.constant 0 : index
      %159 = vector.load %arg8[%c0_83, %c0_84] : memref<32x16xf32, #tpu.memory_space<vmem>>, vector<32x16xf32>
      %160 = arith.truncf %158 : vector<32x16xf32> to vector<32x16xbf16>
      %161 = arith.extf %160 : vector<32x16xbf16> to vector<32x16xf32>
      %162 = arith.subf %158, %161 : vector<32x16xf32>
      %163 = arith.truncf %162 : vector<32x16xf32> to vector<32x16xbf16>
      %164 = arith.truncf %159 : vector<32x16xf32> to vector<32x16xbf16>
      %165 = arith.extf %164 : vector<32x16xbf16> to vector<32x16xf32>
      %166 = arith.subf %159, %165 : vector<32x16xf32>
      %167 = arith.truncf %166 : vector<32x16xf32> to vector<32x16xbf16>
      %168 = arith.truncf %156 : vector<16x16xf32> to vector<16x16xbf16>
      %169 = arith.extf %168 : vector<16x16xbf16> to vector<16x16xf32>
      %170 = arith.subf %156, %169 : vector<16x16xf32>
      %171 = arith.truncf %170 : vector<16x16xf32> to vector<16x16xbf16>
      %172 = arith.truncf %157 : vector<16x16xf32> to vector<16x16xbf16>
      %173 = arith.extf %172 : vector<16x16xbf16> to vector<16x16xf32>
      %174 = arith.subf %157, %173 : vector<16x16xf32>
      %175 = arith.truncf %174 : vector<16x16xf32> to vector<16x16xbf16>
      %cst_85 = arith.constant dense<0.000000e+00> : vector<32x16xf32>
      %176 = tpu.matmul %160, %168, %cst_85 {dimension_numbers = #tpu.dot_dimension_numbers<[1], [0], [0], [1], [0, 0, 1, 1], [], []>} : vector<32x16xbf16>, vector<16x16xbf16>, vector<32x16xf32> -> vector<32x16xf32>
      %cst_86 = arith.constant dense<0.000000e+00> : vector<32x16xf32>
      %177 = tpu.matmul %160, %171, %cst_86 {dimension_numbers = #tpu.dot_dimension_numbers<[1], [0], [0], [1], [0, 0, 1, 1], [], []>} : vector<32x16xbf16>, vector<16x16xbf16>, vector<32x16xf32> -> vector<32x16xf32>
      %cst_87 = arith.constant dense<0.000000e+00> : vector<32x16xf32>
      %178 = tpu.matmul %163, %168, %cst_87 {dimension_numbers = #tpu.dot_dimension_numbers<[1], [0], [0], [1], [0, 0, 1, 1], [], []>} : vector<32x16xbf16>, vector<16x16xbf16>, vector<32x16xf32> -> vector<32x16xf32>
      %179 = arith.addf %177, %178 : vector<32x16xf32>
      %180 = arith.addf %176, %179 : vector<32x16xf32>
      %cst_88 = arith.constant dense<0.000000e+00> : vector<32x16xf32>
      %181 = tpu.matmul %164, %172, %cst_88 {dimension_numbers = #tpu.dot_dimension_numbers<[1], [0], [0], [1], [0, 0, 1, 1], [], []>} : vector<32x16xbf16>, vector<16x16xbf16>, vector<32x16xf32> -> vector<32x16xf32>
      %cst_89 = arith.constant dense<0.000000e+00> : vector<32x16xf32>
      %182 = tpu.matmul %164, %175, %cst_89 {dimension_numbers = #tpu.dot_dimension_numbers<[1], [0], [0], [1], [0, 0, 1, 1], [], []>} : vector<32x16xbf16>, vector<16x16xbf16>, vector<32x16xf32> -> vector<32x16xf32>
      %cst_90 = arith.constant dense<0.000000e+00> : vector<32x16xf32>
      %183 = tpu.matmul %167, %172, %cst_90 {dimension_numbers = #tpu.dot_dimension_numbers<[1], [0], [0], [1], [0, 0, 1, 1], [], []>} : vector<32x16xbf16>, vector<16x16xbf16>, vector<32x16xf32> -> vector<32x16xf32>
      %184 = arith.addf %182, %183 : vector<32x16xf32>
      %185 = arith.addf %181, %184 : vector<32x16xf32>
      %186 = arith.subf %180, %185 : vector<32x16xf32>
      %cst_91 = arith.constant dense<0.000000e+00> : vector<32x16xf32>
      %187 = tpu.matmul %160, %172, %cst_91 {dimension_numbers = #tpu.dot_dimension_numbers<[1], [0], [0], [1], [0, 0, 1, 1], [], []>} : vector<32x16xbf16>, vector<16x16xbf16>, vector<32x16xf32> -> vector<32x16xf32>
      %cst_92 = arith.constant dense<0.000000e+00> : vector<32x16xf32>
      %188 = tpu.matmul %160, %175, %cst_92 {dimension_numbers = #tpu.dot_dimension_numbers<[1], [0], [0], [1], [0, 0, 1, 1], [], []>} : vector<32x16xbf16>, vector<16x16xbf16>, vector<32x16xf32> -> vector<32x16xf32>
      %cst_93 = arith.constant dense<0.000000e+00> : vector<32x16xf32>
      %189 = tpu.matmul %163, %172, %cst_93 {dimension_numbers = #tpu.dot_dimension_numbers<[1], [0], [0], [1], [0, 0, 1, 1], [], []>} : vector<32x16xbf16>, vector<16x16xbf16>, vector<32x16xf32> -> vector<32x16xf32>
      %190 = arith.addf %188, %189 : vector<32x16xf32>
      %191 = arith.addf %187, %190 : vector<32x16xf32>
      %cst_94 = arith.constant dense<0.000000e+00> : vector<32x16xf32>
      %192 = tpu.matmul %164, %168, %cst_94 {dimension_numbers = #tpu.dot_dimension_numbers<[1], [0], [0], [1], [0, 0, 1, 1], [], []>} : vector<32x16xbf16>, vector<16x16xbf16>, vector<32x16xf32> -> vector<32x16xf32>
      %cst_95 = arith.constant dense<0.000000e+00> : vector<32x16xf32>
      %193 = tpu.matmul %164, %171, %cst_95 {dimension_numbers = #tpu.dot_dimension_numbers<[1], [0], [0], [1], [0, 0, 1, 1], [], []>} : vector<32x16xbf16>, vector<16x16xbf16>, vector<32x16xf32> -> vector<32x16xf32>
      %cst_96 = arith.constant dense<0.000000e+00> : vector<32x16xf32>
      %194 = tpu.matmul %167, %168, %cst_96 {dimension_numbers = #tpu.dot_dimension_numbers<[1], [0], [0], [1], [0, 0, 1, 1], [], []>} : vector<32x16xbf16>, vector<16x16xbf16>, vector<32x16xf32> -> vector<32x16xf32>
      %195 = arith.addf %193, %194 : vector<32x16xf32>
      %196 = arith.addf %192, %195 : vector<32x16xf32>
      %197 = arith.addf %191, %196 : vector<32x16xf32>
      %c0_97 = arith.constant 0 : index
      %c0_98 = arith.constant 0 : index
      %198 = vector.load %arg16[%c0_97, %c0_98] : memref<32x16xf32, #tpu.memory_space<vmem>>, vector<32x16xf32>
      tpu.vector_store %arg16[%c0_97, %c0_98], %186 {strides = array<i32>} : memref<32x16xf32, #tpu.memory_space<vmem>>, vector<32x16xf32>,
      %c0_99 = arith.constant 0 : index
      %c0_100 = arith.constant 0 : index
      %199 = vector.load %arg17[%c0_99, %c0_100] : memref<32x16xf32, #tpu.memory_space<vmem>>, vector<32x16xf32>
      tpu.vector_store %arg17[%c0_99, %c0_100], %197 {strides = array<i32>} : memref<32x16xf32, #tpu.memory_space<vmem>>, vector<32x16xf32>,
      %cst_101 = arith.constant 0.000000e+00 : f32
      %200 = vector.broadcast %cst_101 : f32 to vector<16x16xf32>
      %c0_102 = arith.constant 0 : index
      %c0_103 = arith.constant 0 : index
      %201 = vector.load %arg18[%c0_102, %c0_103] : memref<16x16xf32, #tpu.memory_space<vmem>>, vector<16x16xf32>
      tpu.vector_store %arg18[%c0_102, %c0_103], %200 {strides = array<i32>} : memref<16x16xf32, #tpu.memory_space<vmem>>, vector<16x16xf32>,
      %cst_104 = arith.constant 0.000000e+00 : f32
      %202 = vector.broadcast %cst_104 : f32 to vector<16x16xf32>
      %c0_105 = arith.constant 0 : index
      %c0_106 = arith.constant 0 : index
      %203 = vector.load %arg19[%c0_105, %c0_106] : memref<16x16xf32, #tpu.memory_space<vmem>>, vector<16x16xf32>
      tpu.vector_store %arg19[%c0_105, %c0_106], %202 {strides = array<i32>} : memref<16x16xf32, #tpu.memory_space<vmem>>, vector<16x16xf32>,
    } else {
    }
    %c0 = arith.constant 0 : index
    %c0_5 = arith.constant 0 : index
    %10 = vector.load %arg16[%c0, %c0_5] : memref<32x16xf32, #tpu.memory_space<vmem>>, vector<32x16xf32>
    %c0_6 = arith.constant 0 : index
    %c0_7 = arith.constant 0 : index
    %11 = vector.load %arg17[%c0_6, %c0_7] : memref<32x16xf32, #tpu.memory_space<vmem>>, vector<32x16xf32>
    %c0_8 = arith.constant 0 : index
    %c0_9 = arith.constant 0 : index
    %12 = vector.load %arg9[%c0_8, %c0_9] : memref<16x32xf32, #tpu.memory_space<vmem>>, vector<16x32xf32>
    %c0_10 = arith.constant 0 : index
    %c0_11 = arith.constant 0 : index
    %13 = vector.load %arg10[%c0_10, %c0_11] : memref<16x32xf32, #tpu.memory_space<vmem>>, vector<16x32xf32>
    %14 = arith.truncf %10 : vector<32x16xf32> to vector<32x16xbf16>
    %15 = arith.extf %14 : vector<32x16xbf16> to vector<32x16xf32>
    %16 = arith.subf %10, %15 : vector<32x16xf32>
    %17 = arith.truncf %16 : vector<32x16xf32> to vector<32x16xbf16>
    %18 = arith.truncf %11 : vector<32x16xf32> to vector<32x16xbf16>
    %19 = arith.extf %18 : vector<32x16xbf16> to vector<32x16xf32>
    %20 = arith.subf %11, %19 : vector<32x16xf32>
    %21 = arith.truncf %20 : vector<32x16xf32> to vector<32x16xbf16>
    %22 = arith.truncf %12 : vector<16x32xf32> to vector<16x32xbf16>
    %23 = arith.extf %22 : vector<16x32xbf16> to vector<16x32xf32>
    %24 = arith.subf %12, %23 : vector<16x32xf32>
    %25 = arith.truncf %24 : vector<16x32xf32> to vector<16x32xbf16>
    %26 = arith.truncf %13 : vector<16x32xf32> to vector<16x32xbf16>
    %27 = arith.extf %26 : vector<16x32xbf16> to vector<16x32xf32>
    %28 = arith.subf %13, %27 : vector<16x32xf32>
    %29 = arith.truncf %28 : vector<16x32xf32> to vector<16x32xbf16>
    %cst = arith.constant dense<0.000000e+00> : vector<32x32xf32>
    %30 = tpu.matmul %14, %22, %cst {dimension_numbers = #tpu.dot_dimension_numbers<[1], [0], [0], [1], [0, 0, 1, 1], [], []>} : vector<32x16xbf16>, vector<16x32xbf16>, vector<32x32xf32> -> vector<32x32xf32>
    %cst_12 = arith.constant dense<0.000000e+00> : vector<32x32xf32>
    %31 = tpu.matmul %14, %25, %cst_12 {dimension_numbers = #tpu.dot_dimension_numbers<[1], [0], [0], [1], [0, 0, 1, 1], [], []>} : vector<32x16xbf16>, vector<16x32xbf16>, vector<32x32xf32> -> vector<32x32xf32>
    %cst_13 = arith.constant dense<0.000000e+00> : vector<32x32xf32>
    %32 = tpu.matmul %17, %22, %cst_13 {dimension_numbers = #tpu.dot_dimension_numbers<[1], [0], [0], [1], [0, 0, 1, 1], [], []>} : vector<32x16xbf16>, vector<16x32xbf16>, vector<32x32xf32> -> vector<32x32xf32>
    %33 = arith.addf %31, %32 : vector<32x32xf32>
    %34 = arith.addf %30, %33 : vector<32x32xf32>
    %cst_14 = arith.constant dense<0.000000e+00> : vector<32x32xf32>
    %35 = tpu.matmul %18, %26, %cst_14 {dimension_numbers = #tpu.dot_dimension_numbers<[1], [0], [0], [1], [0, 0, 1, 1], [], []>} : vector<32x16xbf16>, vector<16x32xbf16>, vector<32x32xf32> -> vector<32x32xf32>
    %cst_15 = arith.constant dense<0.000000e+00> : vector<32x32xf32>
    %36 = tpu.matmul %18, %29, %cst_15 {dimension_numbers = #tpu.dot_dimension_numbers<[1], [0], [0], [1], [0, 0, 1, 1], [], []>} : vector<32x16xbf16>, vector<16x32xbf16>, vector<32x32xf32> -> vector<32x32xf32>
    %cst_16 = arith.constant dense<0.000000e+00> : vector<32x32xf32>
    %37 = tpu.matmul %21, %26, %cst_16 {dimension_numbers = #tpu.dot_dimension_numbers<[1], [0], [0], [1], [0, 0, 1, 1], [], []>} : vector<32x16xbf16>, vector<16x32xbf16>, vector<32x32xf32> -> vector<32x32xf32>
    %38 = arith.addf %36, %37 : vector<32x32xf32>
    %39 = arith.addf %35, %38 : vector<32x32xf32>
    %40 = arith.subf %34, %39 : vector<32x32xf32>
    %cst_17 = arith.constant dense<0.000000e+00> : vector<32x32xf32>
    %41 = tpu.matmul %14, %26, %cst_17 {dimension_numbers = #tpu.dot_dimension_numbers<[1], [0], [0], [1], [0, 0, 1, 1], [], []>} : vector<32x16xbf16>, vector<16x32xbf16>, vector<32x32xf32> -> vector<32x32xf32>
    %cst_18 = arith.constant dense<0.000000e+00> : vector<32x32xf32>
    %42 = tpu.matmul %14, %29, %cst_18 {dimension_numbers = #tpu.dot_dimension_numbers<[1], [0], [0], [1], [0, 0, 1, 1], [], []>} : vector<32x16xbf16>, vector<16x32xbf16>, vector<32x32xf32> -> vector<32x32xf32>
    %cst_19 = arith.constant dense<0.000000e+00> : vector<32x32xf32>
    %43 = tpu.matmul %17, %26, %cst_19 {dimension_numbers = #tpu.dot_dimension_numbers<[1], [0], [0], [1], [0, 0, 1, 1], [], []>} : vector<32x16xbf16>, vector<16x32xbf16>, vector<32x32xf32> -> vector<32x32xf32>
    %44 = arith.addf %42, %43 : vector<32x32xf32>
    %45 = arith.addf %41, %44 : vector<32x32xf32>
    %cst_20 = arith.constant dense<0.000000e+00> : vector<32x32xf32>
    %46 = tpu.matmul %18, %22, %cst_20 {dimension_numbers = #tpu.dot_dimension_numbers<[1], [0], [0], [1], [0, 0, 1, 1], [], []>} : vector<32x16xbf16>, vector<16x32xbf16>, vector<32x32xf32> -> vector<32x32xf32>
    %cst_21 = arith.constant dense<0.000000e+00> : vector<32x32xf32>
    %47 = tpu.matmul %18, %25, %cst_21 {dimension_numbers = #tpu.dot_dimension_numbers<[1], [0], [0], [1], [0, 0, 1, 1], [], []>} : vector<32x16xbf16>, vector<16x32xbf16>, vector<32x32xf32> -> vector<32x32xf32>
    %cst_22 = arith.constant dense<0.000000e+00> : vector<32x32xf32>
    %48 = tpu.matmul %21, %22, %cst_22 {dimension_numbers = #tpu.dot_dimension_numbers<[1], [0], [0], [1], [0, 0, 1, 1], [], []>} : vector<32x16xbf16>, vector<16x32xbf16>, vector<32x32xf32> -> vector<32x32xf32>
    %49 = arith.addf %47, %48 : vector<32x32xf32>
    %50 = arith.addf %46, %49 : vector<32x32xf32>
    %51 = arith.addf %45, %50 : vector<32x32xf32>
    %c0_23 = arith.constant 0 : index
    %c0_24 = arith.constant 0 : index
    %c0_25 = arith.constant 0 : index
    %c0_26 = arith.constant 0 : index
    %52 = vector.load %arg5[%c0_23, %c0_24, %c0_25, %c0_26] : memref<1x1x32x32xf32, #tpu.memory_space<vmem>>, vector<1x1x32x32xf32>
    %53 = vector.shape_cast %52 : vector<1x1x32x32xf32> to vector<32x32xf32>
    %c0_27 = arith.constant 0 : index
    %c0_28 = arith.constant 0 : index
    %c0_29 = arith.constant 0 : index
    %c0_30 = arith.constant 0 : index
    %54 = vector.load %arg6[%c0_27, %c0_28, %c0_29, %c0_30] : memref<1x1x32x32xf32, #tpu.memory_space<vmem>>, vector<1x1x32x32xf32>
    %55 = vector.shape_cast %54 : vector<1x1x32x32xf32> to vector<32x32xf32>
    %56 = arith.mulf %53, %40 : vector<32x32xf32>
    %57 = arith.mulf %55, %51 : vector<32x32xf32>
    %58 = arith.subf %56, %57 : vector<32x32xf32>
    %59 = arith.mulf %53, %51 : vector<32x32xf32>
    %60 = arith.mulf %55, %40 : vector<32x32xf32>
    %61 = arith.addf %59, %60 : vector<32x32xf32>
    %c0_31 = arith.constant 0 : index
    %c0_32 = arith.constant 0 : index
    %62 = vector.load %arg11[%c0_31, %c0_32] : memref<16x32xf32, #tpu.memory_space<vmem>>, vector<16x32xf32>
    %c0_33 = arith.constant 0 : index
    %c0_34 = arith.constant 0 : index
    %63 = vector.load %arg12[%c0_33, %c0_34] : memref<16x32xf32, #tpu.memory_space<vmem>>, vector<16x32xf32>
    %64 = arith.truncf %62 : vector<16x32xf32> to vector<16x32xbf16>
    %65 = arith.extf %64 : vector<16x32xbf16> to vector<16x32xf32>
    %66 = arith.subf %62, %65 : vector<16x32xf32>
    %67 = arith.truncf %66 : vector<16x32xf32> to vector<16x32xbf16>
    %68 = arith.truncf %63 : vector<16x32xf32> to vector<16x32xbf16>
    %69 = arith.extf %68 : vector<16x32xbf16> to vector<16x32xf32>
    %70 = arith.subf %63, %69 : vector<16x32xf32>
    %71 = arith.truncf %70 : vector<16x32xf32> to vector<16x32xbf16>
    %72 = arith.truncf %58 : vector<32x32xf32> to vector<32x32xbf16>
    %73 = arith.extf %72 : vector<32x32xbf16> to vector<32x32xf32>
    %74 = arith.subf %58, %73 : vector<32x32xf32>
    %75 = arith.truncf %74 : vector<32x32xf32> to vector<32x32xbf16>
    %76 = arith.truncf %61 : vector<32x32xf32> to vector<32x32xbf16>
    %77 = arith.extf %76 : vector<32x32xbf16> to vector<32x32xf32>
    %78 = arith.subf %61, %77 : vector<32x32xf32>
    %79 = arith.truncf %78 : vector<32x32xf32> to vector<32x32xbf16>
    %cst_35 = arith.constant dense<0.000000e+00> : vector<16x32xf32>
    %80 = tpu.matmul %64, %72, %cst_35 {dimension_numbers = #tpu.dot_dimension_numbers<[1], [0], [0], [1], [0, 0, 1, 1], [], []>} : vector<16x32xbf16>, vector<32x32xbf16>, vector<16x32xf32> -> vector<16x32xf32>
    %cst_36 = arith.constant dense<0.000000e+00> : vector<16x32xf32>
    %81 = tpu.matmul %64, %75, %cst_36 {dimension_numbers = #tpu.dot_dimension_numbers<[1], [0], [0], [1], [0, 0, 1, 1], [], []>} : vector<16x32xbf16>, vector<32x32xbf16>, vector<16x32xf32> -> vector<16x32xf32>
    %cst_37 = arith.constant dense<0.000000e+00> : vector<16x32xf32>
    %82 = tpu.matmul %67, %72, %cst_37 {dimension_numbers = #tpu.dot_dimension_numbers<[1], [0], [0], [1], [0, 0, 1, 1], [], []>} : vector<16x32xbf16>, vector<32x32xbf16>, vector<16x32xf32> -> vector<16x32xf32>
    %83 = arith.addf %81, %82 : vector<16x32xf32>
    %84 = arith.addf %80, %83 : vector<16x32xf32>
    %cst_38 = arith.constant dense<0.000000e+00> : vector<16x32xf32>
    %85 = tpu.matmul %68, %76, %cst_38 {dimension_numbers = #tpu.dot_dimension_numbers<[1], [0], [0], [1], [0, 0, 1, 1], [], []>} : vector<16x32xbf16>, vector<32x32xbf16>, vector<16x32xf32> -> vector<16x32xf32>
    %cst_39 = arith.constant dense<0.000000e+00> : vector<16x32xf32>
    %86 = tpu.matmul %68, %79, %cst_39 {dimension_numbers = #tpu.dot_dimension_numbers<[1], [0], [0], [1], [0, 0, 1, 1], [], []>} : vector<16x32xbf16>, vector<32x32xbf16>, vector<16x32xf32> -> vector<16x32xf32>
    %cst_40 = arith.constant dense<0.000000e+00> : vector<16x32xf32>
    %87 = tpu.matmul %71, %76, %cst_40 {dimension_numbers = #tpu.dot_dimension_numbers<[1], [0], [0], [1], [0, 0, 1, 1], [], []>} : vector<16x32xbf16>, vector<32x32xbf16>, vector<16x32xf32> -> vector<16x32xf32>
    %88 = arith.addf %86, %87 : vector<16x32xf32>
    %89 = arith.addf %85, %88 : vector<16x32xf32>
    %90 = arith.subf %84, %89 : vector<16x32xf32>
    %cst_41 = arith.constant dense<0.000000e+00> : vector<16x32xf32>
    %91 = tpu.matmul %64, %76, %cst_41 {dimension_numbers = #tpu.dot_dimension_numbers<[1], [0], [0], [1], [0, 0, 1, 1], [], []>} : vector<16x32xbf16>, vector<32x32xbf16>, vector<16x32xf32> -> vector<16x32xf32>
    %cst_42 = arith.constant dense<0.000000e+00> : vector<16x32xf32>
    %92 = tpu.matmul %64, %79, %cst_42 {dimension_numbers = #tpu.dot_dimension_numbers<[1], [0], [0], [1], [0, 0, 1, 1], [], []>} : vector<16x32xbf16>, vector<32x32xbf16>, vector<16x32xf32> -> vector<16x32xf32>
    %cst_43 = arith.constant dense<0.000000e+00> : vector<16x32xf32>
    %93 = tpu.matmul %67, %76, %cst_43 {dimension_numbers = #tpu.dot_dimension_numbers<[1], [0], [0], [1], [0, 0, 1, 1], [], []>} : vector<16x32xbf16>, vector<32x32xbf16>, vector<16x32xf32> -> vector<16x32xf32>
    %94 = arith.addf %92, %93 : vector<16x32xf32>
    %95 = arith.addf %91, %94 : vector<16x32xf32>
    %cst_44 = arith.constant dense<0.000000e+00> : vector<16x32xf32>
    %96 = tpu.matmul %68, %72, %cst_44 {dimension_numbers = #tpu.dot_dimension_numbers<[1], [0], [0], [1], [0, 0, 1, 1], [], []>} : vector<16x32xbf16>, vector<32x32xbf16>, vector<16x32xf32> -> vector<16x32xf32>
    %cst_45 = arith.constant dense<0.000000e+00> : vector<16x32xf32>
    %97 = tpu.matmul %68, %75, %cst_45 {dimension_numbers = #tpu.dot_dimension_numbers<[1], [0], [0], [1], [0, 0, 1, 1], [], []>} : vector<16x32xbf16>, vector<32x32xbf16>, vector<16x32xf32> -> vector<16x32xf32>
    %cst_46 = arith.constant dense<0.000000e+00> : vector<16x32xf32>
    %98 = tpu.matmul %71, %72, %cst_46 {dimension_numbers = #tpu.dot_dimension_numbers<[1], [0], [0], [1], [0, 0, 1, 1], [], []>} : vector<16x32xbf16>, vector<32x32xbf16>, vector<16x32xf32> -> vector<16x32xf32>
    %99 = arith.addf %97, %98 : vector<16x32xf32>
    %100 = arith.addf %96, %99 : vector<16x32xf32>
    %101 = arith.addf %95, %100 : vector<16x32xf32>
    %c0_47 = arith.constant 0 : index
    %c0_48 = arith.constant 0 : index
    %102 = vector.load %arg13[%c0_47, %c0_48] : memref<32x16xf32, #tpu.memory_space<vmem>>, vector<32x16xf32>
    %c0_49 = arith.constant 0 : index
    %c0_50 = arith.constant 0 : index
    %103 = vector.load %arg14[%c0_49, %c0_50] : memref<32x16xf32, #tpu.memory_space<vmem>>, vector<32x16xf32>
    %104 = arith.truncf %90 : vector<16x32xf32> to vector<16x32xbf16>
    %105 = arith.extf %104 : vector<16x32xbf16> to vector<16x32xf32>
    %106 = arith.subf %90, %105 : vector<16x32xf32>
    %107 = arith.truncf %106 : vector<16x32xf32> to vector<16x32xbf16>
    %108 = arith.truncf %101 : vector<16x32xf32> to vector<16x32xbf16>
    %109 = arith.extf %108 : vector<16x32xbf16> to vector<16x32xf32>
    %110 = arith.subf %101, %109 : vector<16x32xf32>
    %111 = arith.truncf %110 : vector<16x32xf32> to vector<16x32xbf16>
    %112 = arith.truncf %102 : vector<32x16xf32> to vector<32x16xbf16>
    %113 = arith.extf %112 : vector<32x16xbf16> to vector<32x16xf32>
    %114 = arith.subf %102, %113 : vector<32x16xf32>
    %115 = arith.truncf %114 : vector<32x16xf32> to vector<32x16xbf16>
    %116 = arith.truncf %103 : vector<32x16xf32> to vector<32x16xbf16>
    %117 = arith.extf %116 : vector<32x16xbf16> to vector<32x16xf32>
    %118 = arith.subf %103, %117 : vector<32x16xf32>
    %119 = arith.truncf %118 : vector<32x16xf32> to vector<32x16xbf16>
    %cst_51 = arith.constant dense<0.000000e+00> : vector<16x16xf32>
    %120 = tpu.matmul %104, %112, %cst_51 {dimension_numbers = #tpu.dot_dimension_numbers<[1], [0], [0], [1], [0, 0, 1, 1], [], []>} : vector<16x32xbf16>, vector<32x16xbf16>, vector<16x16xf32> -> vector<16x16xf32>
    %cst_52 = arith.constant dense<0.000000e+00> : vector<16x16xf32>
    %121 = tpu.matmul %104, %115, %cst_52 {dimension_numbers = #tpu.dot_dimension_numbers<[1], [0], [0], [1], [0, 0, 1, 1], [], []>} : vector<16x32xbf16>, vector<32x16xbf16>, vector<16x16xf32> -> vector<16x16xf32>
    %cst_53 = arith.constant dense<0.000000e+00> : vector<16x16xf32>
    %122 = tpu.matmul %107, %112, %cst_53 {dimension_numbers = #tpu.dot_dimension_numbers<[1], [0], [0], [1], [0, 0, 1, 1], [], []>} : vector<16x32xbf16>, vector<32x16xbf16>, vector<16x16xf32> -> vector<16x16xf32>
    %123 = arith.addf %121, %122 : vector<16x16xf32>
    %124 = arith.addf %120, %123 : vector<16x16xf32>
    %cst_54 = arith.constant dense<0.000000e+00> : vector<16x16xf32>
    %125 = tpu.matmul %108, %116, %cst_54 {dimension_numbers = #tpu.dot_dimension_numbers<[1], [0], [0], [1], [0, 0, 1, 1], [], []>} : vector<16x32xbf16>, vector<32x16xbf16>, vector<16x16xf32> -> vector<16x16xf32>
    %cst_55 = arith.constant dense<0.000000e+00> : vector<16x16xf32>
    %126 = tpu.matmul %108, %119, %cst_55 {dimension_numbers = #tpu.dot_dimension_numbers<[1], [0], [0], [1], [0, 0, 1, 1], [], []>} : vector<16x32xbf16>, vector<32x16xbf16>, vector<16x16xf32> -> vector<16x16xf32>
    %cst_56 = arith.constant dense<0.000000e+00> : vector<16x16xf32>
    %127 = tpu.matmul %111, %116, %cst_56 {dimension_numbers = #tpu.dot_dimension_numbers<[1], [0], [0], [1], [0, 0, 1, 1], [], []>} : vector<16x32xbf16>, vector<32x16xbf16>, vector<16x16xf32> -> vector<16x16xf32>
    %128 = arith.addf %126, %127 : vector<16x16xf32>
    %129 = arith.addf %125, %128 : vector<16x16xf32>
    %130 = arith.subf %124, %129 : vector<16x16xf32>
    %cst_57 = arith.constant dense<0.000000e+00> : vector<16x16xf32>
    %131 = tpu.matmul %104, %116, %cst_57 {dimension_numbers = #tpu.dot_dimension_numbers<[1], [0], [0], [1], [0, 0, 1, 1], [], []>} : vector<16x32xbf16>, vector<32x16xbf16>, vector<16x16xf32> -> vector<16x16xf32>
    %cst_58 = arith.constant dense<0.000000e+00> : vector<16x16xf32>
    %132 = tpu.matmul %104, %119, %cst_58 {dimension_numbers = #tpu.dot_dimension_numbers<[1], [0], [0], [1], [0, 0, 1, 1], [], []>} : vector<16x32xbf16>, vector<32x16xbf16>, vector<16x16xf32> -> vector<16x16xf32>
    %cst_59 = arith.constant dense<0.000000e+00> : vector<16x16xf32>
    %133 = tpu.matmul %107, %116, %cst_59 {dimension_numbers = #tpu.dot_dimension_numbers<[1], [0], [0], [1], [0, 0, 1, 1], [], []>} : vector<16x32xbf16>, vector<32x16xbf16>, vector<16x16xf32> -> vector<16x16xf32>
    %134 = arith.addf %132, %133 : vector<16x16xf32>
    %135 = arith.addf %131, %134 : vector<16x16xf32>
    %cst_60 = arith.constant dense<0.000000e+00> : vector<16x16xf32>
    %136 = tpu.matmul %108, %112, %cst_60 {dimension_numbers = #tpu.dot_dimension_numbers<[1], [0], [0], [1], [0, 0, 1, 1], [], []>} : vector<16x32xbf16>, vector<32x16xbf16>, vector<16x16xf32> -> vector<16x16xf32>
    %cst_61 = arith.constant dense<0.000000e+00> : vector<16x16xf32>
    %137 = tpu.matmul %108, %115, %cst_61 {dimension_numbers = #tpu.dot_dimension_numbers<[1], [0], [0], [1], [0, 0, 1, 1], [], []>} : vector<16x32xbf16>, vector<32x16xbf16>, vector<16x16xf32> -> vector<16x16xf32>
    %cst_62 = arith.constant dense<0.000000e+00> : vector<16x16xf32>
    %138 = tpu.matmul %111, %112, %cst_62 {dimension_numbers = #tpu.dot_dimension_numbers<[1], [0], [0], [1], [0, 0, 1, 1], [], []>} : vector<16x32xbf16>, vector<32x16xbf16>, vector<16x16xf32> -> vector<16x16xf32>
    %139 = arith.addf %137, %138 : vector<16x16xf32>
    %140 = arith.addf %136, %139 : vector<16x16xf32>
    %141 = arith.addf %135, %140 : vector<16x16xf32>
    %c0_63 = arith.constant 0 : index
    %c0_64 = arith.constant 0 : index
    %142 = vector.load %arg18[%c0_63, %c0_64] : memref<16x16xf32, #tpu.memory_space<vmem>>, vector<16x16xf32>
    %143 = arith.addf %142, %130 : vector<16x16xf32>
    %c0_65 = arith.constant 0 : index
    %c0_66 = arith.constant 0 : index
    %144 = vector.load %arg18[%c0_65, %c0_66] : memref<16x16xf32, #tpu.memory_space<vmem>>, vector<16x16xf32>
    tpu.vector_store %arg18[%c0_65, %c0_66], %143 {strides = array<i32>} : memref<16x16xf32, #tpu.memory_space<vmem>>, vector<16x16xf32>,
    %c0_67 = arith.constant 0 : index
    %c0_68 = arith.constant 0 : index
    %145 = vector.load %arg19[%c0_67, %c0_68] : memref<16x16xf32, #tpu.memory_space<vmem>>, vector<16x16xf32>
    %146 = arith.addf %145, %141 : vector<16x16xf32>
    %c0_69 = arith.constant 0 : index
    %c0_70 = arith.constant 0 : index
    %147 = vector.load %arg19[%c0_69, %c0_70] : memref<16x16xf32, #tpu.memory_space<vmem>>, vector<16x16xf32>
    tpu.vector_store %arg19[%c0_69, %c0_70], %146 {strides = array<i32>} : memref<16x16xf32, #tpu.memory_space<vmem>>, vector<16x16xf32>,
    %c0_i32_71 = arith.constant 0 : i32
    %148 = arith.cmpi eq, %arg2, %c0_i32_71 : i32
    %149 = arith.extui %148 : i1 to i32
    %c0_i32_72 = arith.constant 0 : i32
    %150 = arith.cmpi ne, %149, %c0_i32_72 : i32
    scf.if %150 {
      %c0_73 = arith.constant 0 : index
      %c0_74 = arith.constant 0 : index
      %151 = vector.load %arg18[%c0_73, %c0_74] : memref<16x16xf32, #tpu.memory_space<vmem>>, vector<16x16xf32>
      %c0_75 = arith.constant 0 : index
      %c0_76 = arith.constant 0 : index
      %152 = vector.load %arg19[%c0_75, %c0_76] : memref<16x16xf32, #tpu.memory_space<vmem>>, vector<16x16xf32>
      %c0_77 = arith.constant 0 : index
      %c0_78 = arith.constant 0 : index
      %c0_79 = arith.constant 0 : index
      %c0_80 = arith.constant 0 : index
      %153 = vector.load %arg15[%c0_77, %c0_78, %c0_79, %c0_80] : memref<1x1x16x16xf32, #tpu.memory_space<vmem>>, vector<1x1x16x16xf32>
      %154 = vector.shape_cast %153 : vector<1x1x16x16xf32> to vector<16x16xf32>
      %155 = arith.mulf %151, %151 : vector<16x16xf32>
      %156 = arith.mulf %152, %152 : vector<16x16xf32>
      %157 = arith.addf %155, %156 : vector<16x16xf32>
      %158 = arith.addf %154, %157 : vector<16x16xf32>
      %c0_81 = arith.constant 0 : index
      %c0_82 = arith.constant 0 : index
      %c0_83 = arith.constant 0 : index
      %c0_84 = arith.constant 0 : index
      %159 = vector.load %arg15[%c0_81, %c0_82, %c0_83, %c0_84] : memref<1x1x16x16xf32, #tpu.memory_space<vmem>>, vector<1x1x16x16xf32>
      %160 = vector.shape_cast %159 : vector<1x1x16x16xf32> to vector<16x16xf32>
      %161 = vector.shape_cast %158 : vector<16x16xf32> to vector<1x1x16x16xf32>
      tpu.vector_store %arg15[%c0_81, %c0_82, %c0_83, %c0_84], %161 {strides = array<i32>} : memref<1x1x16x16xf32, #tpu.memory_space<vmem>>, vector<1x1x16x16xf32>,
    } else {
    }
    return
  }
  func.func @transform_0(%arg0: i32, %arg1: i32, %arg2: i32) -> (i32, i32, i32, i32) {
    %c0_i32 = arith.constant 0 : i32
    %c0_i32_0 = arith.constant 0 : i32
    %c0_i32_1 = arith.constant 0 : i32
    %c0_i32_2 = arith.constant 0 : i32
    return %arg1, %c0_i32, %c0_i32_0, %c0_i32_1 : i32, i32, i32, i32
  }
  func.func @transform_1(%arg0: i32, %arg1: i32, %arg2: i32) -> (i32, i32, i32, i32) {
    %c0_i32 = arith.constant 0 : i32
    %c0_i32_0 = arith.constant 0 : i32
    %c0_i32_1 = arith.constant 0 : i32
    %c0_i32_2 = arith.constant 0 : i32
    return %c0_i32, %arg0, %c0_i32_0, %c0_i32_1 : i32, i32, i32, i32
  }
  func.func @transform_2(%arg0: i32, %arg1: i32, %arg2: i32) -> (i32, i32, i32, i32) {
    %c0_i32 = arith.constant 0 : i32
    %c0_i32_0 = arith.constant 0 : i32
    %c0_i32_1 = arith.constant 0 : i32
    return %c0_i32, %arg0, %c0_i32_0, %arg2 : i32, i32, i32, i32
  }
  func.func @transform_3(%arg0: i32, %arg1: i32, %arg2: i32) -> (i32, i32, i32, i32) {
    %c0_i32 = arith.constant 0 : i32
    %c0_i32_0 = arith.constant 0 : i32
    %c0_i32_1 = arith.constant 0 : i32
    return %c0_i32, %arg0, %c0_i32_0, %arg2 : i32, i32, i32, i32
  }
  func.func @transform_4(%arg0: i32, %arg1: i32, %arg2: i32) -> (i32, i32) {
    %c0_i32 = arith.constant 0 : i32
    %c0_i32_0 = arith.constant 0 : i32
    %c0_i32_1 = arith.constant 0 : i32
    return %c0_i32, %c0_i32_0 : i32, i32
  }
  func.func @transform_5(%arg0: i32, %arg1: i32, %arg2: i32) -> (i32, i32) {
    %c0_i32 = arith.constant 0 : i32
    %c0_i32_0 = arith.constant 0 : i32
    %c0_i32_1 = arith.constant 0 : i32
    return %c0_i32, %c0_i32_0 : i32, i32
  }
  func.func @transform_6(%arg0: i32, %arg1: i32, %arg2: i32) -> (i32, i32) {
    %c0_i32 = arith.constant 0 : i32
    %c0_i32_0 = arith.constant 0 : i32
    return %c0_i32, %arg2 : i32, i32
  }
  func.func @transform_7(%arg0: i32, %arg1: i32, %arg2: i32) -> (i32, i32) {
    %c0_i32 = arith.constant 0 : i32
    %c0_i32_0 = arith.constant 0 : i32
    return %c0_i32, %arg2 : i32, i32
  }
  func.func @transform_8(%arg0: i32, %arg1: i32, %arg2: i32) -> (i32, i32) {
    %c0_i32 = arith.constant 0 : i32
    %c0_i32_0 = arith.constant 0 : i32
    %c0_i32_1 = arith.constant 0 : i32
    return %c0_i32, %c0_i32_0 : i32, i32
  }
  func.func @transform_9(%arg0: i32, %arg1: i32, %arg2: i32) -> (i32, i32) {
    %c0_i32 = arith.constant 0 : i32
    %c0_i32_0 = arith.constant 0 : i32
    %c0_i32_1 = arith.constant 0 : i32
    return %c0_i32, %c0_i32_0 : i32, i32
  }
  func.func @transform_10(%arg0: i32, %arg1: i32, %arg2: i32) -> (i32, i32) {
    %c0_i32 = arith.constant 0 : i32
    %c0_i32_0 = arith.constant 0 : i32
    return %arg2, %c0_i32 : i32, i32
  }
  func.func @transform_11(%arg0: i32, %arg1: i32, %arg2: i32) -> (i32, i32) {
    %c0_i32 = arith.constant 0 : i32
    %c0_i32_0 = arith.constant 0 : i32
    return %arg2, %c0_i32 : i32, i32
  }
  func.func @transform_12(%arg0: i32, %arg1: i32, %arg2: i32) -> (i32, i32, i32, i32) {
    %c0_i32 = arith.constant 0 : i32
    %c0_i32_0 = arith.constant 0 : i32
    %c0_i32_1 = arith.constant 0 : i32
    %c0_i32_2 = arith.constant 0 : i32
    %c0_i32_3 = arith.constant 0 : i32
    return %c0_i32, %c0_i32_0, %c0_i32_1, %c0_i32_2 : i32, i32, i32, i32
  }
}

</mosaic_0001>

<llo_original>
// kernel: tpu_custom_call.1
$region0: #{tpu_custom_call.1}
  #allocation0 [shape = 'u32[]', space=smem, size = 0x4, offset = 0x4, fixed_abs, tag = 'smem constant byte address 0x4 - core index']
  #allocation1 [shape = 'u32[144,128]{1,0:T(1,128)}', space=vmem, size = 0x12000, scoped, tag = 'internal scratch']
  #allocation2 [shape = 'f32[32,16]{1,0:T(8,128)}', space=vmem, size = 0x4000, scoped, tag = 'scratch operand']
  #allocation3 [shape = 'f32[32,16]{1,0:T(8,128)}', space=vmem, size = 0x4000, scoped, tag = 'scratch operand']
  #allocation4 [shape = 'f32[16,16]{1,0:T(8,128)}', space=vmem, size = 0x2000, scoped, tag = 'scratch operand']
  #allocation5 [shape = 'f32[16,16]{1,0:T(8,128)}', space=vmem, size = 0x2000, scoped, tag = 'scratch operand']
  %s0 = inlined_call_operand.vmem [shape: f32[2,1,16,16], index: 0, kind: input, shape index: {}]
  %s1 = inlined_call_operand.vmem [shape: f32[1,2,16,16], index: 1, kind: input, shape index: {}]
  %s2 = inlined_call_operand.vmem [shape: f32[1,2,32,32], index: 2, kind: input, shape index: {}]
  %s3 = inlined_call_operand.vmem [shape: f32[1,2,32,32], index: 3, kind: input, shape index: {}]
  %s4 = inlined_call_operand.vmem [shape: f32[32,16], index: 4, kind: input, shape index: {}]
  %s5 = inlined_call_operand.vmem [shape: f32[32,16], index: 5, kind: input, shape index: {}]
  %s6 = inlined_call_operand.hbm [shape: f32[16,32], index: 6, kind: input, shape index: {}]
  %s7 = inlined_call_operand.hbm [shape: f32[16,32], index: 7, kind: input, shape index: {}]
  %s8 = inlined_call_operand.hbm [shape: f32[16,32], index: 8, kind: input, shape index: {}]
  %s9 = inlined_call_operand.hbm [shape: f32[16,32], index: 9, kind: input, shape index: {}]
  %s10 = inlined_call_operand.vmem [shape: f32[32,16], index: 10, kind: input, shape index: {}]
  %s11 = inlined_call_operand.vmem [shape: f32[32,16], index: 11, kind: input, shape index: {}]
  %s12 = inlined_call_operand.hbm [shape: f32[1,1,16,16], index: 12, kind: output, shape index: {}]
  %s13 = sld [smem:[#allocation0]]
  $region109: #{tpu_custom_call.1} parent=0
    _
  %s15 = ssub.s32 1, %s13
  %s16 = scalar_select 0, %s15, %s13
  $region1: #{tpu_custom_call.1} parent=0
    #allocation6 [shape = 'u8[8192]{0}', space=vmem, size = 0x2000, scoped, tag = 'input window, operand 6, single buffered']
    #allocation7 [shape = 's32[2]{0}', space=sflag, size = 0x8, scoped, tag = 'scoped memory for tpu_custom_call.1']
    #allocation8 [shape = 's32[2]{0}', space=sflag, size = 0x8, scoped, tag = 'scoped memory for tpu_custom_call.1']
    #allocation9 [shape = 'u8[8192]{0}', space=vmem, size = 0x2000, scoped, tag = 'input window, operand 7, single buffered']
    #allocation10 [shape = 's32[1]{0}', space=sflag, size = 0x4, scoped, tag = 'scoped memory for tpu_custom_call.1']
    #allocation11 [shape = 'u8[8192]{0}', space=vmem, size = 0x2000, scoped, tag = 'input window, operand 8, single buffered']
    #allocation12 [shape = 'u8[8192]{0}', space=vmem, size = 0x2000, scoped, tag = 'input window, operand 9, single buffered']
    #allocation13 [shape = 's32[1]{0}', space=sflag, size = 0x4, scoped, tag = 'scoped memory for tpu_custom_call.1']
    #allocation14 [shape = 'u8[8192]{0}', space=vmem, size = 0x2000, scoped, tag = 'output window, operand 0, single buffered']
    %17 = vsyncpa [#allocation7], 0
    %18 = vsyncpa [#allocation10], 0
    %19 = vsyncpa [#allocation13], 0
    %20 = vsyncpa [#allocation8], 0
    loop: start=0, step=1, limit=6
    $region2: #{tpu_custom_call.1} parent=1 // loop_pre_header
      _
    $region3: #{tpu_custom_call.1} parent=1 // loop_header
      %s22 = sphi 0, %s26
      %p23 = scmp.ge.s32.totalorder %s22, 6
      %s29 = sphi 0, %s48
      %s30 = sphi 0, %s44
      %s31 = sphi 0, %s40
      %s32 = sphi 0, %s29
      %s33 = sphi 0, %s30
      %s34 = sphi 0, %s31
      %s35 = sphi 0, %s32
      %s36 = sphi 0, %s33
      %s37 = sphi 0, %s34
      %s51 = sphi 0, %s53
      %s54 = sphi 0, %s51
      %s55 = sphi 0, %s54
      %s71 = sphi 0, %s55
      %s77 = sphi 0, %s79
      %s80 = sphi 0, %s77
      %s81 = sphi 0, %s80
      %s97 = sphi 0, %s81
      %s105 = sphi 0, %s107
      %s108 = sphi 0, %s105
      %s109 = sphi 0, %s108
      %s125 = sphi 0, %s109
      %s133 = sphi 0, %s135
      %s136 = sphi 0, %s133
      %s137 = sphi 0, %s136
      %s153 = sphi 0, %s137
      %s157 = sphi 0, %s157
      %s159 = sphi 0, %s157
      %s160 = sphi 0, %s159
      %s174 = sphi 0, %s160
      %s178 = sphi 0, %s178
      %s180 = sphi 0, %s178
      %s181 = sphi 0, %s180
      %s195 = sphi 0, %s181
      %s201 = sphi 0, %s203
      %s204 = sphi 0, %s201
      %s205 = sphi 0, %s204
      %s221 = sphi 0, %s205
      %s227 = sphi 0, %s229
      %s230 = sphi 0, %s227
      %s231 = sphi 0, %s230
      %s247 = sphi 0, %s231
      %s251 = sphi 0, %s251
      %s253 = sphi 0, %s251
      %s254 = sphi 0, %s253
      %s268 = sphi 0, %s254
      %s272 = sphi 0, %s272
      %s274 = sphi 0, %s272
      %s275 = sphi 0, %s274
      %s289 = sphi 0, %s275
      %s295 = sphi 0, %s297
      %s298 = sphi 0, %s295
      %s299 = sphi 0, %s298
      %s315 = sphi 0, %s299
      %s321 = sphi 0, %s323
      %s324 = sphi 0, %s321
      %s325 = sphi 0, %s324
      %s341 = sphi 0, %s325
      %s345 = sphi 0, %s345
      %s347 = sphi 0, %s345
      %s348 = sphi 0, %s347
      %s362 = sphi 0, %s348
    $region4: #{tpu_custom_call.1} parent=1 // loop_header_branch
      %25 = sbr.rel (%p23) target = $region8
    $region5: #{tpu_custom_call.1} parent=1 // loop_body
      %s27 = ssub.s32 %s22, 1
      %s28 = ssub.s32 %s22, 2
      %s38 = sadd.s32 1, %s31
      %p39 = scmp.ge.s32.totalorder %s38, 1
      %s40 = scalar_select %p39, 0, %s38
      %s41 = sadd.s32 1, %s30
      %s42 = scalar_select %p39, %s41, %s30
      %p43 = scmp.ge.s32.totalorder %s42, 2
      %s44 = scalar_select %p43, 0, %s42
      %s45 = sadd.s32 1, %s29
      %s46 = scalar_select %p43, %s45, %s29
      %p47 = scmp.ge.s32.totalorder %s46, 2
      %s48 = scalar_select %p47, 0, %s46
      %s49 = ssub.s32 %s30, %s44
      %p50 = scmp.eq.s32.totalorder %s49, 0
      %s52 = sadd.s32 %s51, 1
      %s53 = scalar_select %p50, %s51, %s52
      %p56 = pneg %p50
      %p57 = scmp.eq.s32.totalorder %s22, 3
      %p58 = por %p56, %p57
      %p59 = scmp.ne.s32.totalorder %s51, %s54
      %p60 = scmp.eq.s32.totalorder %s22, 0
      %p61 = por %p59, %p60
      %p62 = scmp.ne.s32.totalorder %s51, %s54
      %p63 = scmp.eq.s32.totalorder %s27, 3
      %p64 = por %p62, %p63
      %p65 = scmp.ne.s32.totalorder %s54, %s55
      %p66 = scmp.eq.s32.totalorder %s27, 0
      %p67 = por %p65, %p66
      %p68 = scmp.ne.s32.totalorder %s54, %s55
      %p69 = scmp.eq.s32.totalorder %s28, 3
      %p70 = por %p68, %p69
      %p72 = scmp.ne.s32.totalorder %s55, %s71
      %p73 = scmp.eq.s32.totalorder %s28, 0
      %p74 = por %p72, %p73
      %s75 = ssub.s32 %s29, %s48
      %p76 = scmp.eq.s32.totalorder %s75, 0
      %s78 = sadd.s32 %s77, 1
      %s79 = scalar_select %p76, %s77, %s78
      %p82 = pneg %p76
      %p83 = scmp.eq.s32.totalorder %s22, 3
      %p84 = por %p82, %p83
      %p85 = scmp.ne.s32.totalorder %s77, %s80
      %p86 = scmp.eq.s32.totalorder %s22, 0
      %p87 = por %p85, %p86
      %p88 = scmp.ne.s32.totalorder %s77, %s80
      %p89 = scmp.eq.s32.totalorder %s27, 3
      %p90 = por %p88, %p89
      %p91 = scmp.ne.s32.totalorder %s80, %s81
      %p92 = scmp.eq.s32.totalorder %s27, 0
      %p93 = por %p91, %p92
      %p94 = scmp.ne.s32.totalorder %s80, %s81
      %p95 = scmp.eq.s32.totalorder %s28, 3
      %p96 = por %p94, %p95
      %p98 = scmp.ne.s32.totalorder %s81, %s97
      %p99 = scmp.eq.s32.totalorder %s28, 0
      %p100 = por %p98, %p99
      %s101 = ssub.s32 %s29, %s48
      %s102 = ssub.s32 %s31, %s40
      %s103 = sor.u32 %s101, %s102
      %p104 = scmp.eq.s32.totalorder %s103, 0
      %s106 = sadd.s32 %s105, 1
      %s107 = scalar_select %p104, %s105, %s106
      %p110 = pneg %p104
      %p111 = scmp.eq.s32.totalorder %s22, 3
      %p112 = por %p110, %p111
      %p113 = scmp.ne.s32.totalorder %s105, %s108
      %p114 = scmp.eq.s32.totalorder %s22, 0
      %p115 = por %p113, %p114
      %p116 = scmp.ne.s32.totalorder %s105, %s108
      %p117 = scmp.eq.s32.totalorder %s27, 3
      %p118 = por %p116, %p117
      %p119 = scmp.ne.s32.totalorder %s108, %s109
      %p120 = scmp.eq.s32.totalorder %s27, 0
      %p121 = por %p119, %p120
      %p122 = scmp.ne.s32.totalorder %s108, %s109
      %p123 = scmp.eq.s32.totalorder %s28, 3
      %p124 = por %p122, %p123
      %p126 = scmp.ne.s32.totalorder %s109, %s125
      %p127 = scmp.eq.s32.totalorder %s28, 0
      %p128 = por %p126, %p127
      %s129 = ssub.s32 %s29, %s48
      %s130 = ssub.s32 %s31, %s40
      %s131 = sor.u32 %s129, %s130
      %p132 = scmp.eq.s32.totalorder %s131, 0
      %s134 = sadd.s32 %s133, 1
      %s135 = scalar_select %p132, %s133, %s134
      %p138 = pneg %p132
      %p139 = scmp.eq.s32.totalorder %s22, 3
      %p140 = por %p138, %p139
      %p141 = scmp.ne.s32.totalorder %s133, %s136
      %p142 = scmp.eq.s32.totalorder %s22, 0
      %p143 = por %p141, %p142
      %p144 = scmp.ne.s32.totalorder %s133, %s136
      %p145 = scmp.eq.s32.totalorder %s27, 3
      %p146 = por %p144, %p145
      %p147 = scmp.ne.s32.totalorder %s136, %s137
      %p148 = scmp.eq.s32.totalorder %s27, 0
      %p149 = por %p147, %p148
      %p150 = scmp.ne.s32.totalorder %s136, %s137
      %p151 = scmp.eq.s32.totalorder %s28, 3
      %p152 = por %p150, %p151
      %p154 = scmp.ne.s32.totalorder %s137, %s153
      %p155 = scmp.eq.s32.totalorder %s28, 0
      %p156 = por %p154, %p155
      %s158 = sadd.s32 %s157, 1
      %p161 = scmp.eq.s32.totalorder %s22, 3
      %p162 = scmp.ne.s32.totalorder %s157, %s159
      %p163 = scmp.eq.s32.totalorder %s22, 0
      %p164 = por %p162, %p163
      %p165 = scmp.ne.s32.totalorder %s157, %s159
      %p166 = scmp.eq.s32.totalorder %s27, 3
      %p167 = por %p165, %p166
      %p168 = scmp.ne.s32.totalorder %s159, %s160
      %p169 = scmp.eq.s32.totalorder %s27, 0
      %p170 = por %p168, %p169
      %p171 = scmp.ne.s32.totalorder %s159, %s160
      %p172 = scmp.eq.s32.totalorder %s28, 3
      %p173 = por %p171, %p172
      %p175 = scmp.ne.s32.totalorder %s160, %s174
      %p176 = scmp.eq.s32.totalorder %s28, 0
      %p177 = por %p175, %p176
      %s179 = sadd.s32 %s178, 1
      %p182 = scmp.eq.s32.totalorder %s22, 3
      %p183 = scmp.ne.s32.totalorder %s178, %s180
      %p184 = scmp.eq.s32.totalorder %s22, 0
      %p185 = por %p183, %p184
      %p186 = scmp.ne.s32.totalorder %s178, %s180
      %p187 = scmp.eq.s32.totalorder %s27, 3
      %p188 = por %p186, %p187
      %p189 = scmp.ne.s32.totalorder %s180, %s181
      %p190 = scmp.eq.s32.totalorder %s27, 0
      %p191 = por %p189, %p190
      %p192 = scmp.ne.s32.totalorder %s180, %s181
      %p193 = scmp.eq.s32.totalorder %s28, 3
      %p194 = por %p192, %p193
      %p196 = scmp.ne.s32.totalorder %s181, %s195
      %p197 = scmp.eq.s32.totalorder %s28, 0
      %p198 = por %p196, %p197
      %s199 = ssub.s32 %s31, %s40
      %p200 = scmp.eq.s32.totalorder %s199, 0
      %s202 = sadd.s32 %s201, 1
      %s203 = scalar_select %p200, %s201, %s202
      %p206 = pneg %p200
      %p207 = scmp.eq.s32.totalorder %s22, 3
      %p208 = por %p206, %p207
      %p209 = scmp.ne.s32.totalorder %s201, %s204
      %p210 = scmp.eq.s32.totalorder %s22, 0
      %p211 = por %p209, %p210
      %p212 = scmp.ne.s32.totalorder %s201, %s204
      %p213 = scmp.eq.s32.totalorder %s27, 3
      %p214 = por %p212, %p213
      %p215 = scmp.ne.s32.totalorder %s204, %s205
      %p216 = scmp.eq.s32.totalorder %s27, 0
      %p217 = por %p215, %p216
      %p218 = scmp.ne.s32.totalorder %s204, %s205
      %p219 = scmp.eq.s32.totalorder %s28, 3
      %p220 = por %p218, %p219
      %p222 = scmp.ne.s32.totalorder %s205, %s221
      %p223 = scmp.eq.s32.totalorder %s28, 0
      %p224 = por %p222, %p223
      %s225 = ssub.s32 %s31, %s40
      %p226 = scmp.eq.s32.totalorder %s225, 0
      %s228 = sadd.s32 %s227, 1
      %s229 = scalar_select %p226, %s227, %s228
      %p232 = pneg %p226
      %p233 = scmp.eq.s32.totalorder %s22, 3
      %p234 = por %p232, %p233
      %p235 = scmp.ne.s32.totalorder %s227, %s230
      %p236 = scmp.eq.s32.totalorder %s22, 0
      %p237 = por %p235, %p236
      %p238 = scmp.ne.s32.totalorder %s227, %s230
      %p239 = scmp.eq.s32.totalorder %s27, 3
      %p240 = por %p238, %p239
      %p241 = scmp.ne.s32.totalorder %s230, %s231
      %p242 = scmp.eq.s32.totalorder %s27, 0
      %p243 = por %p241, %p242
      %p244 = scmp.ne.s32.totalorder %s230, %s231
      %p245 = scmp.eq.s32.totalorder %s28, 3
      %p246 = por %p244, %p245
      %p248 = scmp.ne.s32.totalorder %s231, %s247
      %p249 = scmp.eq.s32.totalorder %s28, 0
      %p250 = por %p248, %p249
      %s252 = sadd.s32 %s251, 1
      %p255 = scmp.eq.s32.totalorder %s22, 3
      %p256 = scmp.ne.s32.totalorder %s251, %s253
      %p257 = scmp.eq.s32.totalorder %s22, 0
      %p258 = por %p256, %p257
      %p259 = scmp.ne.s32.totalorder %s251, %s253
      %p260 = scmp.eq.s32.totalorder %s27, 3
      %p261 = por %p259, %p260
      %p262 = scmp.ne.s32.totalorder %s253, %s254
      %p263 = scmp.eq.s32.totalorder %s27, 0
      %p264 = por %p262, %p263
      %p265 = scmp.ne.s32.totalorder %s253, %s254
      %p266 = scmp.eq.s32.totalorder %s28, 3
      %p267 = por %p265, %p266
      %p269 = scmp.ne.s32.totalorder %s254, %s268
      %p270 = scmp.eq.s32.totalorder %s28, 0
      %p271 = por %p269, %p270
      %s273 = sadd.s32 %s272, 1
      %p276 = scmp.eq.s32.totalorder %s22, 3
      %p277 = scmp.ne.s32.totalorder %s272, %s274
      %p278 = scmp.eq.s32.totalorder %s22, 0
      %p279 = por %p277, %p278
      %p280 = scmp.ne.s32.totalorder %s272, %s274
      %p281 = scmp.eq.s32.totalorder %s27, 3
      %p282 = por %p280, %p281
      %p283 = scmp.ne.s32.totalorder %s274, %s275
      %p284 = scmp.eq.s32.totalorder %s27, 0
      %p285 = por %p283, %p284
      %p286 = scmp.ne.s32.totalorder %s274, %s275
      %p287 = scmp.eq.s32.totalorder %s28, 3
      %p288 = por %p286, %p287
      %p290 = scmp.ne.s32.totalorder %s275, %s289
      %p291 = scmp.eq.s32.totalorder %s28, 0
      %p292 = por %p290, %p291
      %s293 = ssub.s32 %s31, %s40
      %p294 = scmp.eq.s32.totalorder %s293, 0
      %s296 = sadd.s32 %s295, 1
      %s297 = scalar_select %p294, %s295, %s296
      %p300 = pneg %p294
      %p301 = scmp.eq.s32.totalorder %s22, 3
      %p302 = por %p300, %p301
      %p303 = scmp.ne.s32.totalorder %s295, %s298
      %p304 = scmp.eq.s32.totalorder %s22, 0
      %p305 = por %p303, %p304
      %p306 = scmp.ne.s32.totalorder %s295, %s298
      %p307 = scmp.eq.s32.totalorder %s27, 3
      %p308 = por %p306, %p307
      %p309 = scmp.ne.s32.totalorder %s298, %s299
      %p310 = scmp.eq.s32.totalorder %s27, 0
      %p311 = por %p309, %p310
      %p312 = scmp.ne.s32.totalorder %s298, %s299
      %p313 = scmp.eq.s32.totalorder %s28, 3
      %p314 = por %p312, %p313
      %p316 = scmp.ne.s32.totalorder %s299, %s315
      %p317 = scmp.eq.s32.totalorder %s28, 0
      %p318 = por %p316, %p317
      %s319 = ssub.s32 %s31, %s40
      %p320 = scmp.eq.s32.totalorder %s319, 0
      %s322 = sadd.s32 %s321, 1
      %s323 = scalar_select %p320, %s321, %s322
      %p326 = pneg %p320
      %p327 = scmp.eq.s32.totalorder %s22, 3
      %p328 = por %p326, %p327
      %p329 = scmp.ne.s32.totalorder %s321, %s324
      %p330 = scmp.eq.s32.totalorder %s22, 0
      %p331 = por %p329, %p330
      %p332 = scmp.ne.s32.totalorder %s321, %s324
      %p333 = scmp.eq.s32.totalorder %s27, 3
      %p334 = por %p332, %p333
      %p335 = scmp.ne.s32.totalorder %s324, %s325
      %p336 = scmp.eq.s32.totalorder %s27, 0
      %p337 = por %p335, %p336
      %p338 = scmp.ne.s32.totalorder %s324, %s325
      %p339 = scmp.eq.s32.totalorder %s28, 3
      %p340 = por %p338, %p339
      %p342 = scmp.ne.s32.totalorder %s325, %s341
      %p343 = scmp.eq.s32.totalorder %s28, 0
      %p344 = por %p342, %p343
      %s346 = sadd.s32 %s345, 1
      %p349 = scmp.eq.s32.totalorder %s22, 3
      %p350 = scmp.ne.s32.totalorder %s345, %s347
      %p351 = scmp.eq.s32.totalorder %s22, 0
      %p352 = por %p350, %p351
      %p353 = scmp.ne.s32.totalorder %s345, %s347
      %p354 = scmp.eq.s32.totalorder %s27, 3
      %p355 = por %p353, %p354
      %p356 = scmp.ne.s32.totalorder %s347, %s348
      %p357 = scmp.eq.s32.totalorder %s27, 0
      %p358 = por %p356, %p357
      %p359 = scmp.ne.s32.totalorder %s347, %s348
      %p360 = scmp.eq.s32.totalorder %s28, 3
      %p361 = por %p359, %p360
      %p363 = scmp.ne.s32.totalorder %s348, %s362
      %p364 = scmp.eq.s32.totalorder %s28, 0
      %p365 = por %p363, %p364
      %p366 = scmp.le.s32.totalorder 1, %s22
      %p367 = scmp.lt.s32.totalorder %s22, 5
      %p368 = pnand %p366, %p367
      %p369 = pneg %p368
      // Predicated region
      $region9: #{tpu_custom_call.1} parent=5 // pred_check
        _
      $region10: #{tpu_custom_call.1} parent=5 // pred_check_branch
        %371 = sbr.rel (%p368) target = $region12
      $region11: #{tpu_custom_call.1} parent=5 // pred_region
        %s372 = ssub.s32 %s22, 1
        // Predicated region
        $region13: #{tpu_custom_call.1} parent=11 // pred_check
          %p373 = pneg %p170
        $region14: #{tpu_custom_call.1} parent=11 // pred_check_branch
          %375 = sbr.rel (%p373) target = $region16
        $region15: #{tpu_custom_call.1} parent=11 // pred_region
          _
        $region16: #{tpu_custom_call.1} parent=11 // pred_fallthru
          _
        // Predicated region
        $region17: #{tpu_custom_call.1} parent=11 // pred_check
          %p376 = pneg %p191
        $region18: #{tpu_custom_call.1} parent=11 // pred_check_branch
          %378 = sbr.rel (%p376) target = $region20
        $region19: #{tpu_custom_call.1} parent=11 // pred_region
          _
        $region20: #{tpu_custom_call.1} parent=11 // pred_fallthru
          _
        // Predicated region
        $region21: #{tpu_custom_call.1} parent=11 // pred_check
          %p379 = pneg %p217
        $region22: #{tpu_custom_call.1} parent=11 // pred_check_branch
          %381 = sbr.rel (%p379) target = $region24
        $region23: #{tpu_custom_call.1} parent=11 // pred_region
          %s383 = ssub.s32 256, 256
          %384 = vsyncadd [#allocation7], %s383
          %s385 = smul.addr %s34, 128
          %s386 = scalar_lea.hbm %s6, %s385
          %s387 = sshll.u32 [#allocation6], 4
          %s388 = int_to_ptr.vmem [resolvable:$true] %s387
          %393 = dma.hbm_to_vmem [thread:$0]  %s386, 256, %s388, [#allocation7], 128, 128, 8
        $region24: #{tpu_custom_call.1} parent=11 // pred_fallthru
          _
        // Predicated region
        $region25: #{tpu_custom_call.1} parent=11 // pred_check
          %p394 = pneg %p243
        $region26: #{tpu_custom_call.1} parent=11 // pred_check_branch
          %396 = sbr.rel (%p394) target = $region28
        $region27: #{tpu_custom_call.1} parent=11 // pred_region
          %s398 = ssub.s32 256, 256
          %399 = vsyncadd [#allocation10], %s398
          %s400 = smul.addr %s34, 128
          %s401 = scalar_lea.hbm %s7, %s400
          %s402 = sshll.u32 [#allocation9], 4
          %s403 = int_to_ptr.vmem [resolvable:$true] %s402
          %408 = dma.hbm_to_vmem [thread:$0]  %s401, 256, %s403, [#allocation10], 128, 128, 8
        $region28: #{tpu_custom_call.1} parent=11 // pred_fallthru
          _
        // Predicated region
        $region29: #{tpu_custom_call.1} parent=11 // pred_check
          %p409 = pneg %p264
        $region30: #{tpu_custom_call.1} parent=11 // pred_check_branch
          %411 = sbr.rel (%p409) target = $region32
        $region31: #{tpu_custom_call.1} parent=11 // pred_region
          %s413 = ssub.s32 256, 256
          %414 = vsyncadd [#allocation10], %s413
          %s415 = sshll.u32 [#allocation11], 4
          %s416 = int_to_ptr.vmem [resolvable:$true] %s415
          %421 = dma.hbm_to_vmem [thread:$0]  %s8, 256, %s416, [#allocation10], 128, 128, 8
        $region32: #{tpu_custom_call.1} parent=11 // pred_fallthru
          _
        // Predicated region
        $region33: #{tpu_custom_call.1} parent=11 // pred_check
          %p422 = pneg %p285
        $region34: #{tpu_custom_call.1} parent=11 // pred_check_branch
          %424 = sbr.rel (%p422) target = $region36
        $region35: #{tpu_custom_call.1} parent=11 // pred_region
          %s426 = ssub.s32 256, 256
          %427 = vsyncadd [#allocation13], %s426
          %s428 = sshll.u32 [#allocation12], 4
          %s429 = int_to_ptr.vmem [resolvable:$true] %s428
          %434 = dma.hbm_to_vmem [thread:$0]  %s9, 256, %s429, [#allocation13], 128, 128, 8
        $region36: #{tpu_custom_call.1} parent=11 // pred_fallthru
          _
        // Predicated region
        $region37: #{tpu_custom_call.1} parent=11 // pred_check
          %p435 = pneg %p311
        $region38: #{tpu_custom_call.1} parent=11 // pred_check_branch
          %437 = sbr.rel (%p435) target = $region40
        $region39: #{tpu_custom_call.1} parent=11 // pred_region
          %s438 = smul.u32 4, %s34
          %p439 = scmp.lt.s32.totalorder %s438, 3
          %s440 = scalar_select %p439, %s438, 3
          %s441 = smul.addr %s440, 8
          %s442 = scalar_lea.vmem %s10, %s441
          %s443 = smul.u32 4, %s34
        $region40: #{tpu_custom_call.1} parent=11 // pred_fallthru
          _
        // Predicated region
        $region41: #{tpu_custom_call.1} parent=11 // pred_check
          %p444 = pneg %p337
        $region42: #{tpu_custom_call.1} parent=11 // pred_check_branch
          %446 = sbr.rel (%p444) target = $region44
        $region43: #{tpu_custom_call.1} parent=11 // pred_region
          %s447 = smul.u32 4, %s34
          %p448 = scmp.lt.s32.totalorder %s447, 3
          %s449 = scalar_select %p448, %s447, 3
          %s450 = smul.addr %s449, 8
          %s451 = scalar_lea.vmem %s11, %s450
          %s452 = smul.u32 4, %s34
        $region44: #{tpu_custom_call.1} parent=11 // pred_fallthru
          _
      $region12: #{tpu_custom_call.1} parent=5 // pred_fallthru
        _
      %p453 = scmp.lt.s32.totalorder %s22, 4
      // Predicated region
      $region45: #{tpu_custom_call.1} parent=5 // pred_check
        %p454 = pneg %p453
      $region46: #{tpu_custom_call.1} parent=5 // pred_check_branch
        %456 = sbr.rel (%p454) target = $region48
      $region47: #{tpu_custom_call.1} parent=5 // pred_region
        // Predicated region
        $region49: #{tpu_custom_call.1} parent=47 // pred_check
          %p457 = pneg %p61
        $region50: #{tpu_custom_call.1} parent=47 // pred_check_branch
          %459 = sbr.rel (%p457) target = $region52
        $region51: #{tpu_custom_call.1} parent=47 // pred_region
          %p460 = scmp.lt.s32.totalorder %s30, 1
          %s461 = scalar_select %p460, %s30, 1
          %s462 = smul.addr %s461, 2
          %s463 = smul.addr %s462, 8
          %s464 = scalar_lea.vmem %s0, %s463
        $region52: #{tpu_custom_call.1} parent=47 // pred_fallthru
          _
        // Predicated region
        $region53: #{tpu_custom_call.1} parent=47 // pred_check
          %p465 = pneg %p87
        $region54: #{tpu_custom_call.1} parent=47 // pred_check_branch
          %467 = sbr.rel (%p465) target = $region56
        $region55: #{tpu_custom_call.1} parent=47 // pred_region
          %p468 = scmp.lt.s32.totalorder %s29, 1
          %s469 = scalar_select %p468, %s29, 1
          %s470 = smul.addr %s469, 2
          %s471 = smul.addr %s470, 8
          %s472 = scalar_lea.vmem %s1, %s471
        $region56: #{tpu_custom_call.1} parent=47 // pred_fallthru
          _
        // Predicated region
        $region57: #{tpu_custom_call.1} parent=47 // pred_check
          %p473 = pneg %p115
        $region58: #{tpu_custom_call.1} parent=47 // pred_check_branch
          %475 = sbr.rel (%p473) target = $region60
        $region59: #{tpu_custom_call.1} parent=47 // pred_region
          %p476 = scmp.lt.s32.totalorder %s29, 1
          %s477 = scalar_select %p476, %s29, 1
          %p478 = scmp.lt.s32.totalorder %s31, 0
          %s479 = scalar_select %p478, %s31, 0
          %s480 = smul.addr %s477, 4
          %s481 = sadd.s32 %s479, %s480
          %s482 = smul.addr %s481, 8
          %s483 = scalar_lea.vmem %s2, %s482
        $region60: #{tpu_custom_call.1} parent=47 // pred_fallthru
          _
        // Predicated region
        $region61: #{tpu_custom_call.1} parent=47 // pred_check
          %p484 = pneg %p143
        $region62: #{tpu_custom_call.1} parent=47 // pred_check_branch
          %486 = sbr.rel (%p484) target = $region64
        $region63: #{tpu_custom_call.1} parent=47 // pred_region
          %p487 = scmp.lt.s32.totalorder %s29, 1
          %s488 = scalar_select %p487, %s29, 1
          %p489 = scmp.lt.s32.totalorder %s31, 0
          %s490 = scalar_select %p489, %s31, 0
          %s491 = smul.addr %s488, 4
          %s492 = sadd.s32 %s490, %s491
          %s493 = smul.addr %s492, 8
          %s494 = scalar_lea.vmem %s3, %s493
        $region64: #{tpu_custom_call.1} parent=47 // pred_fallthru
          _
      $region48: #{tpu_custom_call.1} parent=5 // pred_fallthru
        _
      %p495 = scmp.le.s32.totalorder 1, %s22
      %p496 = scmp.lt.s32.totalorder %s22, 5
      %p497 = pnand %p495, %p496
      %p498 = pneg %p497
      // Predicated region
      $region65: #{tpu_custom_call.1} parent=5 // pred_check
        _
      $region66: #{tpu_custom_call.1} parent=5 // pred_check_branch
        %500 = sbr.rel (%p497) target = $region68
      $region67: #{tpu_custom_call.1} parent=5 // pred_region
        %s501 = ssub.s32 %s22, 1
        // Predicated region
        $region69: #{tpu_custom_call.1} parent=67 // pred_check
          %p502 = pneg %p217
        $region70: #{tpu_custom_call.1} parent=67 // pred_check_branch
          %504 = sbr.rel (%p502) target = $region72
        $region71: #{tpu_custom_call.1} parent=67 // pred_region
          %505 = dma.done [#allocation7], 256
        $region72: #{tpu_custom_call.1} parent=67 // pred_fallthru
          _
        // Predicated region
        $region73: #{tpu_custom_call.1} parent=67 // pred_check
          %p506 = pneg %p243
        $region74: #{tpu_custom_call.1} parent=67 // pred_check_branch
          %508 = sbr.rel (%p506) target = $region76
        $region75: #{tpu_custom_call.1} parent=67 // pred_region
          %509 = dma.done [#allocation10], 256
        $region76: #{tpu_custom_call.1} parent=67 // pred_fallthru
          _
        // Predicated region
        $region77: #{tpu_custom_call.1} parent=67 // pred_check
          %p510 = pneg %p264
        $region78: #{tpu_custom_call.1} parent=67 // pred_check_branch
          %512 = sbr.rel (%p510) target = $region80
        $region79: #{tpu_custom_call.1} parent=67 // pred_region
          %513 = dma.done [#allocation10], 256
        $region80: #{tpu_custom_call.1} parent=67 // pred_fallthru
          _
        // Predicated region
        $region81: #{tpu_custom_call.1} parent=67 // pred_check
          %p514 = pneg %p285
        $region82: #{tpu_custom_call.1} parent=67 // pred_check_branch
          %516 = sbr.rel (%p514) target = $region84
        $region83: #{tpu_custom_call.1} parent=67 // pred_region
          %517 = dma.done [#allocation13], 256
        $region84: #{tpu_custom_call.1} parent=67 // pred_fallthru
          _
        %p518 = scmp.lt.s32.totalorder %s33, 1
        %s519 = scalar_select %p518, %s33, 1
        %s520 = smul.addr %s519, 2
        %s521 = smul.addr %s520, 8
        %s522 = scalar_lea.vmem %s0, %s521
        %p523 = pneg %p67
        %p524 = pneg %p64
        %p525 = scmp.lt.s32.totalorder %s32, 1
        %s526 = scalar_select %p525, %s32, 1
        %s527 = smul.addr %s526, 2
        %s528 = smul.addr %s527, 8
        %s529 = scalar_lea.vmem %s1, %s528
        %p530 = pneg %p93
        %p531 = pneg %p90
        %p532 = scmp.lt.s32.totalorder %s32, 1
        %s533 = scalar_select %p532, %s32, 1
        %p534 = scmp.lt.s32.totalorder %s34, 0
        %s535 = scalar_select %p534, %s34, 0
        %s536 = smul.addr %s533, 4
        %s537 = sadd.s32 %s535, %s536
        %s538 = smul.addr %s537, 8
        %s539 = scalar_lea.vmem %s2, %s538
        %p540 = pneg %p121
        %p541 = pneg %p118
        %p542 = scmp.lt.s32.totalorder %s32, 1
        %s543 = scalar_select %p542, %s32, 1
        %p544 = scmp.lt.s32.totalorder %s34, 0
        %s545 = scalar_select %p544, %s34, 0
        %s546 = smul.addr %s543, 4
        %s547 = sadd.s32 %s545, %s546
        %s548 = smul.addr %s547, 8
        %s549 = scalar_lea.vmem %s3, %s548
        %p550 = pneg %p149
        %p551 = pneg %p146
        %p552 = pneg %p170
        %p553 = pneg %p167
        %p554 = pneg %p191
        %p555 = pneg %p188
        %p556 = pneg %p217
        %p557 = pneg %p214
        %p558 = pneg %p243
        %p559 = pneg %p240
        %p560 = pneg %p264
        %p561 = pneg %p261
        %p562 = pneg %p285
        %p563 = pneg %p282
        %s564 = smul.u32 4, %s34
        %p565 = scmp.lt.s32.totalorder %s564, 3
        %s566 = scalar_select %p565, %s564, 3
        %s567 = smul.addr %s566, 8
        %s568 = scalar_lea.vmem %s10, %s567
        %p569 = pneg %p311
        %p570 = pneg %p308
        %s571 = smul.u32 4, %s34
        %p572 = scmp.lt.s32.totalorder %s571, 3
        %s573 = scalar_select %p572, %s571, 3
        %s574 = smul.addr %s573, 8
        %s575 = scalar_lea.vmem %s11, %s574
        %p576 = pneg %p337
        %p577 = pneg %p334
        %p578 = pneg %p358
        %p579 = pneg %p355
        %p580 = scmp.lt.s32.totalorder %s33, 1
        %s581 = scalar_select %p580, %s33, 1
        %s582 = smul.addr %s581, 2
        %s583 = smul.addr %s582, 8
        %s584 = scalar_lea.vmem %s0, %s583
        %p585 = scmp.lt.s32.totalorder %s32, 1
        %s586 = scalar_select %p585, %s32, 1
        %s587 = smul.addr %s586, 2
        %s588 = smul.addr %s587, 8
        %s589 = scalar_lea.vmem %s1, %s588
        %p590 = scmp.lt.s32.totalorder %s32, 1
        %s591 = scalar_select %p590, %s32, 1
        %p592 = scmp.lt.s32.totalorder %s34, 0
        %s593 = scalar_select %p592, %s34, 0
        %s594 = smul.addr %s591, 4
        %s595 = sadd.s32 %s593, %s594
        %s596 = smul.addr %s595, 8
        %s597 = scalar_lea.vmem %s2, %s596
        %p598 = scmp.lt.s32.totalorder %s32, 1
        %s599 = scalar_select %p598, %s32, 1
        %p600 = scmp.lt.s32.totalorder %s34, 0
        %s601 = scalar_select %p600, %s34, 0
        %s602 = smul.addr %s599, 4
        %s603 = sadd.s32 %s601, %s602
        %s604 = smul.addr %s603, 8
        %s605 = scalar_lea.vmem %s3, %s604
        %s606 = smul.u32 4, %s34
        %p607 = scmp.lt.s32.totalorder %s606, 3
        %s608 = scalar_select %p607, %s606, 3
        %s609 = smul.addr %s608, 8
        %s610 = scalar_lea.vmem %s10, %s609
        %s611 = smul.u32 4, %s34
        %s612 = smul.u32 4, %s34
        %p613 = scmp.lt.s32.totalorder %s612, 3
        %s614 = scalar_select %p613, %s612, 3
        %s615 = smul.addr %s614, 8
        %s616 = scalar_lea.vmem %s11, %s615
        %s617 = smul.u32 4, %s34
        %p619 = scmp.eq.s32.totalorder %s32, 0
        %p620 = scmp.eq.s32.totalorder %s33, 0
        %p621 = pnand %p619, %p620
        %p622 = pneg %p621
        %p623 = scmp.eq.s32.totalorder %s34, 0
        %p624 = pnand %p622, %p623
        %p625 = pneg %p624
        // Predicated region
        $region85: #{tpu_custom_call.1} parent=67 // pred_check
          _
        $region86: #{tpu_custom_call.1} parent=67 // pred_check_branch
          %627 = sbr.rel (%p624) target = $region88
        $region87: #{tpu_custom_call.1} parent=67 // pred_region
          %vm628 = vcmask 130048
          %629 = vst.msk [vmem:[#allocation14] sm:$0xff] %vm628, 0.0
          %630 = vst.msk [vmem:[#allocation14 + $0x8] sm:$0xff] %vm628, 0.0
        $region88: #{tpu_custom_call.1} parent=67 // pred_fallthru
          _
        // Predicated region
        $region89: #{tpu_custom_call.1} parent=67 // pred_check
          %p631 = pneg %p623
        $region90: #{tpu_custom_call.1} parent=67 // pred_check_branch
          %633 = sbr.rel (%p631) target = $region92
        $region91: #{tpu_custom_call.1} parent=67 // pred_region
          %v634 = vld [vmem:[%s584] sm:$0xff]
          %v635 = vld [vmem:[%s584 + $0x8] sm:$0xff]
          %v636 = vld [vmem:[%s589] sm:$0xff]
          %v637 = vld [vmem:[%s589 + $0x8] sm:$0xff]
          %v638 = vadd.f32 %v634, %v636
          %v639 = vadd.f32 %v635, %v637
          %v640 = vand.u32 2147483647, %v638
          %vm641 = vcmp.le.f32.partialorder %v640, 0.7853982
          %vm642 = vcmp.lt.s32.totalorder %v638, 0
          %v643 = vand.u32 %v638, 2139095040
          %v644 = vshrl.u32 %v643, 23
          %v645 = vsub.s32 %v644, 127
          %v646 = vand.u32 2147483647, %v638
          %v647 = vand.u32 %v646, 8388607
          %v648 = vor.u32 %v647, 8388608
          %v649 = vsub.s32 0, %v648
          %v650 = vadd.s32 %v645, 1
          %vm651 = vcmp.gt.s32.totalorder %v650, 0
          %v652 = vsel %vm651, %v650, 0
          %v653 = vshrl.u32 %v652, 5
          %v654 = vand.u32 %v652, 31
          %v655 = vsub.s32 32, %v654
          %v656 = vshrl.u32 683565275, %v655
          %v657 = vshll.u32 683565275, %v654
          %v658 = vshrl.u32 2475754826, %v655
          %v659 = vor.u32 %v657, %v658
          %v660 = vshll.u32 2475754826, %v654
          %v661 = vshrl.u32 2131351028, %v655
          %v662 = vor.u32 %v660, %v661
          %v663 = vshll.u32 2131351028, %v654
          %v664 = vshrl.u32 2102212464, %v655
          %v665 = vor.u32 %v663, %v664
          %v666 = vshll.u32 2102212464, %v654
          %v667 = vshrl.u32 920167782, %v655
          %v668 = vor.u32 %v666, %v667
          %v669 = vshll.u32 920167782, %v654
          %v670 = vshrl.u32 1326507024, %v655
          %v671 = vor.u32 %v669, %v670
          %vm672 = vcmp.lt.s32.totalorder %v653, 1
          %vm673 = vcmp.lt.s32.totalorder %v653, 2
          %vm674 = vcmp.lt.s32.totalorder %v653, 3
          %vm675 = vcmp.lt.s32.totalorder %v653, 4
          %v676 = vsel %vm672, %v656, %v659
          %v677 = vsel %vm675, %v665, 2102212464
          %v678 = vsel %vm674, %v662, %v677
          %v679 = vsel %vm673, %v676, %v678
          %v680 = vsel %vm672, %v659, %v662
          %v681 = vsel %vm675, %v668, 920167782
          %v682 = vsel %vm674, %v665, %v681
          %v683 = vsel %vm673, %v680, %v682
          %v684 = vsel %vm672, %v662, %v665
          %v685 = vsel %vm675, %v671, 1326507024
          %v686 = vsel %vm674, %v668, %v685
          %v687 = vsel %vm673, %v684, %v686
          %v688 = vshll.u32 %v648, 8
          %v689 = vmul.u32.u64.compose %v688, %v687
          %v690 = vextract.low.u32 %v689
          %v691 = vextract.high.u32 %v689
          %v692 = vmul.u32.u64.compose %v688, %v683
          %v693 = vextract.low.u32 %v692
          %v694 = vextract.high.u32 %v692
          %v695 = vmul.u32 %v688, %v679
          %v696 = vadd.s32 %v691, %v693
          %vm697 = vc.u32 %v691, %v693
          %v698 = vadd.s32 %v694, 1
          %v699 = vsel %vm697, %v698, %v694
          %v700 = vadd.s32 %v695, %v699
          %v701 = vadd.s32 %v700, 536870912
          %v702 = vshrl.u32 %v701, 30
          %v703 = vshll.u32 %v702, 30
          %v704 = vsub.s32 %v700, %v703
          %vm705 = vcmp.lt.s32.totalorder %v704, 0
          %v706 = vsub.s32 0, %v704
          %v707 = vsel %vm705, %v706, %v704
          %v708 = vclz %v707
          %v709 = vsub.s32 %v708, 2
          %vm710 = vcmp.gt.s32.totalorder 0, %v709
          %v711 = vsel %vm710, 0, %v709
          %v712 = vsub.s32 32, %v711
          %v713 = vshll.u32 %v704, %v711
          %v714 = vshrl.u32 %v696, %v712
          %v715 = vor.u32 %v713, %v714
          %v716 = vsub.s32 4294967266, %v711
          %v717 = vadd.s32 %v716, 127
          %v718 = vshll.u32 %v717, 23
          %v719 = vor.u32 4788187, %v718
          %v720 = vand.u32 2147483647, %v719
          %v722 = vcvt.s32.f32 %v715
          %v723 = vmul.f32 %v722, %v720
          %v724 = vxor.u32 %v723, 2147483648
          %v725 = vsel %vm642, %v724, %v723
          %v726 = vsub.s32 4, %v702
          %v727 = vsel %vm642, %v726, %v702
          %v728 = vsel %vm641, %v638, %v725
          %v729 = vsel %vm641, 0, %v727
          %v730 = vcosq.f32.pop %v728
          %v731 = vsinq.f32.pop %v728
          %vm732 = vweird.f32 %v638
          %v733 = vand.u32 %v729, 3
          %vm734 = vcmp.lt.s32.totalorder %v733, 2
          %vm735 = vcmp.eq.s32.totalorder %v733, 0
          %v736 = vxor.u32 %v731, 2147483648
          %v737 = vsel %vm735, %v730, %v736
          %vm738 = vcmp.eq.s32.totalorder %v733, 2
          %v739 = vxor.u32 %v730, 2147483648
          %v740 = vsel %vm738, %v739, %v731
          %v741 = vsel %vm734, %v737, %v740
          %v742 = vsel %vm732, nan, %v741
          %v743 = vand.u32 2147483647, %v639
          %vm744 = vcmp.le.f32.partialorder %v743, 0.7853982
          %vm745 = vcmp.lt.s32.totalorder %v639, 0
          %v746 = vand.u32 %v639, 2139095040
          %v747 = vshrl.u32 %v746, 23
          %v748 = vsub.s32 %v747, 127
          %v749 = vand.u32 2147483647, %v639
          %v750 = vand.u32 %v749, 8388607
          %v751 = vor.u32 %v750, 8388608
          %v752 = vsub.s32 0, %v751
          %v753 = vadd.s32 %v748, 1
          %vm754 = vcmp.gt.s32.totalorder %v753, 0
          %v755 = vsel %vm754, %v753, 0
          %v756 = vshrl.u32 %v755, 5
          %v757 = vand.u32 %v755, 31
          %v758 = vsub.s32 32, %v757
          %v759 = vshrl.u32 683565275, %v758
          %v760 = vshll.u32 683565275, %v757
          %v761 = vshrl.u32 2475754826, %v758
          %v762 = vor.u32 %v760, %v761
          %v763 = vshll.u32 2475754826, %v757
          %v764 = vshrl.u32 2131351028, %v758
          %v765 = vor.u32 %v763, %v764
          %v766 = vshll.u32 2131351028, %v757
          %v767 = vshrl.u32 2102212464, %v758
          %v768 = vor.u32 %v766, %v767
          %v769 = vshll.u32 2102212464, %v757
          %v770 = vshrl.u32 920167782, %v758
          %v771 = vor.u32 %v769, %v770
          %v772 = vshll.u32 920167782, %v757
          %v773 = vshrl.u32 1326507024, %v758
          %v774 = vor.u32 %v772, %v773
          %vm775 = vcmp.lt.s32.totalorder %v756, 1
          %vm776 = vcmp.lt.s32.totalorder %v756, 2
          %vm777 = vcmp.lt.s32.totalorder %v756, 3
          %vm778 = vcmp.lt.s32.totalorder %v756, 4
          %v779 = vsel %vm775, %v759, %v762
          %v780 = vsel %vm778, %v768, 2102212464
          %v781 = vsel %vm777, %v765, %v780
          %v782 = vsel %vm776, %v779, %v781
          %v783 = vsel %vm775, %v762, %v765
          %v784 = vsel %vm778, %v771, 920167782
          %v785 = vsel %vm777, %v768, %v784
          %v786 = vsel %vm776, %v783, %v785
          %v787 = vsel %vm775, %v765, %v768
          %v788 = vsel %vm778, %v774, 1326507024
          %v789 = vsel %vm777, %v771, %v788
          %v790 = vsel %vm776, %v787, %v789
          %v791 = vshll.u32 %v751, 8
          %v792 = vmul.u32.u64.compose %v791, %v790
          %v793 = vextract.low.u32 %v792
          %v794 = vextract.high.u32 %v792
          %v795 = vmul.u32.u64.compose %v791, %v786
          %v796 = vextract.low.u32 %v795
          %v797 = vextract.high.u32 %v795
          %v798 = vmul.u32 %v791, %v782
          %v799 = vadd.s32 %v794, %v796
          %vm800 = vc.u32 %v794, %v796
          %v801 = vadd.s32 %v797, 1
          %v802 = vsel %vm800, %v801, %v797
          %v803 = vadd.s32 %v798, %v802
          %v804 = vadd.s32 %v803, 536870912
          %v805 = vshrl.u32 %v804, 30
          %v806 = vshll.u32 %v805, 30
          %v807 = vsub.s32 %v803, %v806
          %vm808 = vcmp.lt.s32.totalorder %v807, 0
          %v809 = vsub.s32 0, %v807
          %v810 = vsel %vm808, %v809, %v807
          %v811 = vclz %v810
          %v812 = vsub.s32 %v811, 2
          %vm813 = vcmp.gt.s32.totalorder 0, %v812
          %v814 = vsel %vm813, 0, %v812
          %v815 = vsub.s32 32, %v814
          %v816 = vshll.u32 %v807, %v814
          %v817 = vshrl.u32 %v799, %v815
          %v818 = vor.u32 %v816, %v817
          %v819 = vsub.s32 4294967266, %v814
          %v820 = vadd.s32 %v819, 127
          %v821 = vshll.u32 %v820, 23
          %v822 = vor.u32 4788187, %v821
          %v823 = vand.u32 2147483647, %v822
          %v825 = vcvt.s32.f32 %v818
          %v826 = vmul.f32 %v825, %v823
          %v827 = vxor.u32 %v826, 2147483648
          %v828 = vsel %vm745, %v827, %v826
          %v829 = vsub.s32 4, %v805
          %v830 = vsel %vm745, %v829, %v805
          %v831 = vsel %vm744, %v639, %v828
          %v832 = vsel %vm744, 0, %v830
          %v833 = vcosq.f32.pop %v831
          %v834 = vsinq.f32.pop %v831
          %vm835 = vweird.f32 %v639
          %v836 = vand.u32 %v832, 3
          %vm837 = vcmp.lt.s32.totalorder %v836, 2
          %vm838 = vcmp.eq.s32.totalorder %v836, 0
          %v839 = vxor.u32 %v834, 2147483648
          %v840 = vsel %vm838, %v833, %v839
          %vm841 = vcmp.eq.s32.totalorder %v836, 2
          %v842 = vxor.u32 %v833, 2147483648
          %v843 = vsel %vm841, %v842, %v834
          %v844 = vsel %vm837, %v840, %v843
          %v845 = vsel %vm835, nan, %v844
          %v846 = vand.u32 2147483647, %v638
          %vm847 = vcmp.le.f32.partialorder %v846, 0.7853982
          %vm848 = vcmp.lt.s32.totalorder %v638, 0
          %v849 = vand.u32 %v638, 2139095040
          %v850 = vshrl.u32 %v849, 23
          %v851 = vsub.s32 %v850, 127
          %v852 = vand.u32 2147483647, %v638
          %v853 = vand.u32 %v852, 8388607
          %v854 = vor.u32 %v853, 8388608
          %v855 = vsub.s32 0, %v854
          %v856 = vadd.s32 %v851, 1
          %vm857 = vcmp.gt.s32.totalorder %v856, 0
          %v858 = vsel %vm857, %v856, 0
          %v859 = vshrl.u32 %v858, 5
          %v860 = vand.u32 %v858, 31
          %v861 = vsub.s32 32, %v860
          %v862 = vshrl.u32 683565275, %v861
          %v863 = vshll.u32 683565275, %v860
          %v864 = vshrl.u32 2475754826, %v861
          %v865 = vor.u32 %v863, %v864
          %v866 = vshll.u32 2475754826, %v860
          %v867 = vshrl.u32 2131351028, %v861
          %v868 = vor.u32 %v866, %v867
          %v869 = vshll.u32 2131351028, %v860
          %v870 = vshrl.u32 2102212464, %v861
          %v871 = vor.u32 %v869, %v870
          %v872 = vshll.u32 2102212464, %v860
          %v873 = vshrl.u32 920167782, %v861
          %v874 = vor.u32 %v872, %v873
          %v875 = vshll.u32 920167782, %v860
          %v876 = vshrl.u32 1326507024, %v861
          %v877 = vor.u32 %v875, %v876
          %vm878 = vcmp.lt.s32.totalorder %v859, 1
          %vm879 = vcmp.lt.s32.totalorder %v859, 2
          %vm880 = vcmp.lt.s32.totalorder %v859, 3
          %vm881 = vcmp.lt.s32.totalorder %v859, 4
          %v882 = vsel %vm878, %v862, %v865
          %v883 = vsel %vm881, %v871, 2102212464
          %v884 = vsel %vm880, %v868, %v883
          %v885 = vsel %vm879, %v882, %v884
          %v886 = vsel %vm878, %v865, %v868
          %v887 = vsel %vm881, %v874, 920167782
          %v888 = vsel %vm880, %v871, %v887
          %v889 = vsel %vm879, %v886, %v888
          %v890 = vsel %vm878, %v868, %v871
          %v891 = vsel %vm881, %v877, 1326507024
          %v892 = vsel %vm880, %v874, %v891
          %v893 = vsel %vm879, %v890, %v892
          %v894 = vshll.u32 %v854, 8
          %v895 = vmul.u32.u64.compose %v894, %v893
          %v896 = vextract.low.u32 %v895
          %v897 = vextract.high.u32 %v895
          %v898 = vmul.u32.u64.compose %v894, %v889
          %v899 = vextract.low.u32 %v898
          %v900 = vextract.high.u32 %v898
          %v901 = vmul.u32 %v894, %v885
          %v902 = vadd.s32 %v897, %v899
          %vm903 = vc.u32 %v897, %v899
          %v904 = vadd.s32 %v900, 1
          %v905 = vsel %vm903, %v904, %v900
          %v906 = vadd.s32 %v901, %v905
          %v907 = vadd.s32 %v906, 536870912
          %v908 = vshrl.u32 %v907, 30
          %v909 = vshll.u32 %v908, 30
          %v910 = vsub.s32 %v906, %v909
          %vm911 = vcmp.lt.s32.totalorder %v910, 0
          %v912 = vsub.s32 0, %v910
          %v913 = vsel %vm911, %v912, %v910
          %v914 = vclz %v913
          %v915 = vsub.s32 %v914, 2
          %vm916 = vcmp.gt.s32.totalorder 0, %v915
          %v917 = vsel %vm916, 0, %v915
          %v918 = vsub.s32 32, %v917
          %v919 = vshll.u32 %v910, %v917
          %v920 = vshrl.u32 %v902, %v918
          %v921 = vor.u32 %v919, %v920
          %v922 = vsub.s32 4294967266, %v917
          %v923 = vadd.s32 %v922, 127
          %v924 = vshll.u32 %v923, 23
          %v925 = vor.u32 4788187, %v924
          %v926 = vand.u32 2147483647, %v925
          %v928 = vcvt.s32.f32 %v921
          %v929 = vmul.f32 %v928, %v926
          %v930 = vxor.u32 %v929, 2147483648
          %v931 = vsel %vm848, %v930, %v929
          %v932 = vsub.s32 4, %v908
          %v933 = vsel %vm848, %v932, %v908
          %v934 = vsel %vm847, %v638, %v931
          %v935 = vsel %vm847, 0, %v933
          %v936 = vcosq.f32.pop %v934
          %v937 = vsinq.f32.pop %v934
          %vm938 = vweird.f32 %v638
          %v939 = vadd.s32 %v935, 3
          %v940 = vand.u32 %v939, 3
          %vm941 = vcmp.lt.s32.totalorder %v940, 2
          %vm942 = vcmp.eq.s32.totalorder %v940, 0
          %v943 = vxor.u32 %v937, 2147483648
          %v944 = vsel %vm942, %v936, %v943
          %vm945 = vcmp.eq.s32.totalorder %v940, 2
          %v946 = vxor.u32 %v936, 2147483648
          %v947 = vsel %vm945, %v946, %v937
          %v948 = vsel %vm941, %v944, %v947
          %v949 = vsel %vm938, nan, %v948
          %v950 = vand.u32 2147483647, %v639
          %vm951 = vcmp.le.f32.partialorder %v950, 0.7853982
          %vm952 = vcmp.lt.s32.totalorder %v639, 0
          %v953 = vand.u32 %v639, 2139095040
          %v954 = vshrl.u32 %v953, 23
          %v955 = vsub.s32 %v954, 127
          %v956 = vand.u32 2147483647, %v639
          %v957 = vand.u32 %v956, 8388607
          %v958 = vor.u32 %v957, 8388608
          %v959 = vsub.s32 0, %v958
          %v960 = vadd.s32 %v955, 1
          %vm961 = vcmp.gt.s32.totalorder %v960, 0
          %v962 = vsel %vm961, %v960, 0
          %v963 = vshrl.u32 %v962, 5
          %v964 = vand.u32 %v962, 31
          %v965 = vsub.s32 32, %v964
          %v966 = vshrl.u32 683565275, %v965
          %v967 = vshll.u32 683565275, %v964
          %v968 = vshrl.u32 2475754826, %v965
          %v969 = vor.u32 %v967, %v968
          %v970 = vshll.u32 2475754826, %v964
          %v971 = vshrl.u32 2131351028, %v965
          %v972 = vor.u32 %v970, %v971
          %v973 = vshll.u32 2131351028, %v964
          %v974 = vshrl.u32 2102212464, %v965
          %v975 = vor.u32 %v973, %v974
          %v976 = vshll.u32 2102212464, %v964
          %v977 = vshrl.u32 920167782, %v965
          %v978 = vor.u32 %v976, %v977
          %v979 = vshll.u32 920167782, %v964
          %v980 = vshrl.u32 1326507024, %v965
          %v981 = vor.u32 %v979, %v980
          %vm982 = vcmp.lt.s32.totalorder %v963, 1
          %vm983 = vcmp.lt.s32.totalorder %v963, 2
          %vm984 = vcmp.lt.s32.totalorder %v963, 3
          %vm985 = vcmp.lt.s32.totalorder %v963, 4
          %v986 = vsel %vm982, %v966, %v969
          %v987 = vsel %vm985, %v975, 2102212464
          %v988 = vsel %vm984, %v972, %v987
          %v989 = vsel %vm983, %v986, %v988
          %v990 = vsel %vm982, %v969, %v972
          %v991 = vsel %vm985, %v978, 920167782
          %v992 = vsel %vm984, %v975, %v991
          %v993 = vsel %vm983, %v990, %v992
          %v994 = vsel %vm982, %v972, %v975
          %v995 = vsel %vm985, %v981, 1326507024
          %v996 = vsel %vm984, %v978, %v995
          %v997 = vsel %vm983, %v994, %v996
          %v998 = vshll.u32 %v958, 8
          %v999 = vmul.u32.u64.compose %v998, %v997
          %v1000 = vextract.low.u32 %v999
          %v1001 = vextract.high.u32 %v999
          %v1002 = vmul.u32.u64.compose %v998, %v993
          %v1003 = vextract.low.u32 %v1002
          %v1004 = vextract.high.u32 %v1002
          %v1005 = vmul.u32 %v998, %v989
          %v1006 = vadd.s32 %v1001, %v1003
          %vm1007 = vc.u32 %v1001, %v1003
          %v1008 = vadd.s32 %v1004, 1
          %v1009 = vsel %vm1007, %v1008, %v1004
          %v1010 = vadd.s32 %v1005, %v1009
          %v1011 = vadd.s32 %v1010, 536870912
          %v1012 = vshrl.u32 %v1011, 30
          %v1013 = vshll.u32 %v1012, 30
          %v1014 = vsub.s32 %v1010, %v1013
          %vm1015 = vcmp.lt.s32.totalorder %v1014, 0
          %v1016 = vsub.s32 0, %v1014
          %v1017 = vsel %vm1015, %v1016, %v1014
          %v1018 = vclz %v1017
          %v1019 = vsub.s32 %v1018, 2
          %vm1020 = vcmp.gt.s32.totalorder 0, %v1019
          %v1021 = vsel %vm1020, 0, %v1019
          %v1022 = vsub.s32 32, %v1021
          %v1023 = vshll.u32 %v1014, %v1021
          %v1024 = vshrl.u32 %v1006, %v1022
          %v1025 = vor.u32 %v1023, %v1024
          %v1026 = vsub.s32 4294967266, %v1021
          %v1027 = vadd.s32 %v1026, 127
          %v1028 = vshll.u32 %v1027, 23
          %v1029 = vor.u32 4788187, %v1028
          %v1030 = vand.u32 2147483647, %v1029
          %v1032 = vcvt.s32.f32 %v1025
          %v1033 = vmul.f32 %v1032, %v1030
          %v1034 = vxor.u32 %v1033, 2147483648
          %v1035 = vsel %vm952, %v1034, %v1033
          %v1036 = vsub.s32 4, %v1012
          %v1037 = vsel %vm952, %v1036, %v1012
          %v1038 = vsel %vm951, %v639, %v1035
          %v1039 = vsel %vm951, 0, %v1037
          %v1040 = vcosq.f32.pop %v1038
          %v1041 = vsinq.f32.pop %v1038
          %vm1042 = vweird.f32 %v639
          %v1043 = vadd.s32 %v1039, 3
          %v1044 = vand.u32 %v1043, 3
          %vm1045 = vcmp.lt.s32.totalorder %v1044, 2
          %vm1046 = vcmp.eq.s32.totalorder %v1044, 0
          %v1047 = vxor.u32 %v1041, 2147483648
          %v1048 = vsel %vm1046, %v1040, %v1047
          %vm1049 = vcmp.eq.s32.totalorder %v1044, 2
          %v1050 = vxor.u32 %v1040, 2147483648
          %v1051 = vsel %vm1049, %v1050, %v1041
          %v1052 = vsel %vm1045, %v1048, %v1051
          %v1053 = vsel %vm1042, nan, %v1052
          %v1054 = vld [vmem:[%s4] sm:$0xff]
          %v1055 = vld [vmem:[%s4 + $0x8] sm:$0xff]
          %v1056 = vld [vmem:[%s4 + $0x10] sm:$0xff]
          %v1057 = vld [vmem:[%s4 + $0x18] sm:$0xff]
          %v1058 = vld [vmem:[%s5] sm:$0xff]
          %v1059 = vld [vmem:[%s5 + $0x8] sm:$0xff]
          %v1060 = vld [vmem:[%s5 + $0x10] sm:$0xff]
          %v1061 = vld [vmem:[%s5 + $0x18] sm:$0xff]
          %v1062 = vpack.c.bf16 %v1055, %v1054
          %v1063 = vpack.c.bf16 %v1057, %v1056
          %v1064 = vunpack.c.l.bf16 %v1062
          %v1065 = vunpack.c.h.bf16 %v1062
          %v1066 = vunpack.c.l.bf16 %v1063
          %v1067 = vunpack.c.h.bf16 %v1063
          %v1068 = vsub.f32 %v1054, %v1064
          %v1069 = vsub.f32 %v1055, %v1065
          %v1070 = vsub.f32 %v1056, %v1066
          %v1071 = vsub.f32 %v1057, %v1067
          %v1072 = vpack.c.bf16 %v1069, %v1068
          %v1073 = vpack.c.bf16 %v1071, %v1070
          %v1074 = vpack.c.bf16 %v1059, %v1058
          %v1075 = vpack.c.bf16 %v1061, %v1060
          %v1076 = vunpack.c.l.bf16 %v1074
          %v1077 = vunpack.c.h.bf16 %v1074
          %v1078 = vunpack.c.l.bf16 %v1075
          %v1079 = vunpack.c.h.bf16 %v1075
          %v1080 = vsub.f32 %v1058, %v1076
          %v1081 = vsub.f32 %v1059, %v1077
          %v1082 = vsub.f32 %v1060, %v1078
          %v1083 = vsub.f32 %v1061, %v1079
          %v1084 = vpack.c.bf16 %v1081, %v1080
          %v1085 = vpack.c.bf16 %v1083, %v1082
          %v1086 = vpack.c.bf16 %v845, %v742
          %v1087 = vunpack.c.l.bf16 %v1086
          %v1088 = vunpack.c.h.bf16 %v1086
          %v1089 = vsub.f32 %v742, %v1087
          %v1090 = vsub.f32 %v845, %v1088
          %v1091 = vpack.c.bf16 %v1090, %v1089
          %v1092 = vpack.c.bf16 %v1053, %v949
          %v1093 = vunpack.c.l.bf16 %v1092
          %v1094 = vunpack.c.h.bf16 %v1092
          %v1095 = vsub.f32 %v949, %v1093
          %v1096 = vsub.f32 %v1053, %v1094
          %v1097 = vpack.c.bf16 %v1096, %v1095
          %vm1098 = vcmask 130048
          %v1100 = vsel %vm1098, %v1072, 0
          %v1103 = vsel %vm1098, %v1073, 0
          %1105 = vmatprep.subr.bf16.mxu0 0
          %1106 = vmatpush1.bf16.msra.mxu0 %v1086
          %1107 = vmatprep.subr.bf16.mxu0 0
          %1108 = vmatpush1.bf16.msra.mxu0 0
          %1109 = vmatprep.subr.bf16.mxu0 0
          %1110 = vmatpush1.bf16.msra.mxu0 0
          %1111 = vmatprep.subr.bf16.mxu0 0
          %1112 = vmatpush1.bf16.msra.mxu0 0
          %1113 = vmatprep.subr.bf16.mxu0 0
          %1114 = vmatpush1.bf16.msra.mxu0 0
          %1115 = vmatprep.subr.bf16.mxu0 0
          %1116 = vmatpush1.bf16.msra.mxu0 0
          %1117 = vmatprep.subr.bf16.mxu0 0
          %1118 = vmatpush1.bf16.msra.mxu0 0
          %1119 = vmatprep.subr.bf16.mxu0 0
          %1120 = vmatpush1.bf16.msra.mxu0 0
          %1121 = vmatprep.subr.bf16.mxu0 0
          %1122 = vmatpush1.bf16.msra.mxu0 0
          %1123 = vmatprep.subr.bf16.mxu0 0
          %1124 = vmatpush1.bf16.msra.mxu0 0
          %1125 = vmatprep.subr.bf16.mxu0 0
          %1126 = vmatpush1.bf16.msra.mxu0 0
          %1127 = vmatprep.subr.bf16.mxu0 0
          %1128 = vmatpush1.bf16.msra.mxu0 0
          %1129 = vmatprep.subr.bf16.mxu0 0
          %1130 = vmatpush1.bf16.msra.mxu0 0
          %1131 = vmatprep.subr.bf16.mxu0 0
          %1132 = vmatpush1.bf16.msra.mxu0 0
          %1133 = vmatprep.subr.bf16.mxu0 0
          %1134 = vmatpush1.bf16.msra.mxu0 0
          %1135 = vmatprep.subr.bf16.mxu0 0
          %1136 = vmatpush1.bf16.msra.mxu0 0
          %1137 = vmatprep.mubr.bf16.mxu0 0
          %1138 = vmatmul.mubr.bf16.gmra.mrb[0].mxu0 %v1100
          %v1139 = vpop.f32.mrb[0].mxu0
          %v1140 = vadd.f32 0.0, %v1139
          %v1141 = vpop.f32.mrb[0].mxu0
          %v1142 = vpop.f32.mrb[0].mxu0
          %v1143 = vadd.f32 0.0, %v1142
          %v1144 = vpop.f32.mrb[0].mxu0
          %1145 = vmatprep.mubr.bf16.mxu0 0
          %1146 = vmatmul.mubr.bf16.gmra.mrb[0].mxu0 %v1103
          %v1147 = vpop.f32.mrb[0].mxu0
          %v1148 = vadd.f32 0.0, %v1147
          %v1149 = vpop.f32.mrb[0].mxu0
          %v1150 = vpop.f32.mrb[0].mxu0
          %v1151 = vadd.f32 0.0, %v1150
          %v1152 = vpop.f32.mrb[0].mxu0
          %1153 = vdwg.mxu0
          %v1155 = vsel %vm1098, %v1062, 0
          %v1158 = vsel %vm1098, %v1063, 0
          %1160 = vmatprep.subr.bf16.mxu0 0
          %1161 = vmatpush1.bf16.msra.mxu0 %v1091
          %1162 = vmatprep.subr.bf16.mxu0 0
          %1163 = vmatpush1.bf16.msra.mxu0 0
          %1164 = vmatprep.subr.bf16.mxu0 0
          %1165 = vmatpush1.bf16.msra.mxu0 0
          %1166 = vmatprep.subr.bf16.mxu0 0
          %1167 = vmatpush1.bf16.msra.mxu0 0
          %1168 = vmatprep.subr.bf16.mxu0 0
          %1169 = vmatpush1.bf16.msra.mxu0 0
          %1170 = vmatprep.subr.bf16.mxu0 0
          %1171 = vmatpush1.bf16.msra.mxu0 0
          %1172 = vmatprep.subr.bf16.mxu0 0
          %1173 = vmatpush1.bf16.msra.mxu0 0
          %1174 = vmatprep.subr.bf16.mxu0 0
          %1175 = vmatpush1.bf16.msra.mxu0 0
          %1176 = vmatprep.subr.bf16.mxu0 0
          %1177 = vmatpush1.bf16.msra.mxu0 0
          %1178 = vmatprep.subr.bf16.mxu0 0
          %1179 = vmatpush1.bf16.msra.mxu0 0
          %1180 = vmatprep.subr.bf16.mxu0 0
          %1181 = vmatpush1.bf16.msra.mxu0 0
          %1182 = vmatprep.subr.bf16.mxu0 0
          %1183 = vmatpush1.bf16.msra.mxu0 0
          %1184 = vmatprep.subr.bf16.mxu0 0
          %1185 = vmatpush1.bf16.msra.mxu0 0
          %1186 = vmatprep.subr.bf16.mxu0 0
          %1187 = vmatpush1.bf16.msra.mxu0 0
          %1188 = vmatprep.subr.bf16.mxu0 0
          %1189 = vmatpush1.bf16.msra.mxu0 0
          %1190 = vmatprep.subr.bf16.mxu0 0
          %1191 = vmatpush1.bf16.msra.mxu0 0
          %1192 = vmatprep.mubr.bf16.mxu0 0
          %1193 = vmatmul.mubr.bf16.gmra.mrb[0].mxu0 %v1155
          %v1194 = vpop.f32.mrb[0].mxu0
          %v1195 = vadd.f32 %v1140, %v1194
          %v1196 = vpop.f32.mrb[0].mxu0
          %v1197 = vpop.f32.mrb[0].mxu0
          %v1198 = vadd.f32 %v1143, %v1197
          %v1199 = vpop.f32.mrb[0].mxu0
          %1200 = vmatprep.mubr.bf16.mxu0 0
          %1201 = vmatmul.mubr.bf16.gmra.mrb[0].mxu0 %v1158
          %v1202 = vpop.f32.mrb[0].mxu0
          %v1203 = vadd.f32 %v1148, %v1202
          %v1204 = vpop.f32.mrb[0].mxu0
          %v1205 = vpop.f32.mrb[0].mxu0
          %v1206 = vadd.f32 %v1151, %v1205
          %v1207 = vpop.f32.mrb[0].mxu0
          %1208 = vdwg.mxu0
          %1209 = vmatprep.subr.bf16.mxu0 0
          %1210 = vmatpush1.bf16.msra.mxu0 %v1086
          %1211 = vmatprep.subr.bf16.mxu0 0
          %1212 = vmatpush1.bf16.msra.mxu0 0
          %1213 = vmatprep.subr.bf16.mxu0 0
          %1214 = vmatpush1.bf16.msra.mxu0 0
          %1215 = vmatprep.subr.bf16.mxu0 0
          %1216 = vmatpush1.bf16.msra.mxu0 0
          %1217 = vmatprep.subr.bf16.mxu0 0
          %1218 = vmatpush1.bf16.msra.mxu0 0
          %1219 = vmatprep.subr.bf16.mxu0 0
          %1220 = vmatpush1.bf16.msra.mxu0 0
          %1221 = vmatprep.subr.bf16.mxu0 0
          %1222 = vmatpush1.bf16.msra.mxu0 0
          %1223 = vmatprep.subr.bf16.mxu0 0
          %1224 = vmatpush1.bf16.msra.mxu0 0
          %1225 = vmatprep.subr.bf16.mxu0 0
          %1226 = vmatpush1.bf16.msra.mxu0 0
          %1227 = vmatprep.subr.bf16.mxu0 0
          %1228 = vmatpush1.bf16.msra.mxu0 0
          %1229 = vmatprep.subr.bf16.mxu0 0
          %1230 = vmatpush1.bf16.msra.mxu0 0
          %1231 = vmatprep.subr.bf16.mxu0 0
          %1232 = vmatpush1.bf16.msra.mxu0 0
          %1233 = vmatprep.subr.bf16.mxu0 0
          %1234 = vmatpush1.bf16.msra.mxu0 0
          %1235 = vmatprep.subr.bf16.mxu0 0
          %1236 = vmatpush1.bf16.msra.mxu0 0
          %1237 = vmatprep.subr.bf16.mxu0 0
          %1238 = vmatpush1.bf16.msra.mxu0 0
          %1239 = vmatprep.subr.bf16.mxu0 0
          %1240 = vmatpush1.bf16.msra.mxu0 0
          %1241 = vmatprep.mubr.bf16.mxu0 0
          %1242 = vmatmul.mubr.bf16.gmra.mrb[0].mxu0 %v1155
          %v1243 = vpop.f32.mrb[0].mxu0
          %v1244 = vadd.f32 %v1195, %v1243
          %v1245 = vpop.f32.mrb[0].mxu0
          %v1246 = vpop.f32.mrb[0].mxu0
          %v1247 = vadd.f32 %v1198, %v1246
          %v1248 = vpop.f32.mrb[0].mxu0
          %1249 = vmatprep.mubr.bf16.mxu0 0
          %1250 = vmatmul.mubr.bf16.gmra.mrb[0].mxu0 %v1158
          %v1251 = vpop.f32.mrb[0].mxu0
          %v1252 = vadd.f32 %v1203, %v1251
          %v1253 = vpop.f32.mrb[0].mxu0
          %v1254 = vpop.f32.mrb[0].mxu0
          %v1255 = vadd.f32 %v1206, %v1254
          %v1256 = vpop.f32.mrb[0].mxu0
          %1257 = vdwg.mxu0
          %v1259 = vsel %vm1098, %v1084, 0
          %v1262 = vsel %vm1098, %v1085, 0
          %1264 = vmatprep.subr.bf16.mxu0 0
          %1265 = vmatpush1.bf16.msra.mxu0 %v1092
          %1266 = vmatprep.subr.bf16.mxu0 0
          %1267 = vmatpush1.bf16.msra.mxu0 0
          %1268 = vmatprep.subr.bf16.mxu0 0
          %1269 = vmatpush1.bf16.msra.mxu0 0
          %1270 = vmatprep.subr.bf16.mxu0 0
          %1271 = vmatpush1.bf16.msra.mxu0 0
          %1272 = vmatprep.subr.bf16.mxu0 0
          %1273 = vmatpush1.bf16.msra.mxu0 0
          %1274 = vmatprep.subr.bf16.mxu0 0
          %1275 = vmatpush1.bf16.msra.mxu0 0
          %1276 = vmatprep.subr.bf16.mxu0 0
          %1277 = vmatpush1.bf16.msra.mxu0 0
          %1278 = vmatprep.subr.bf16.mxu0 0
          %1279 = vmatpush1.bf16.msra.mxu0 0
          %1280 = vmatprep.subr.bf16.mxu0 0
          %1281 = vmatpush1.bf16.msra.mxu0 0
          %1282 = vmatprep.subr.bf16.mxu0 0
          %1283 = vmatpush1.bf16.msra.mxu0 0
          %1284 = vmatprep.subr.bf16.mxu0 0
          %1285 = vmatpush1.bf16.msra.mxu0 0
          %1286 = vmatprep.subr.bf16.mxu0 0
          %1287 = vmatpush1.bf16.msra.mxu0 0
          %1288 = vmatprep.subr.bf16.mxu0 0
          %1289 = vmatpush1.bf16.msra.mxu0 0
          %1290 = vmatprep.subr.bf16.mxu0 0
          %1291 = vmatpush1.bf16.msra.mxu0 0
          %1292 = vmatprep.subr.bf16.mxu0 0
          %1293 = vmatpush1.bf16.msra.mxu0 0
          %1294 = vmatprep.subr.bf16.mxu0 0
          %1295 = vmatpush1.bf16.msra.mxu0 0
          %1296 = vmatprep.mubr.bf16.mxu0 0
          %1297 = vmatmul.mubr.bf16.gmra.mrb[0].mxu0 %v1259
          %v1298 = vpop.f32.mrb[0].mxu0
          %v1299 = vadd.f32 0.0, %v1298
          %v1300 = vpop.f32.mrb[0].mxu0
          %v1301 = vpop.f32.mrb[0].mxu0
          %v1302 = vadd.f32 0.0, %v1301
          %v1303 = vpop.f32.mrb[0].mxu0
          %1304 = vmatprep.mubr.bf16.mxu0 0
          %1305 = vmatmul.mubr.bf16.gmra.mrb[0].mxu0 %v1262
          %v1306 = vpop.f32.mrb[0].mxu0
          %v1307 = vadd.f32 0.0, %v1306
          %v1308 = vpop.f32.mrb[0].mxu0
          %v1309 = vpop.f32.mrb[0].mxu0
          %v1310 = vadd.f32 0.0, %v1309
          %v1311 = vpop.f32.mrb[0].mxu0
          %1312 = vdwg.mxu0
          %v1314 = vsel %vm1098, %v1074, 0
          %v1317 = vsel %vm1098, %v1075, 0
          %1319 = vmatprep.subr.bf16.mxu0 0
          %1320 = vmatpush1.bf16.msra.mxu0 %v1097
          %1321 = vmatprep.subr.bf16.mxu0 0
          %1322 = vmatpush1.bf16.msra.mxu0 0
          %1323 = vmatprep.subr.bf16.mxu0 0
          %1324 = vmatpush1.bf16.msra.mxu0 0
          %1325 = vmatprep.subr.bf16.mxu0 0
          %1326 = vmatpush1.bf16.msra.mxu0 0
          %1327 = vmatprep.subr.bf16.mxu0 0
          %1328 = vmatpush1.bf16.msra.mxu0 0
          %1329 = vmatprep.subr.bf16.mxu0 0
          %1330 = vmatpush1.bf16.msra.mxu0 0
          %1331 = vmatprep.subr.bf16.mxu0 0
          %1332 = vmatpush1.bf16.msra.mxu0 0
          %1333 = vmatprep.subr.bf16.mxu0 0
          %1334 = vmatpush1.bf16.msra.mxu0 0
          %1335 = vmatprep.subr.bf16.mxu0 0
          %1336 = vmatpush1.bf16.msra.mxu0 0
          %1337 = vmatprep.subr.bf16.mxu0 0
          %1338 = vmatpush1.bf16.msra.mxu0 0
          %1339 = vmatprep.subr.bf16.mxu0 0
          %1340 = vmatpush1.bf16.msra.mxu0 0
          %1341 = vmatprep.subr.bf16.mxu0 0
          %1342 = vmatpush1.bf16.msra.mxu0 0
          %1343 = vmatprep.subr.bf16.mxu0 0
          %1344 = vmatpush1.bf16.msra.mxu0 0
          %1345 = vmatprep.subr.bf16.mxu0 0
          %1346 = vmatpush1.bf16.msra.mxu0 0
          %1347 = vmatprep.subr.bf16.mxu0 0
          %1348 = vmatpush1.bf16.msra.mxu0 0
          %1349 = vmatprep.subr.bf16.mxu0 0
          %1350 = vmatpush1.bf16.msra.mxu0 0
          %1351 = vmatprep.mubr.bf16.mxu0 0
          %1352 = vmatmul.mubr.bf16.gmra.mrb[0].mxu0 %v1314
          %v1353 = vpop.f32.mrb[0].mxu0
          %v1354 = vadd.f32 %v1299, %v1353
          %v1355 = vpop.f32.mrb[0].mxu0
          %v1356 = vpop.f32.mrb[0].mxu0
          %v1357 = vadd.f32 %v1302, %v1356
          %v1358 = vpop.f32.mrb[0].mxu0
          %1359 = vmatprep.mubr.bf16.mxu0 0
          %1360 = vmatmul.mubr.bf16.gmra.mrb[0].mxu0 %v1317
          %v1361 = vpop.f32.mrb[0].mxu0
          %v1362 = vadd.f32 %v1307, %v1361
          %v1363 = vpop.f32.mrb[0].mxu0
          %v1364 = vpop.f32.mrb[0].mxu0
          %v1365 = vadd.f32 %v1310, %v1364
          %v1366 = vpop.f32.mrb[0].mxu0
          %1367 = vdwg.mxu0
          %1368 = vmatprep.subr.bf16.mxu0 0
          %1369 = vmatpush1.bf16.msra.mxu0 %v1092
          %1370 = vmatprep.subr.bf16.mxu0 0
          %1371 = vmatpush1.bf16.msra.mxu0 0
          %1372 = vmatprep.subr.bf16.mxu0 0
          %1373 = vmatpush1.bf16.msra.mxu0 0
          %1374 = vmatprep.subr.bf16.mxu0 0
          %1375 = vmatpush1.bf16.msra.mxu0 0
          %1376 = vmatprep.subr.bf16.mxu0 0
          %1377 = vmatpush1.bf16.msra.mxu0 0
          %1378 = vmatprep.subr.bf16.mxu0 0
          %1379 = vmatpush1.bf16.msra.mxu0 0
          %1380 = vmatprep.subr.bf16.mxu0 0
          %1381 = vmatpush1.bf16.msra.mxu0 0
          %1382 = vmatprep.subr.bf16.mxu0 0
          %1383 = vmatpush1.bf16.msra.mxu0 0
          %1384 = vmatprep.subr.bf16.mxu0 0
          %1385 = vmatpush1.bf16.msra.mxu0 0
          %1386 = vmatprep.subr.bf16.mxu0 0
          %1387 = vmatpush1.bf16.msra.mxu0 0
          %1388 = vmatprep.subr.bf16.mxu0 0
          %1389 = vmatpush1.bf16.msra.mxu0 0
          %1390 = vmatprep.subr.bf16.mxu0 0
          %1391 = vmatpush1.bf16.msra.mxu0 0
          %1392 = vmatprep.subr.bf16.mxu0 0
          %1393 = vmatpush1.bf16.msra.mxu0 0
          %1394 = vmatprep.subr.bf16.mxu0 0
          %1395 = vmatpush1.bf16.msra.mxu0 0
          %1396 = vmatprep.subr.bf16.mxu0 0
          %1397 = vmatpush1.bf16.msra.mxu0 0
          %1398 = vmatprep.subr.bf16.mxu0 0
          %1399 = vmatpush1.bf16.msra.mxu0 0
          %1400 = vmatprep.mubr.bf16.mxu0 0
          %1401 = vmatmul.mubr.bf16.gmra.mrb[0].mxu0 %v1314
          %v1402 = vpop.f32.mrb[0].mxu0
          %v1403 = vadd.f32 %v1354, %v1402
          %v1404 = vpop.f32.mrb[0].mxu0
          %v1405 = vpop.f32.mrb[0].mxu0
          %v1406 = vadd.f32 %v1357, %v1405
          %v1407 = vpop.f32.mrb[0].mxu0
          %1408 = vmatprep.mubr.bf16.mxu0 0
          %1409 = vmatmul.mubr.bf16.gmra.mrb[0].mxu0 %v1317
          %v1410 = vpop.f32.mrb[0].mxu0
          %v1411 = vadd.f32 %v1362, %v1410
          %v1412 = vpop.f32.mrb[0].mxu0
          %v1413 = vpop.f32.mrb[0].mxu0
          %v1414 = vadd.f32 %v1365, %v1413
          %v1415 = vpop.f32.mrb[0].mxu0
          %1416 = vdwg.mxu0
          %v1417 = vsub.f32 %v1244, %v1403
          %v1418 = vsub.f32 %v1247, %v1406
          %v1419 = vsub.f32 %v1252, %v1411
          %v1420 = vsub.f32 %v1255, %v1414
          %1421 = vmatprep.subr.bf16.mxu0 0
          %1422 = vmatpush1.bf16.msra.mxu0 %v1092
          %1423 = vmatprep.subr.bf16.mxu0 0
          %1424 = vmatpush1.bf16.msra.mxu0 0
          %1425 = vmatprep.subr.bf16.mxu0 0
          %1426 = vmatpush1.bf16.msra.mxu0 0
          %1427 = vmatprep.subr.bf16.mxu0 0
          %1428 = vmatpush1.bf16.msra.mxu0 0
          %1429 = vmatprep.subr.bf16.mxu0 0
          %1430 = vmatpush1.bf16.msra.mxu0 0
          %1431 = vmatprep.subr.bf16.mxu0 0
          %1432 = vmatpush1.bf16.msra.mxu0 0
          %1433 = vmatprep.subr.bf16.mxu0 0
          %1434 = vmatpush1.bf16.msra.mxu0 0
          %1435 = vmatprep.subr.bf16.mxu0 0
          %1436 = vmatpush1.bf16.msra.mxu0 0
          %1437 = vmatprep.subr.bf16.mxu0 0
          %1438 = vmatpush1.bf16.msra.mxu0 0
          %1439 = vmatprep.subr.bf16.mxu0 0
          %1440 = vmatpush1.bf16.msra.mxu0 0
          %1441 = vmatprep.subr.bf16.mxu0 0
          %1442 = vmatpush1.bf16.msra.mxu0 0
          %1443 = vmatprep.subr.bf16.mxu0 0
          %1444 = vmatpush1.bf16.msra.mxu0 0
          %1445 = vmatprep.subr.bf16.mxu0 0
          %1446 = vmatpush1.bf16.msra.mxu0 0
          %1447 = vmatprep.subr.bf16.mxu0 0
          %1448 = vmatpush1.bf16.msra.mxu0 0
          %1449 = vmatprep.subr.bf16.mxu0 0
          %1450 = vmatpush1.bf16.msra.mxu0 0
          %1451 = vmatprep.subr.bf16.mxu0 0
          %1452 = vmatpush1.bf16.msra.mxu0 0
          %1453 = vmatprep.mubr.bf16.mxu0 0
          %1454 = vmatmul.mubr.bf16.gmra.mrb[0].mxu0 %v1100
          %v1455 = vpop.f32.mrb[0].mxu0
          %v1456 = vadd.f32 0.0, %v1455
          %v1457 = vpop.f32.mrb[0].mxu0
          %v1458 = vpop.f32.mrb[0].mxu0
          %v1459 = vadd.f32 0.0, %v1458
          %v1460 = vpop.f32.mrb[0].mxu0
          %1461 = vmatprep.mubr.bf16.mxu0 0
          %1462 = vmatmul.mubr.bf16.gmra.mrb[0].mxu0 %v1103
          %v1463 = vpop.f32.mrb[0].mxu0
          %v1464 = vadd.f32 0.0, %v1463
          %v1465 = vpop.f32.mrb[0].mxu0
          %v1466 = vpop.f32.mrb[0].mxu0
          %v1467 = vadd.f32 0.0, %v1466
          %v1468 = vpop.f32.mrb[0].mxu0
          %1469 = vdwg.mxu0
          %1470 = vmatprep.subr.bf16.mxu0 0
          %1471 = vmatpush1.bf16.msra.mxu0 %v1097
          %1472 = vmatprep.subr.bf16.mxu0 0
          %1473 = vmatpush1.bf16.msra.mxu0 0
          %1474 = vmatprep.subr.bf16.mxu0 0
          %1475 = vmatpush1.bf16.msra.mxu0 0
          %1476 = vmatprep.subr.bf16.mxu0 0
          %1477 = vmatpush1.bf16.msra.mxu0 0
          %1478 = vmatprep.subr.bf16.mxu0 0
          %1479 = vmatpush1.bf16.msra.mxu0 0
          %1480 = vmatprep.subr.bf16.mxu0 0
          %1481 = vmatpush1.bf16.msra.mxu0 0
          %1482 = vmatprep.subr.bf16.mxu0 0
          %1483 = vmatpush1.bf16.msra.mxu0 0
          %1484 = vmatprep.subr.bf16.mxu0 0
          %1485 = vmatpush1.bf16.msra.mxu0 0
          %1486 = vmatprep.subr.bf16.mxu0 0
          %1487 = vmatpush1.bf16.msra.mxu0 0
          %1488 = vmatprep.subr.bf16.mxu0 0
          %1489 = vmatpush1.bf16.msra.mxu0 0
          %1490 = vmatprep.subr.bf16.mxu0 0
          %1491 = vmatpush1.bf16.msra.mxu0 0
          %1492 = vmatprep.subr.bf16.mxu0 0
          %1493 = vmatpush1.bf16.msra.mxu0 0
          %1494 = vmatprep.subr.bf16.mxu0 0
          %1495 = vmatpush1.bf16.msra.mxu0 0
          %1496 = vmatprep.subr.bf16.mxu0 0
          %1497 = vmatpush1.bf16.msra.mxu0 0
          %1498 = vmatprep.subr.bf16.mxu0 0
          %1499 = vmatpush1.bf16.msra.mxu0 0
          %1500 = vmatprep.subr.bf16.mxu0 0
          %1501 = vmatpush1.bf16.msra.mxu0 0
          %1502 = vmatprep.mubr.bf16.mxu0 0
          %1503 = vmatmul.mubr.bf16.gmra.mrb[0].mxu0 %v1155
          %v1504 = vpop.f32.mrb[0].mxu0
          %v1505 = vadd.f32 %v1456, %v1504
          %v1506 = vpop.f32.mrb[0].mxu0
          %v1507 = vpop.f32.mrb[0].mxu0
          %v1508 = vadd.f32 %v1459, %v1507
          %v1509 = vpop.f32.mrb[0].mxu0
          %1510 = vmatprep.mubr.bf16.mxu0 0
          %1511 = vmatmul.mubr.bf16.gmra.mrb[0].mxu0 %v1158
          %v1512 = vpop.f32.mrb[0].mxu0
          %v1513 = vadd.f32 %v1464, %v1512
          %v1514 = vpop.f32.mrb[0].mxu0
          %v1515 = vpop.f32.mrb[0].mxu0
          %v1516 = vadd.f32 %v1467, %v1515
          %v1517 = vpop.f32.mrb[0].mxu0
          %1518 = vdwg.mxu0
          %1519 = vmatprep.subr.bf16.mxu0 0
          %1520 = vmatpush1.bf16.msra.mxu0 %v1092
          %1521 = vmatprep.subr.bf16.mxu0 0
          %1522 = vmatpush1.bf16.msra.mxu0 0
          %1523 = vmatprep.subr.bf16.mxu0 0
          %1524 = vmatpush1.bf16.msra.mxu0 0
          %1525 = vmatprep.subr.bf16.mxu0 0
          %1526 = vmatpush1.bf16.msra.mxu0 0
          %1527 = vmatprep.subr.bf16.mxu0 0
          %1528 = vmatpush1.bf16.msra.mxu0 0
          %1529 = vmatprep.subr.bf16.mxu0 0
          %1530 = vmatpush1.bf16.msra.mxu0 0
          %1531 = vmatprep.subr.bf16.mxu0 0
          %1532 = vmatpush1.bf16.msra.mxu0 0
          %1533 = vmatprep.subr.bf16.mxu0 0
          %1534 = vmatpush1.bf16.msra.mxu0 0
          %1535 = vmatprep.subr.bf16.mxu0 0
          %1536 = vmatpush1.bf16.msra.mxu0 0
          %1537 = vmatprep.subr.bf16.mxu0 0
          %1538 = vmatpush1.bf16.msra.mxu0 0
          %1539 = vmatprep.subr.bf16.mxu0 0
          %1540 = vmatpush1.bf16.msra.mxu0 0
          %1541 = vmatprep.subr.bf16.mxu0 0
          %1542 = vmatpush1.bf16.msra.mxu0 0
          %1543 = vmatprep.subr.bf16.mxu0 0
          %1544 = vmatpush1.bf16.msra.mxu0 0
          %1545 = vmatprep.subr.bf16.mxu0 0
          %1546 = vmatpush1.bf16.msra.mxu0 0
          %1547 = vmatprep.subr.bf16.mxu0 0
          %1548 = vmatpush1.bf16.msra.mxu0 0
          %1549 = vmatprep.subr.bf16.mxu0 0
          %1550 = vmatpush1.bf16.msra.mxu0 0
          %1551 = vmatprep.mubr.bf16.mxu0 0
          %1552 = vmatmul.mubr.bf16.gmra.mrb[0].mxu0 %v1155
          %v1553 = vpop.f32.mrb[0].mxu0
          %v1554 = vadd.f32 %v1505, %v1553
          %v1555 = vpop.f32.mrb[0].mxu0
          %v1556 = vpop.f32.mrb[0].mxu0
          %v1557 = vadd.f32 %v1508, %v1556
          %v1558 = vpop.f32.mrb[0].mxu0
          %1559 = vmatprep.mubr.bf16.mxu0 0
          %1560 = vmatmul.mubr.bf16.gmra.mrb[0].mxu0 %v1158
          %v1561 = vpop.f32.mrb[0].mxu0
          %v1562 = vadd.f32 %v1513, %v1561
          %v1563 = vpop.f32.mrb[0].mxu0
          %v1564 = vpop.f32.mrb[0].mxu0
          %v1565 = vadd.f32 %v1516, %v1564
          %v1566 = vpop.f32.mrb[0].mxu0
          %1567 = vdwg.mxu0
          %1568 = vmatprep.subr.bf16.mxu0 0
          %1569 = vmatpush1.bf16.msra.mxu0 %v1086
          %1570 = vmatprep.subr.bf16.mxu0 0
          %1571 = vmatpush1.bf16.msra.mxu0 0
          %1572 = vmatprep.subr.bf16.mxu0 0
          %1573 = vmatpush1.bf16.msra.mxu0 0
          %1574 = vmatprep.subr.bf16.mxu0 0
          %1575 = vmatpush1.bf16.msra.mxu0 0
          %1576 = vmatprep.subr.bf16.mxu0 0
          %1577 = vmatpush1.bf16.msra.mxu0 0
          %1578 = vmatprep.subr.bf16.mxu0 0
          %1579 = vmatpush1.bf16.msra.mxu0 0
          %1580 = vmatprep.subr.bf16.mxu0 0
          %1581 = vmatpush1.bf16.msra.mxu0 0
          %1582 = vmatprep.subr.bf16.mxu0 0
          %1583 = vmatpush1.bf16.msra.mxu0 0
          %1584 = vmatprep.subr.bf16.mxu0 0
          %1585 = vmatpush1.bf16.msra.mxu0 0
          %1586 = vmatprep.subr.bf16.mxu0 0
          %1587 = vmatpush1.bf16.msra.mxu0 0
          %1588 = vmatprep.subr.bf16.mxu0 0
          %1589 = vmatpush1.bf16.msra.mxu0 0
          %1590 = vmatprep.subr.bf16.mxu0 0
          %1591 = vmatpush1.bf16.msra.mxu0 0
          %1592 = vmatprep.subr.bf16.mxu0 0
          %1593 = vmatpush1.bf16.msra.mxu0 0
          %1594 = vmatprep.subr.bf16.mxu0 0
          %1595 = vmatpush1.bf16.msra.mxu0 0
          %1596 = vmatprep.subr.bf16.mxu0 0
          %1597 = vmatpush1.bf16.msra.mxu0 0
          %1598 = vmatprep.subr.bf16.mxu0 0
          %1599 = vmatpush1.bf16.msra.mxu0 0
          %1600 = vmatprep.mubr.bf16.mxu0 0
          %1601 = vmatmul.mubr.bf16.gmra.mrb[0].mxu0 %v1259
          %v1602 = vpop.f32.mrb[0].mxu0
          %v1603 = vadd.f32 0.0, %v1602
          %v1604 = vpop.f32.mrb[0].mxu0
          %v1605 = vpop.f32.mrb[0].mxu0
          %v1606 = vadd.f32 0.0, %v1605
          %v1607 = vpop.f32.mrb[0].mxu0
          %1608 = vmatprep.mubr.bf16.mxu0 0
          %1609 = vmatmul.mubr.bf16.gmra.mrb[0].mxu0 %v1262
          %v1610 = vpop.f32.mrb[0].mxu0
          %v1611 = vadd.f32 0.0, %v1610
          %v1612 = vpop.f32.mrb[0].mxu0
          %v1613 = vpop.f32.mrb[0].mxu0
          %v1614 = vadd.f32 0.0, %v1613
          %v1615 = vpop.f32.mrb[0].mxu0
          %1616 = vdwg.mxu0
          %1617 = vmatprep.subr.bf16.mxu0 0
          %1618 = vmatpush1.bf16.msra.mxu0 %v1091
          %1619 = vmatprep.subr.bf16.mxu0 0
          %1620 = vmatpush1.bf16.msra.mxu0 0
          %1621 = vmatprep.subr.bf16.mxu0 0
          %1622 = vmatpush1.bf16.msra.mxu0 0
          %1623 = vmatprep.subr.bf16.mxu0 0
          %1624 = vmatpush1.bf16.msra.mxu0 0
          %1625 = vmatprep.subr.bf16.mxu0 0
          %1626 = vmatpush1.bf16.msra.mxu0 0
          %1627 = vmatprep.subr.bf16.mxu0 0
          %1628 = vmatpush1.bf16.msra.mxu0 0
          %1629 = vmatprep.subr.bf16.mxu0 0
          %1630 = vmatpush1.bf16.msra.mxu0 0
          %1631 = vmatprep.subr.bf16.mxu0 0
          %1632 = vmatpush1.bf16.msra.mxu0 0
          %1633 = vmatprep.subr.bf16.mxu0 0
          %1634 = vmatpush1.bf16.msra.mxu0 0
          %1635 = vmatprep.subr.bf16.mxu0 0
          %1636 = vmatpush1.bf16.msra.mxu0 0
          %1637 = vmatprep.subr.bf16.mxu0 0
          %1638 = vmatpush1.bf16.msra.mxu0 0
          %1639 = vmatprep.subr.bf16.mxu0 0
          %1640 = vmatpush1.bf16.msra.mxu0 0
          %1641 = vmatprep.subr.bf16.mxu0 0
          %1642 = vmatpush1.bf16.msra.mxu0 0
          %1643 = vmatprep.subr.bf16.mxu0 0
          %1644 = vmatpush1.bf16.msra.mxu0 0
          %1645 = vmatprep.subr.bf16.mxu0 0
          %1646 = vmatpush1.bf16.msra.mxu0 0
          %1647 = vmatprep.subr.bf16.mxu0 0
          %1648 = vmatpush1.bf16.msra.mxu0 0
          %1649 = vmatprep.mubr.bf16.mxu0 0
          %1650 = vmatmul.mubr.bf16.gmra.mrb[0].mxu0 %v1314
          %v1651 = vpop.f32.mrb[0].mxu0
          %v1652 = vadd.f32 %v1603, %v1651
          %v1653 = vpop.f32.mrb[0].mxu0
          %v1654 = vpop.f32.mrb[0].mxu0
          %v1655 = vadd.f32 %v1606, %v1654
          %v1656 = vpop.f32.mrb[0].mxu0
          %1657 = vmatprep.mubr.bf16.mxu0 0
          %1658 = vmatmul.mubr.bf16.gmra.mrb[0].mxu0 %v1317
          %v1659 = vpop.f32.mrb[0].mxu0
          %v1660 = vadd.f32 %v1611, %v1659
          %v1661 = vpop.f32.mrb[0].mxu0
          %v1662 = vpop.f32.mrb[0].mxu0
          %v1663 = vadd.f32 %v1614, %v1662
          %v1664 = vpop.f32.mrb[0].mxu0
          %1665 = vdwg.mxu0
          %1666 = vmatprep.subr.bf16.mxu0 0
          %1667 = vmatpush1.bf16.msra.mxu0 %v1086
          %1668 = vmatprep.subr.bf16.mxu0 0
          %1669 = vmatpush1.bf16.msra.mxu0 0
          %1670 = vmatprep.subr.bf16.mxu0 0
          %1671 = vmatpush1.bf16.msra.mxu0 0
          %1672 = vmatprep.subr.bf16.mxu0 0
          %1673 = vmatpush1.bf16.msra.mxu0 0
          %1674 = vmatprep.subr.bf16.mxu0 0
          %1675 = vmatpush1.bf16.msra.mxu0 0
          %1676 = vmatprep.subr.bf16.mxu0 0
          %1677 = vmatpush1.bf16.msra.mxu0 0
          %1678 = vmatprep.subr.bf16.mxu0 0
          %1679 = vmatpush1.bf16.msra.mxu0 0
          %1680 = vmatprep.subr.bf16.mxu0 0
          %1681 = vmatpush1.bf16.msra.mxu0 0
          %1682 = vmatprep.subr.bf16.mxu0 0
          %1683 = vmatpush1.bf16.msra.mxu0 0
          %1684 = vmatprep.subr.bf16.mxu0 0
          %1685 = vmatpush1.bf16.msra.mxu0 0
          %1686 = vmatprep.subr.bf16.mxu0 0
          %1687 = vmatpush1.bf16.msra.mxu0 0
          %1688 = vmatprep.subr.bf16.mxu0 0
          %1689 = vmatpush1.bf16.msra.mxu0 0
          %1690 = vmatprep.subr.bf16.mxu0 0
          %1691 = vmatpush1.bf16.msra.mxu0 0
          %1692 = vmatprep.subr.bf16.mxu0 0
          %1693 = vmatpush1.bf16.msra.mxu0 0
          %1694 = vmatprep.subr.bf16.mxu0 0
          %1695 = vmatpush1.bf16.msra.mxu0 0
          %1696 = vmatprep.subr.bf16.mxu0 0
          %1697 = vmatpush1.bf16.msra.mxu0 0
          %1698 = vmatprep.mubr.bf16.mxu0 0
          %1699 = vmatmul.mubr.bf16.gmra.mrb[0].mxu0 %v1314
          %v1700 = vpop.f32.mrb[0].mxu0
          %v1701 = vadd.f32 %v1652, %v1700
          %v1702 = vpop.f32.mrb[0].mxu0
          %v1703 = vpop.f32.mrb[0].mxu0
          %v1704 = vadd.f32 %v1655, %v1703
          %v1705 = vpop.f32.mrb[0].mxu0
          %1706 = vmatprep.mubr.bf16.mxu0 0
          %1707 = vmatmul.mubr.bf16.gmra.mrb[0].mxu0 %v1317
          %v1708 = vpop.f32.mrb[0].mxu0
          %v1709 = vadd.f32 %v1660, %v1708
          %v1710 = vpop.f32.mrb[0].mxu0
          %v1711 = vpop.f32.mrb[0].mxu0
          %v1712 = vadd.f32 %v1663, %v1711
          %v1713 = vpop.f32.mrb[0].mxu0
          %1714 = vdwg.mxu0
          %v1715 = vadd.f32 %v1554, %v1701
          %v1716 = vadd.f32 %v1557, %v1704
          %v1717 = vadd.f32 %v1562, %v1709
          %v1718 = vadd.f32 %v1565, %v1712
          %1719 = vst.msk [vmem:[#allocation2] sm:$0xff] %vm1098, %v1417
          %1720 = vst.msk [vmem:[#allocation2 + $0x8] sm:$0xff] %vm1098, %v1418
          %1721 = vst.msk [vmem:[#allocation2 + $0x10] sm:$0xff] %vm1098, %v1419
          %1722 = vst.msk [vmem:[#allocation2 + $0x18] sm:$0xff] %vm1098, %v1420
          %1723 = vst.msk [vmem:[#allocation3] sm:$0xff] %vm1098, %v1715
          %1724 = vst.msk [vmem:[#allocation3 + $0x8] sm:$0xff] %vm1098, %v1716
          %1725 = vst.msk [vmem:[#allocation3 + $0x10] sm:$0xff] %vm1098, %v1717
          %1726 = vst.msk [vmem:[#allocation3 + $0x18] sm:$0xff] %vm1098, %v1718
          %1727 = vst.msk [vmem:[#allocation4] sm:$0xff] %vm1098, 0.0
          %1728 = vst.msk [vmem:[#allocation4 + $0x8] sm:$0xff] %vm1098, 0.0
          %1729 = vst.msk [vmem:[#allocation5] sm:$0xff] %vm1098, 0.0
          %1730 = vst.msk [vmem:[#allocation5 + $0x8] sm:$0xff] %vm1098, 0.0
        $region92: #{tpu_custom_call.1} parent=67 // pred_fallthru
          _
        %v1731 = vld [vmem:[#allocation2] sm:$0xff]
        %v1732 = vld [vmem:[#allocation2 + $0x8] sm:$0xff]
        %v1733 = vld [vmem:[#allocation2 + $0x10] sm:$0xff]
        %v1734 = vld [vmem:[#allocation2 + $0x18] sm:$0xff]
        %v1735 = vld [vmem:[#allocation3] sm:$0xff]
        %v1736 = vld [vmem:[#allocation3 + $0x8] sm:$0xff]
        %v1737 = vld [vmem:[#allocation3 + $0x10] sm:$0xff]
        %v1738 = vld [vmem:[#allocation3 + $0x18] sm:$0xff]
        %v1739 = vld [vmem:[#allocation6] sm:$0xff]
        %v1740 = vld [vmem:[#allocation6 + $0x8] sm:$0xff]
        %v1741 = vld [vmem:[#allocation9] sm:$0xff]
        %v1742 = vld [vmem:[#allocation9 + $0x8] sm:$0xff]
        %v1743 = vpack.c.bf16 %v1732, %v1731
        %v1744 = vpack.c.bf16 %v1734, %v1733
        %v1745 = vunpack.c.l.bf16 %v1743
        %v1746 = vunpack.c.h.bf16 %v1743
        %v1747 = vunpack.c.l.bf16 %v1744
        %v1748 = vunpack.c.h.bf16 %v1744
        %v1749 = vsub.f32 %v1731, %v1745
        %v1750 = vsub.f32 %v1732, %v1746
        %v1751 = vsub.f32 %v1733, %v1747
        %v1752 = vsub.f32 %v1734, %v1748
        %v1753 = vpack.c.bf16 %v1750, %v1749
        %v1754 = vpack.c.bf16 %v1752, %v1751
        %v1755 = vpack.c.bf16 %v1736, %v1735
        %v1756 = vpack.c.bf16 %v1738, %v1737
        %v1757 = vunpack.c.l.bf16 %v1755
        %v1758 = vunpack.c.h.bf16 %v1755
        %v1759 = vunpack.c.l.bf16 %v1756
        %v1760 = vunpack.c.h.bf16 %v1756
        %v1761 = vsub.f32 %v1735, %v1757
        %v1762 = vsub.f32 %v1736, %v1758
        %v1763 = vsub.f32 %v1737, %v1759
        %v1764 = vsub.f32 %v1738, %v1760
        %v1765 = vpack.c.bf16 %v1762, %v1761
        %v1766 = vpack.c.bf16 %v1764, %v1763
        %v1767 = vpack.c.bf16 %v1740, %v1739
        %v1768 = vunpack.c.l.bf16 %v1767
        %v1769 = vunpack.c.h.bf16 %v1767
        %v1770 = vsub.f32 %v1739, %v1768
        %v1771 = vsub.f32 %v1740, %v1769
        %v1772 = vpack.c.bf16 %v1771, %v1770
        %v1773 = vpack.c.bf16 %v1742, %v1741
        %v1774 = vunpack.c.l.bf16 %v1773
        %v1775 = vunpack.c.h.bf16 %v1773
        %v1776 = vsub.f32 %v1741, %v1774
        %v1777 = vsub.f32 %v1742, %v1775
        %v1778 = vpack.c.bf16 %v1777, %v1776
        %vm1779 = vcmask 130048
        %v1781 = vsel %vm1779, %v1753, 0
        %v1784 = vsel %vm1779, %v1754, 0
        %1786 = vmatprep.subr.bf16.mxu0 0
        %1787 = vmatpush1.bf16.msra.mxu0 %v1767
        %1788 = vmatprep.subr.bf16.mxu0 0
        %1789 = vmatpush1.bf16.msra.mxu0 0
        %1790 = vmatprep.subr.bf16.mxu0 0
        %1791 = vmatpush1.bf16.msra.mxu0 0
        %1792 = vmatprep.subr.bf16.mxu0 0
        %1793 = vmatpush1.bf16.msra.mxu0 0
        %1794 = vmatprep.subr.bf16.mxu0 0
        %1795 = vmatpush1.bf16.msra.mxu0 0
        %1796 = vmatprep.subr.bf16.mxu0 0
        %1797 = vmatpush1.bf16.msra.mxu0 0
        %1798 = vmatprep.subr.bf16.mxu0 0
        %1799 = vmatpush1.bf16.msra.mxu0 0
        %1800 = vmatprep.subr.bf16.mxu0 0
        %1801 = vmatpush1.bf16.msra.mxu0 0
        %1802 = vmatprep.subr.bf16.mxu0 0
        %1803 = vmatpush1.bf16.msra.mxu0 0
        %1804 = vmatprep.subr.bf16.mxu0 0
        %1805 = vmatpush1.bf16.msra.mxu0 0
        %1806 = vmatprep.subr.bf16.mxu0 0
        %1807 = vmatpush1.bf16.msra.mxu0 0
        %1808 = vmatprep.subr.bf16.mxu0 0
        %1809 = vmatpush1.bf16.msra.mxu0 0
        %1810 = vmatprep.subr.bf16.mxu0 0
        %1811 = vmatpush1.bf16.msra.mxu0 0
        %1812 = vmatprep.subr.bf16.mxu0 0
        %1813 = vmatpush1.bf16.msra.mxu0 0
        %1814 = vmatprep.subr.bf16.mxu0 0
        %1815 = vmatpush1.bf16.msra.mxu0 0
        %1816 = vmatprep.subr.bf16.mxu0 0
        %1817 = vmatpush1.bf16.msra.mxu0 0
        %1818 = vmatprep.mubr.bf16.mxu0 0
        %1819 = vmatmul.mubr.bf16.gmra.mrb[0].mxu0 %v1781
        %v1820 = vpop.f32.mrb[0].mxu0
        %v1821 = vadd.f32 0.0, %v1820
        %v1822 = vpop.f32.mrb[0].mxu0
        %v1823 = vpop.f32.mrb[0].mxu0
        %v1824 = vadd.f32 0.0, %v1823
        %v1825 = vpop.f32.mrb[0].mxu0
        %1826 = vmatprep.mubr.bf16.mxu0 0
        %1827 = vmatmul.mubr.bf16.gmra.mrb[0].mxu0 %v1784
        %v1828 = vpop.f32.mrb[0].mxu0
        %v1829 = vadd.f32 0.0, %v1828
        %v1830 = vpop.f32.mrb[0].mxu0
        %v1831 = vpop.f32.mrb[0].mxu0
        %v1832 = vadd.f32 0.0, %v1831
        %v1833 = vpop.f32.mrb[0].mxu0
        %1834 = vdwg.mxu0
        %v1836 = vsel %vm1779, %v1743, 0
        %v1839 = vsel %vm1779, %v1744, 0
        %1841 = vmatprep.subr.bf16.mxu0 0
        %1842 = vmatpush1.bf16.msra.mxu0 %v1772
        %1843 = vmatprep.subr.bf16.mxu0 0
        %1844 = vmatpush1.bf16.msra.mxu0 0
        %1845 = vmatprep.subr.bf16.mxu0 0
        %1846 = vmatpush1.bf16.msra.mxu0 0
        %1847 = vmatprep.subr.bf16.mxu0 0
        %1848 = vmatpush1.bf16.msra.mxu0 0
        %1849 = vmatprep.subr.bf16.mxu0 0
        %1850 = vmatpush1.bf16.msra.mxu0 0
        %1851 = vmatprep.subr.bf16.mxu0 0
        %1852 = vmatpush1.bf16.msra.mxu0 0
        %1853 = vmatprep.subr.bf16.mxu0 0
        %1854 = vmatpush1.bf16.msra.mxu0 0
        %1855 = vmatprep.subr.bf16.mxu0 0
        %1856 = vmatpush1.bf16.msra.mxu0 0
        %1857 = vmatprep.subr.bf16.mxu0 0
        %1858 = vmatpush1.bf16.msra.mxu0 0
        %1859 = vmatprep.subr.bf16.mxu0 0
        %1860 = vmatpush1.bf16.msra.mxu0 0
        %1861 = vmatprep.subr.bf16.mxu0 0
        %1862 = vmatpush1.bf16.msra.mxu0 0
        %1863 = vmatprep.subr.bf16.mxu0 0
        %1864 = vmatpush1.bf16.msra.mxu0 0
        %1865 = vmatprep.subr.bf16.mxu0 0
        %1866 = vmatpush1.bf16.msra.mxu0 0
        %1867 = vmatprep.subr.bf16.mxu0 0
        %1868 = vmatpush1.bf16.msra.mxu0 0
        %1869 = vmatprep.subr.bf16.mxu0 0
        %1870 = vmatpush1.bf16.msra.mxu0 0
        %1871 = vmatprep.subr.bf16.mxu0 0
        %1872 = vmatpush1.bf16.msra.mxu0 0
        %1873 = vmatprep.mubr.bf16.mxu0 0
        %1874 = vmatmul.mubr.bf16.gmra.mrb[0].mxu0 %v1836
        %v1875 = vpop.f32.mrb[0].mxu0
        %v1876 = vadd.f32 %v1821, %v1875
        %v1877 = vpop.f32.mrb[0].mxu0
        %v1878 = vpop.f32.mrb[0].mxu0
        %v1879 = vadd.f32 %v1824, %v1878
        %v1880 = vpop.f32.mrb[0].mxu0
        %1881 = vmatprep.mubr.bf16.mxu0 0
        %1882 = vmatmul.mubr.bf16.gmra.mrb[0].mxu0 %v1839
        %v1883 = vpop.f32.mrb[0].mxu0
        %v1884 = vadd.f32 %v1829, %v1883
        %v1885 = vpop.f32.mrb[0].mxu0
        %v1886 = vpop.f32.mrb[0].mxu0
        %v1887 = vadd.f32 %v1832, %v1886
        %v1888 = vpop.f32.mrb[0].mxu0
        %1889 = vdwg.mxu0
        %1890 = vmatprep.subr.bf16.mxu0 0
        %1891 = vmatpush1.bf16.msra.mxu0 %v1767
        %1892 = vmatprep.subr.bf16.mxu0 0
        %1893 = vmatpush1.bf16.msra.mxu0 0
        %1894 = vmatprep.subr.bf16.mxu0 0
        %1895 = vmatpush1.bf16.msra.mxu0 0
        %1896 = vmatprep.subr.bf16.mxu0 0
        %1897 = vmatpush1.bf16.msra.mxu0 0
        %1898 = vmatprep.subr.bf16.mxu0 0
        %1899 = vmatpush1.bf16.msra.mxu0 0
        %1900 = vmatprep.subr.bf16.mxu0 0
        %1901 = vmatpush1.bf16.msra.mxu0 0
        %1902 = vmatprep.subr.bf16.mxu0 0
        %1903 = vmatpush1.bf16.msra.mxu0 0
        %1904 = vmatprep.subr.bf16.mxu0 0
        %1905 = vmatpush1.bf16.msra.mxu0 0
        %1906 = vmatprep.subr.bf16.mxu0 0
        %1907 = vmatpush1.bf16.msra.mxu0 0
        %1908 = vmatprep.subr.bf16.mxu0 0
        %1909 = vmatpush1.bf16.msra.mxu0 0
        %1910 = vmatprep.subr.bf16.mxu0 0
        %1911 = vmatpush1.bf16.msra.mxu0 0
        %1912 = vmatprep.subr.bf16.mxu0 0
        %1913 = vmatpush1.bf16.msra.mxu0 0
        %1914 = vmatprep.subr.bf16.mxu0 0
        %1915 = vmatpush1.bf16.msra.mxu0 0
        %1916 = vmatprep.subr.bf16.mxu0 0
        %1917 = vmatpush1.bf16.msra.mxu0 0
        %1918 = vmatprep.subr.bf16.mxu0 0
        %1919 = vmatpush1.bf16.msra.mxu0 0
        %1920 = vmatprep.subr.bf16.mxu0 0
        %1921 = vmatpush1.bf16.msra.mxu0 0
        %1922 = vmatprep.mubr.bf16.mxu0 0
        %1923 = vmatmul.mubr.bf16.gmra.mrb[0].mxu0 %v1836
        %v1924 = vpop.f32.mrb[0].mxu0
        %v1925 = vadd.f32 %v1876, %v1924
        %v1926 = vpop.f32.mrb[0].mxu0
        %v1927 = vpop.f32.mrb[0].mxu0
        %v1928 = vadd.f32 %v1879, %v1927
        %v1929 = vpop.f32.mrb[0].mxu0
        %1930 = vmatprep.mubr.bf16.mxu0 0
        %1931 = vmatmul.mubr.bf16.gmra.mrb[0].mxu0 %v1839
        %v1932 = vpop.f32.mrb[0].mxu0
        %v1933 = vadd.f32 %v1884, %v1932
        %v1934 = vpop.f32.mrb[0].mxu0
        %v1935 = vpop.f32.mrb[0].mxu0
        %v1936 = vadd.f32 %v1887, %v1935
        %v1937 = vpop.f32.mrb[0].mxu0
        %1938 = vdwg.mxu0
        %v1940 = vsel %vm1779, %v1765, 0
        %v1943 = vsel %vm1779, %v1766, 0
        %1945 = vmatprep.subr.bf16.mxu0 0
        %1946 = vmatpush1.bf16.msra.mxu0 %v1773
        %1947 = vmatprep.subr.bf16.mxu0 0
        %1948 = vmatpush1.bf16.msra.mxu0 0
        %1949 = vmatprep.subr.bf16.mxu0 0
        %1950 = vmatpush1.bf16.msra.mxu0 0
        %1951 = vmatprep.subr.bf16.mxu0 0
        %1952 = vmatpush1.bf16.msra.mxu0 0
        %1953 = vmatprep.subr.bf16.mxu0 0
        %1954 = vmatpush1.bf16.msra.mxu0 0
        %1955 = vmatprep.subr.bf16.mxu0 0
        %1956 = vmatpush1.bf16.msra.mxu0 0
        %1957 = vmatprep.subr.bf16.mxu0 0
        %1958 = vmatpush1.bf16.msra.mxu0 0
        %1959 = vmatprep.subr.bf16.mxu0 0
        %1960 = vmatpush1.bf16.msra.mxu0 0
        %1961 = vmatprep.subr.bf16.mxu0 0
        %1962 = vmatpush1.bf16.msra.mxu0 0
        %1963 = vmatprep.subr.bf16.mxu0 0
        %1964 = vmatpush1.bf16.msra.mxu0 0
        %1965 = vmatprep.subr.bf16.mxu0 0
        %1966 = vmatpush1.bf16.msra.mxu0 0
        %1967 = vmatprep.subr.bf16.mxu0 0
        %1968 = vmatpush1.bf16.msra.mxu0 0
        %1969 = vmatprep.subr.bf16.mxu0 0
        %1970 = vmatpush1.bf16.msra.mxu0 0
        %1971 = vmatprep.subr.bf16.mxu0 0
        %1972 = vmatpush1.bf16.msra.mxu0 0
        %1973 = vmatprep.subr.bf16.mxu0 0
        %1974 = vmatpush1.bf16.msra.mxu0 0
        %1975 = vmatprep.subr.bf16.mxu0 0
        %1976 = vmatpush1.bf16.msra.mxu0 0
        %1977 = vmatprep.mubr.bf16.mxu0 0
        %1978 = vmatmul.mubr.bf16.gmra.mrb[0].mxu0 %v1940
        %v1979 = vpop.f32.mrb[0].mxu0
        %v1980 = vadd.f32 0.0, %v1979
        %v1981 = vpop.f32.mrb[0].mxu0
        %v1982 = vpop.f32.mrb[0].mxu0
        %v1983 = vadd.f32 0.0, %v1982
        %v1984 = vpop.f32.mrb[0].mxu0
        %1985 = vmatprep.mubr.bf16.mxu0 0
        %1986 = vmatmul.mubr.bf16.gmra.mrb[0].mxu0 %v1943
        %v1987 = vpop.f32.mrb[0].mxu0
        %v1988 = vadd.f32 0.0, %v1987
        %v1989 = vpop.f32.mrb[0].mxu0
        %v1990 = vpop.f32.mrb[0].mxu0
        %v1991 = vadd.f32 0.0, %v1990
        %v1992 = vpop.f32.mrb[0].mxu0
        %1993 = vdwg.mxu0
        %v1995 = vsel %vm1779, %v1755, 0
        %v1998 = vsel %vm1779, %v1756, 0
        %2000 = vmatprep.subr.bf16.mxu0 0
        %2001 = vmatpush1.bf16.msra.mxu0 %v1778
        %2002 = vmatprep.subr.bf16.mxu0 0
        %2003 = vmatpush1.bf16.msra.mxu0 0
        %2004 = vmatprep.subr.bf16.mxu0 0
        %2005 = vmatpush1.bf16.msra.mxu0 0
        %2006 = vmatprep.subr.bf16.mxu0 0
        %2007 = vmatpush1.bf16.msra.mxu0 0
        %2008 = vmatprep.subr.bf16.mxu0 0
        %2009 = vmatpush1.bf16.msra.mxu0 0
        %2010 = vmatprep.subr.bf16.mxu0 0
        %2011 = vmatpush1.bf16.msra.mxu0 0
        %2012 = vmatprep.subr.bf16.mxu0 0
        %2013 = vmatpush1.bf16.msra.mxu0 0
        %2014 = vmatprep.subr.bf16.mxu0 0
        %2015 = vmatpush1.bf16.msra.mxu0 0
        %2016 = vmatprep.subr.bf16.mxu0 0
        %2017 = vmatpush1.bf16.msra.mxu0 0
        %2018 = vmatprep.subr.bf16.mxu0 0
        %2019 = vmatpush1.bf16.msra.mxu0 0
        %2020 = vmatprep.subr.bf16.mxu0 0
        %2021 = vmatpush1.bf16.msra.mxu0 0
        %2022 = vmatprep.subr.bf16.mxu0 0
        %2023 = vmatpush1.bf16.msra.mxu0 0
        %2024 = vmatprep.subr.bf16.mxu0 0
        %2025 = vmatpush1.bf16.msra.mxu0 0
        %2026 = vmatprep.subr.bf16.mxu0 0
        %2027 = vmatpush1.bf16.msra.mxu0 0
        %2028 = vmatprep.subr.bf16.mxu0 0
        %2029 = vmatpush1.bf16.msra.mxu0 0
        %2030 = vmatprep.subr.bf16.mxu0 0
        %2031 = vmatpush1.bf16.msra.mxu0 0
        %2032 = vmatprep.mubr.bf16.mxu0 0
        %2033 = vmatmul.mubr.bf16.gmra.mrb[0].mxu0 %v1995
        %v2034 = vpop.f32.mrb[0].mxu0
        %v2035 = vadd.f32 %v1980, %v2034
        %v2036 = vpop.f32.mrb[0].mxu0
        %v2037 = vpop.f32.mrb[0].mxu0
        %v2038 = vadd.f32 %v1983, %v2037
        %v2039 = vpop.f32.mrb[0].mxu0
        %2040 = vmatprep.mubr.bf16.mxu0 0
        %2041 = vmatmul.mubr.bf16.gmra.mrb[0].mxu0 %v1998
        %v2042 = vpop.f32.mrb[0].mxu0
        %v2043 = vadd.f32 %v1988, %v2042
        %v2044 = vpop.f32.mrb[0].mxu0
        %v2045 = vpop.f32.mrb[0].mxu0
        %v2046 = vadd.f32 %v1991, %v2045
        %v2047 = vpop.f32.mrb[0].mxu0
        %2048 = vdwg.mxu0
        %2049 = vmatprep.subr.bf16.mxu0 0
        %2050 = vmatpush1.bf16.msra.mxu0 %v1773
        %2051 = vmatprep.subr.bf16.mxu0 0
        %2052 = vmatpush1.bf16.msra.mxu0 0
        %2053 = vmatprep.subr.bf16.mxu0 0
        %2054 = vmatpush1.bf16.msra.mxu0 0
        %2055 = vmatprep.subr.bf16.mxu0 0
        %2056 = vmatpush1.bf16.msra.mxu0 0
        %2057 = vmatprep.subr.bf16.mxu0 0
        %2058 = vmatpush1.bf16.msra.mxu0 0
        %2059 = vmatprep.subr.bf16.mxu0 0
        %2060 = vmatpush1.bf16.msra.mxu0 0
        %2061 = vmatprep.subr.bf16.mxu0 0
        %2062 = vmatpush1.bf16.msra.mxu0 0
        %2063 = vmatprep.subr.bf16.mxu0 0
        %2064 = vmatpush1.bf16.msra.mxu0 0
        %2065 = vmatprep.subr.bf16.mxu0 0
        %2066 = vmatpush1.bf16.msra.mxu0 0
        %2067 = vmatprep.subr.bf16.mxu0 0
        %2068 = vmatpush1.bf16.msra.mxu0 0
        %2069 = vmatprep.subr.bf16.mxu0 0
        %2070 = vmatpush1.bf16.msra.mxu0 0
        %2071 = vmatprep.subr.bf16.mxu0 0
        %2072 = vmatpush1.bf16.msra.mxu0 0
        %2073 = vmatprep.subr.bf16.mxu0 0
        %2074 = vmatpush1.bf16.msra.mxu0 0
        %2075 = vmatprep.subr.bf16.mxu0 0
        %2076 = vmatpush1.bf16.msra.mxu0 0
        %2077 = vmatprep.subr.bf16.mxu0 0
        %2078 = vmatpush1.bf16.msra.mxu0 0
        %2079 = vmatprep.subr.bf16.mxu0 0
        %2080 = vmatpush1.bf16.msra.mxu0 0
        %2081 = vmatprep.mubr.bf16.mxu0 0
        %2082 = vmatmul.mubr.bf16.gmra.mrb[0].mxu0 %v1995
        %v2083 = vpop.f32.mrb[0].mxu0
        %v2084 = vadd.f32 %v2035, %v2083
        %v2085 = vpop.f32.mrb[0].mxu0
        %v2086 = vpop.f32.mrb[0].mxu0
        %v2087 = vadd.f32 %v2038, %v2086
        %v2088 = vpop.f32.mrb[0].mxu0
        %2089 = vmatprep.mubr.bf16.mxu0 0
        %2090 = vmatmul.mubr.bf16.gmra.mrb[0].mxu0 %v1998
        %v2091 = vpop.f32.mrb[0].mxu0
        %v2092 = vadd.f32 %v2043, %v2091
        %v2093 = vpop.f32.mrb[0].mxu0
        %v2094 = vpop.f32.mrb[0].mxu0
        %v2095 = vadd.f32 %v2046, %v2094
        %v2096 = vpop.f32.mrb[0].mxu0
        %2097 = vdwg.mxu0
        %v2098 = vsub.f32 %v1925, %v2084
        %v2099 = vsub.f32 %v1928, %v2087
        %v2100 = vsub.f32 %v1933, %v2092
        %v2101 = vsub.f32 %v1936, %v2095
        %2102 = vmatprep.subr.bf16.mxu0 0
        %2103 = vmatpush1.bf16.msra.mxu0 %v1773
        %2104 = vmatprep.subr.bf16.mxu0 0
        %2105 = vmatpush1.bf16.msra.mxu0 0
        %2106 = vmatprep.subr.bf16.mxu0 0
        %2107 = vmatpush1.bf16.msra.mxu0 0
        %2108 = vmatprep.subr.bf16.mxu0 0
        %2109 = vmatpush1.bf16.msra.mxu0 0
        %2110 = vmatprep.subr.bf16.mxu0 0
        %2111 = vmatpush1.bf16.msra.mxu0 0
        %2112 = vmatprep.subr.bf16.mxu0 0
        %2113 = vmatpush1.bf16.msra.mxu0 0
        %2114 = vmatprep.subr.bf16.mxu0 0
        %2115 = vmatpush1.bf16.msra.mxu0 0
        %2116 = vmatprep.subr.bf16.mxu0 0
        %2117 = vmatpush1.bf16.msra.mxu0 0
        %2118 = vmatprep.subr.bf16.mxu0 0
        %2119 = vmatpush1.bf16.msra.mxu0 0
        %2120 = vmatprep.subr.bf16.mxu0 0
        %2121 = vmatpush1.bf16.msra.mxu0 0
        %2122 = vmatprep.subr.bf16.mxu0 0
        %2123 = vmatpush1.bf16.msra.mxu0 0
        %2124 = vmatprep.subr.bf16.mxu0 0
        %2125 = vmatpush1.bf16.msra.mxu0 0
        %2126 = vmatprep.subr.bf16.mxu0 0
        %2127 = vmatpush1.bf16.msra.mxu0 0
        %2128 = vmatprep.subr.bf16.mxu0 0
        %2129 = vmatpush1.bf16.msra.mxu0 0
        %2130 = vmatprep.subr.bf16.mxu0 0
        %2131 = vmatpush1.bf16.msra.mxu0 0
        %2132 = vmatprep.subr.bf16.mxu0 0
        %2133 = vmatpush1.bf16.msra.mxu0 0
        %2134 = vmatprep.mubr.bf16.mxu0 0
        %2135 = vmatmul.mubr.bf16.gmra.mrb[0].mxu0 %v1781
        %v2136 = vpop.f32.mrb[0].mxu0
        %v2137 = vadd.f32 0.0, %v2136
        %v2138 = vpop.f32.mrb[0].mxu0
        %v2139 = vpop.f32.mrb[0].mxu0
        %v2140 = vadd.f32 0.0, %v2139
        %v2141 = vpop.f32.mrb[0].mxu0
        %2142 = vmatprep.mubr.bf16.mxu0 0
        %2143 = vmatmul.mubr.bf16.gmra.mrb[0].mxu0 %v1784
        %v2144 = vpop.f32.mrb[0].mxu0
        %v2145 = vadd.f32 0.0, %v2144
        %v2146 = vpop.f32.mrb[0].mxu0
        %v2147 = vpop.f32.mrb[0].mxu0
        %v2148 = vadd.f32 0.0, %v2147
        %v2149 = vpop.f32.mrb[0].mxu0
        %2150 = vdwg.mxu0
        %2151 = vmatprep.subr.bf16.mxu0 0
        %2152 = vmatpush1.bf16.msra.mxu0 %v1778
        %2153 = vmatprep.subr.bf16.mxu0 0
        %2154 = vmatpush1.bf16.msra.mxu0 0
        %2155 = vmatprep.subr.bf16.mxu0 0
        %2156 = vmatpush1.bf16.msra.mxu0 0
        %2157 = vmatprep.subr.bf16.mxu0 0
        %2158 = vmatpush1.bf16.msra.mxu0 0
        %2159 = vmatprep.subr.bf16.mxu0 0
        %2160 = vmatpush1.bf16.msra.mxu0 0
        %2161 = vmatprep.subr.bf16.mxu0 0
        %2162 = vmatpush1.bf16.msra.mxu0 0
        %2163 = vmatprep.subr.bf16.mxu0 0
        %2164 = vmatpush1.bf16.msra.mxu0 0
        %2165 = vmatprep.subr.bf16.mxu0 0
        %2166 = vmatpush1.bf16.msra.mxu0 0
        %2167 = vmatprep.subr.bf16.mxu0 0
        %2168 = vmatpush1.bf16.msra.mxu0 0
        %2169 = vmatprep.subr.bf16.mxu0 0
        %2170 = vmatpush1.bf16.msra.mxu0 0
        %2171 = vmatprep.subr.bf16.mxu0 0
        %2172 = vmatpush1.bf16.msra.mxu0 0
        %2173 = vmatprep.subr.bf16.mxu0 0
        %2174 = vmatpush1.bf16.msra.mxu0 0
        %2175 = vmatprep.subr.bf16.mxu0 0
        %2176 = vmatpush1.bf16.msra.mxu0 0
        %2177 = vmatprep.subr.bf16.mxu0 0
        %2178 = vmatpush1.bf16.msra.mxu0 0
        %2179 = vmatprep.subr.bf16.mxu0 0
        %2180 = vmatpush1.bf16.msra.mxu0 0
        %2181 = vmatprep.subr.bf16.mxu0 0
        %2182 = vmatpush1.bf16.msra.mxu0 0
        %2183 = vmatprep.mubr.bf16.mxu0 0
        %2184 = vmatmul.mubr.bf16.gmra.mrb[0].mxu0 %v1836
        %v2185 = vpop.f32.mrb[0].mxu0
        %v2186 = vadd.f32 %v2137, %v2185
        %v2187 = vpop.f32.mrb[0].mxu0
        %v2188 = vpop.f32.mrb[0].mxu0
        %v2189 = vadd.f32 %v2140, %v2188
        %v2190 = vpop.f32.mrb[0].mxu0
        %2191 = vmatprep.mubr.bf16.mxu0 0
        %2192 = vmatmul.mubr.bf16.gmra.mrb[0].mxu0 %v1839
        %v2193 = vpop.f32.mrb[0].mxu0
        %v2194 = vadd.f32 %v2145, %v2193
        %v2195 = vpop.f32.mrb[0].mxu0
        %v2196 = vpop.f32.mrb[0].mxu0
        %v2197 = vadd.f32 %v2148, %v2196
        %v2198 = vpop.f32.mrb[0].mxu0
        %2199 = vdwg.mxu0
        %2200 = vmatprep.subr.bf16.mxu0 0
        %2201 = vmatpush1.bf16.msra.mxu0 %v1773
        %2202 = vmatprep.subr.bf16.mxu0 0
        %2203 = vmatpush1.bf16.msra.mxu0 0
        %2204 = vmatprep.subr.bf16.mxu0 0
        %2205 = vmatpush1.bf16.msra.mxu0 0
        %2206 = vmatprep.subr.bf16.mxu0 0
        %2207 = vmatpush1.bf16.msra.mxu0 0
        %2208 = vmatprep.subr.bf16.mxu0 0
        %2209 = vmatpush1.bf16.msra.mxu0 0
        %2210 = vmatprep.subr.bf16.mxu0 0
        %2211 = vmatpush1.bf16.msra.mxu0 0
        %2212 = vmatprep.subr.bf16.mxu0 0
        %2213 = vmatpush1.bf16.msra.mxu0 0
        %2214 = vmatprep.subr.bf16.mxu0 0
        %2215 = vmatpush1.bf16.msra.mxu0 0
        %2216 = vmatprep.subr.bf16.mxu0 0
        %2217 = vmatpush1.bf16.msra.mxu0 0
        %2218 = vmatprep.subr.bf16.mxu0 0
        %2219 = vmatpush1.bf16.msra.mxu0 0
        %2220 = vmatprep.subr.bf16.mxu0 0
        %2221 = vmatpush1.bf16.msra.mxu0 0
        %2222 = vmatprep.subr.bf16.mxu0 0
        %2223 = vmatpush1.bf16.msra.mxu0 0
        %2224 = vmatprep.subr.bf16.mxu0 0
        %2225 = vmatpush1.bf16.msra.mxu0 0
        %2226 = vmatprep.subr.bf16.mxu0 0
        %2227 = vmatpush1.bf16.msra.mxu0 0
        %2228 = vmatprep.subr.bf16.mxu0 0
        %2229 = vmatpush1.bf16.msra.mxu0 0
        %2230 = vmatprep.subr.bf16.mxu0 0
        %2231 = vmatpush1.bf16.msra.mxu0 0
        %2232 = vmatprep.mubr.bf16.mxu0 0
        %2233 = vmatmul.mubr.bf16.gmra.mrb[0].mxu0 %v1836
        %v2234 = vpop.f32.mrb[0].mxu0
        %v2235 = vadd.f32 %v2186, %v2234
        %v2236 = vpop.f32.mrb[0].mxu0
        %v2237 = vpop.f32.mrb[0].mxu0
        %v2238 = vadd.f32 %v2189, %v2237
        %v2239 = vpop.f32.mrb[0].mxu0
        %2240 = vmatprep.mubr.bf16.mxu0 0
        %2241 = vmatmul.mubr.bf16.gmra.mrb[0].mxu0 %v1839
        %v2242 = vpop.f32.mrb[0].mxu0
        %v2243 = vadd.f32 %v2194, %v2242
        %v2244 = vpop.f32.mrb[0].mxu0
        %v2245 = vpop.f32.mrb[0].mxu0
        %v2246 = vadd.f32 %v2197, %v2245
        %v2247 = vpop.f32.mrb[0].mxu0
        %2248 = vdwg.mxu0
        %2249 = vmatprep.subr.bf16.mxu0 0
        %2250 = vmatpush1.bf16.msra.mxu0 %v1767
        %2251 = vmatprep.subr.bf16.mxu0 0
        %2252 = vmatpush1.bf16.msra.mxu0 0
        %2253 = vmatprep.subr.bf16.mxu0 0
        %2254 = vmatpush1.bf16.msra.mxu0 0
        %2255 = vmatprep.subr.bf16.mxu0 0
        %2256 = vmatpush1.bf16.msra.mxu0 0
        %2257 = vmatprep.subr.bf16.mxu0 0
        %2258 = vmatpush1.bf16.msra.mxu0 0
        %2259 = vmatprep.subr.bf16.mxu0 0
        %2260 = vmatpush1.bf16.msra.mxu0 0
        %2261 = vmatprep.subr.bf16.mxu0 0
        %2262 = vmatpush1.bf16.msra.mxu0 0
        %2263 = vmatprep.subr.bf16.mxu0 0
        %2264 = vmatpush1.bf16.msra.mxu0 0
        %2265 = vmatprep.subr.bf16.mxu0 0
        %2266 = vmatpush1.bf16.msra.mxu0 0
        %2267 = vmatprep.subr.bf16.mxu0 0
        %2268 = vmatpush1.bf16.msra.mxu0 0
        %2269 = vmatprep.subr.bf16.mxu0 0
        %2270 = vmatpush1.bf16.msra.mxu0 0
        %2271 = vmatprep.subr.bf16.mxu0 0
        %2272 = vmatpush1.bf16.msra.mxu0 0
        %2273 = vmatprep.subr.bf16.mxu0 0
        %2274 = vmatpush1.bf16.msra.mxu0 0
        %2275 = vmatprep.subr.bf16.mxu0 0
        %2276 = vmatpush1.bf16.msra.mxu0 0
        %2277 = vmatprep.subr.bf16.mxu0 0
        %2278 = vmatpush1.bf16.msra.mxu0 0
        %2279 = vmatprep.subr.bf16.mxu0 0
        %2280 = vmatpush1.bf16.msra.mxu0 0
        %2281 = vmatprep.mubr.bf16.mxu0 0
        %2282 = vmatmul.mubr.bf16.gmra.mrb[0].mxu0 %v1940
        %v2283 = vpop.f32.mrb[0].mxu0
        %v2284 = vadd.f32 0.0, %v2283
        %v2285 = vpop.f32.mrb[0].mxu0
        %v2286 = vpop.f32.mrb[0].mxu0
        %v2287 = vadd.f32 0.0, %v2286
        %v2288 = vpop.f32.mrb[0].mxu0
        %2289 = vmatprep.mubr.bf16.mxu0 0
        %2290 = vmatmul.mubr.bf16.gmra.mrb[0].mxu0 %v1943
        %v2291 = vpop.f32.mrb[0].mxu0
        %v2292 = vadd.f32 0.0, %v2291
        %v2293 = vpop.f32.mrb[0].mxu0
        %v2294 = vpop.f32.mrb[0].mxu0
        %v2295 = vadd.f32 0.0, %v2294
        %v2296 = vpop.f32.mrb[0].mxu0
        %2297 = vdwg.mxu0
        %2298 = vmatprep.subr.bf16.mxu0 0
        %2299 = vmatpush1.bf16.msra.mxu0 %v1772
        %2300 = vmatprep.subr.bf16.mxu0 0
        %2301 = vmatpush1.bf16.msra.mxu0 0
        %2302 = vmatprep.subr.bf16.mxu0 0
        %2303 = vmatpush1.bf16.msra.mxu0 0
        %2304 = vmatprep.subr.bf16.mxu0 0
        %2305 = vmatpush1.bf16.msra.mxu0 0
        %2306 = vmatprep.subr.bf16.mxu0 0
        %2307 = vmatpush1.bf16.msra.mxu0 0
        %2308 = vmatprep.subr.bf16.mxu0 0
        %2309 = vmatpush1.bf16.msra.mxu0 0
        %2310 = vmatprep.subr.bf16.mxu0 0
        %2311 = vmatpush1.bf16.msra.mxu0 0
        %2312 = vmatprep.subr.bf16.mxu0 0
        %2313 = vmatpush1.bf16.msra.mxu0 0
        %2314 = vmatprep.subr.bf16.mxu0 0
        %2315 = vmatpush1.bf16.msra.mxu0 0
        %2316 = vmatprep.subr.bf16.mxu0 0
        %2317 = vmatpush1.bf16.msra.mxu0 0
        %2318 = vmatprep.subr.bf16.mxu0 0
        %2319 = vmatpush1.bf16.msra.mxu0 0
        %2320 = vmatprep.subr.bf16.mxu0 0
        %2321 = vmatpush1.bf16.msra.mxu0 0
        %2322 = vmatprep.subr.bf16.mxu0 0
        %2323 = vmatpush1.bf16.msra.mxu0 0
        %2324 = vmatprep.subr.bf16.mxu0 0
        %2325 = vmatpush1.bf16.msra.mxu0 0
        %2326 = vmatprep.subr.bf16.mxu0 0
        %2327 = vmatpush1.bf16.msra.mxu0 0
        %2328 = vmatprep.subr.bf16.mxu0 0
        %2329 = vmatpush1.bf16.msra.mxu0 0
        %2330 = vmatprep.mubr.bf16.mxu0 0
        %2331 = vmatmul.mubr.bf16.gmra.mrb[0].mxu0 %v1995
        %v2332 = vpop.f32.mrb[0].mxu0
        %v2333 = vadd.f32 %v2284, %v2332
        %v2334 = vpop.f32.mrb[0].mxu0
        %v2335 = vpop.f32.mrb[0].mxu0
        %v2336 = vadd.f32 %v2287, %v2335
        %v2337 = vpop.f32.mrb[0].mxu0
        %2338 = vmatprep.mubr.bf16.mxu0 0
        %2339 = vmatmul.mubr.bf16.gmra.mrb[0].mxu0 %v1998
        %v2340 = vpop.f32.mrb[0].mxu0
        %v2341 = vadd.f32 %v2292, %v2340
        %v2342 = vpop.f32.mrb[0].mxu0
        %v2343 = vpop.f32.mrb[0].mxu0
        %v2344 = vadd.f32 %v2295, %v2343
        %v2345 = vpop.f32.mrb[0].mxu0
        %2346 = vdwg.mxu0
        %2347 = vmatprep.subr.bf16.mxu0 0
        %2348 = vmatpush1.bf16.msra.mxu0 %v1767
        %2349 = vmatprep.subr.bf16.mxu0 0
        %2350 = vmatpush1.bf16.msra.mxu0 0
        %2351 = vmatprep.subr.bf16.mxu0 0
        %2352 = vmatpush1.bf16.msra.mxu0 0
        %2353 = vmatprep.subr.bf16.mxu0 0
        %2354 = vmatpush1.bf16.msra.mxu0 0
        %2355 = vmatprep.subr.bf16.mxu0 0
        %2356 = vmatpush1.bf16.msra.mxu0 0
        %2357 = vmatprep.subr.bf16.mxu0 0
        %2358 = vmatpush1.bf16.msra.mxu0 0
        %2359 = vmatprep.subr.bf16.mxu0 0
        %2360 = vmatpush1.bf16.msra.mxu0 0
        %2361 = vmatprep.subr.bf16.mxu0 0
        %2362 = vmatpush1.bf16.msra.mxu0 0
        %2363 = vmatprep.subr.bf16.mxu0 0
        %2364 = vmatpush1.bf16.msra.mxu0 0
        %2365 = vmatprep.subr.bf16.mxu0 0
        %2366 = vmatpush1.bf16.msra.mxu0 0
        %2367 = vmatprep.subr.bf16.mxu0 0
        %2368 = vmatpush1.bf16.msra.mxu0 0
        %2369 = vmatprep.subr.bf16.mxu0 0
        %2370 = vmatpush1.bf16.msra.mxu0 0
        %2371 = vmatprep.subr.bf16.mxu0 0
        %2372 = vmatpush1.bf16.msra.mxu0 0
        %2373 = vmatprep.subr.bf16.mxu0 0
        %2374 = vmatpush1.bf16.msra.mxu0 0
        %2375 = vmatprep.subr.bf16.mxu0 0
        %2376 = vmatpush1.bf16.msra.mxu0 0
        %2377 = vmatprep.subr.bf16.mxu0 0
        %2378 = vmatpush1.bf16.msra.mxu0 0
        %2379 = vmatprep.mubr.bf16.mxu0 0
        %2380 = vmatmul.mubr.bf16.gmra.mrb[0].mxu0 %v1995
        %v2381 = vpop.f32.mrb[0].mxu0
        %v2382 = vadd.f32 %v2333, %v2381
        %v2383 = vpop.f32.mrb[0].mxu0
        %v2384 = vpop.f32.mrb[0].mxu0
        %v2385 = vadd.f32 %v2336, %v2384
        %v2386 = vpop.f32.mrb[0].mxu0
        %2387 = vmatprep.mubr.bf16.mxu0 0
        %2388 = vmatmul.mubr.bf16.gmra.mrb[0].mxu0 %v1998
        %v2389 = vpop.f32.mrb[0].mxu0
        %v2390 = vadd.f32 %v2341, %v2389
        %v2391 = vpop.f32.mrb[0].mxu0
        %v2392 = vpop.f32.mrb[0].mxu0
        %v2393 = vadd.f32 %v2344, %v2392
        %v2394 = vpop.f32.mrb[0].mxu0
        %2395 = vdwg.mxu0
        %v2396 = vadd.f32 %v2235, %v2382
        %v2397 = vadd.f32 %v2238, %v2385
        %v2398 = vadd.f32 %v2243, %v2390
        %v2399 = vadd.f32 %v2246, %v2393
        %v2400 = vld [vmem:[%s597] sm:$0xff]
        %v2401 = vld [vmem:[%s597 + $0x8] sm:$0xff]
        %v2402 = vld [vmem:[%s597 + $0x10] sm:$0xff]
        %v2403 = vld [vmem:[%s597 + $0x18] sm:$0xff]
        %v2404 = vld [vmem:[%s605] sm:$0xff]
        %v2405 = vld [vmem:[%s605 + $0x8] sm:$0xff]
        %v2406 = vld [vmem:[%s605 + $0x10] sm:$0xff]
        %v2407 = vld [vmem:[%s605 + $0x18] sm:$0xff]
        %v2408 = vmul.f32 %v2400, %v2098
        %v2409 = vmul.f32 %v2401, %v2099
        %v2410 = vmul.f32 %v2402, %v2100
        %v2411 = vmul.f32 %v2403, %v2101
        %v2412 = vmul.f32 %v2404, %v2396
        %v2413 = vmul.f32 %v2405, %v2397
        %v2414 = vmul.f32 %v2406, %v2398
        %v2415 = vmul.f32 %v2407, %v2399
        %v2416 = vsub.f32 %v2408, %v2412
        %v2417 = vsub.f32 %v2409, %v2413
        %v2418 = vsub.f32 %v2410, %v2414
        %v2419 = vsub.f32 %v2411, %v2415
        %v2420 = vmul.f32 %v2400, %v2396
        %v2421 = vmul.f32 %v2401, %v2397
        %v2422 = vmul.f32 %v2402, %v2398
        %v2423 = vmul.f32 %v2403, %v2399
        %v2424 = vmul.f32 %v2404, %v2098
        %v2425 = vmul.f32 %v2405, %v2099
        %v2426 = vmul.f32 %v2406, %v2100
        %v2427 = vmul.f32 %v2407, %v2101
        %v2428 = vadd.f32 %v2420, %v2424
        %v2429 = vadd.f32 %v2421, %v2425
        %v2430 = vadd.f32 %v2422, %v2426
        %v2431 = vadd.f32 %v2423, %v2427
        %v2432 = vld [vmem:[#allocation11] sm:$0xff]
        %v2433 = vld [vmem:[#allocation11 + $0x8] sm:$0xff]
        %v2434 = vld [vmem:[#allocation12] sm:$0xff]
        %v2435 = vld [vmem:[#allocation12 + $0x8] sm:$0xff]
        %v2436 = vpack.c.bf16 %v2433, %v2432
        %v2437 = vunpack.c.l.bf16 %v2436
        %v2438 = vunpack.c.h.bf16 %v2436
        %v2439 = vsub.f32 %v2432, %v2437
        %v2440 = vsub.f32 %v2433, %v2438
        %v2441 = vpack.c.bf16 %v2440, %v2439
        %v2442 = vpack.c.bf16 %v2435, %v2434
        %v2443 = vunpack.c.l.bf16 %v2442
        %v2444 = vunpack.c.h.bf16 %v2442
        %v2445 = vsub.f32 %v2434, %v2443
        %v2446 = vsub.f32 %v2435, %v2444
        %v2447 = vpack.c.bf16 %v2446, %v2445
        %v2448 = vpack.c.bf16 %v2417, %v2416
        %v2449 = vpack.c.bf16 %v2419, %v2418
        %v2450 = vunpack.c.l.bf16 %v2448
        %v2451 = vunpack.c.h.bf16 %v2448
        %v2452 = vunpack.c.l.bf16 %v2449
        %v2453 = vunpack.c.h.bf16 %v2449
        %v2454 = vsub.f32 %v2416, %v2450
        %v2455 = vsub.f32 %v2417, %v2451
        %v2456 = vsub.f32 %v2418, %v2452
        %v2457 = vsub.f32 %v2419, %v2453
        %v2458 = vpack.c.bf16 %v2455, %v2454
        %v2459 = vpack.c.bf16 %v2457, %v2456
        %v2460 = vpack.c.bf16 %v2429, %v2428
        %v2461 = vpack.c.bf16 %v2431, %v2430
        %v2462 = vunpack.c.l.bf16 %v2460
        %v2463 = vunpack.c.h.bf16 %v2460
        %v2464 = vunpack.c.l.bf16 %v2461
        %v2465 = vunpack.c.h.bf16 %v2461
        %v2466 = vsub.f32 %v2428, %v2462
        %v2467 = vsub.f32 %v2429, %v2463
        %v2468 = vsub.f32 %v2430, %v2464
        %v2469 = vsub.f32 %v2431, %v2465
        %v2470 = vpack.c.bf16 %v2467, %v2466
        %v2471 = vpack.c.bf16 %v2469, %v2468
        %vm2472 = vcmask 261120
        %v2474 = vsel %vm2472, %v2441, 0
        %2476 = vmatprep.subr.bf16.mxu0 0
        %2477 = vmatpush1.bf16.msra.mxu0 %v2448
        %2478 = vmatprep.subr.bf16.mxu0 0
        %2479 = vmatpush1.bf16.msra.mxu0 %v2449
        %2480 = vmatprep.subr.bf16.mxu0 0
        %2481 = vmatpush1.bf16.msra.mxu0 0
        %2482 = vmatprep.subr.bf16.mxu0 0
        %2483 = vmatpush1.bf16.msra.mxu0 0
        %2484 = vmatprep.subr.bf16.mxu0 0
        %2485 = vmatpush1.bf16.msra.mxu0 0
        %2486 = vmatprep.subr.bf16.mxu0 0
        %2487 = vmatpush1.bf16.msra.mxu0 0
        %2488 = vmatprep.subr.bf16.mxu0 0
        %2489 = vmatpush1.bf16.msra.mxu0 0
        %2490 = vmatprep.subr.bf16.mxu0 0
        %2491 = vmatpush1.bf16.msra.mxu0 0
        %2492 = vmatprep.subr.bf16.mxu0 0
        %2493 = vmatpush1.bf16.msra.mxu0 0
        %2494 = vmatprep.subr.bf16.mxu0 0
        %2495 = vmatpush1.bf16.msra.mxu0 0
        %2496 = vmatprep.subr.bf16.mxu0 0
        %2497 = vmatpush1.bf16.msra.mxu0 0
        %2498 = vmatprep.subr.bf16.mxu0 0
        %2499 = vmatpush1.bf16.msra.mxu0 0
        %2500 = vmatprep.subr.bf16.mxu0 0
        %2501 = vmatpush1.bf16.msra.mxu0 0
        %2502 = vmatprep.subr.bf16.mxu0 0
        %2503 = vmatpush1.bf16.msra.mxu0 0
        %2504 = vmatprep.subr.bf16.mxu0 0
        %2505 = vmatpush1.bf16.msra.mxu0 0
        %2506 = vmatprep.subr.bf16.mxu0 0
        %2507 = vmatpush1.bf16.msra.mxu0 0
        %2508 = vmatprep.mubr.bf16.mxu0 0
        %2509 = vmatmul.mubr.bf16.gmra.mrb[0].mxu0 %v2474
        %v2510 = vpop.f32.mrb[0].mxu0
        %v2511 = vadd.f32 0.0, %v2510
        %v2512 = vpop.f32.mrb[0].mxu0
        %v2513 = vpop.f32.mrb[0].mxu0
        %v2514 = vadd.f32 0.0, %v2513
        %v2515 = vpop.f32.mrb[0].mxu0
        %2516 = vdwg.mxu0
        %v2518 = vsel %vm2472, %v2436, 0
        %2520 = vmatprep.subr.bf16.mxu0 0
        %2521 = vmatpush1.bf16.msra.mxu0 %v2458
        %2522 = vmatprep.subr.bf16.mxu0 0
        %2523 = vmatpush1.bf16.msra.mxu0 %v2459
        %2524 = vmatprep.subr.bf16.mxu0 0
        %2525 = vmatpush1.bf16.msra.mxu0 0
        %2526 = vmatprep.subr.bf16.mxu0 0
        %2527 = vmatpush1.bf16.msra.mxu0 0
        %2528 = vmatprep.subr.bf16.mxu0 0
        %2529 = vmatpush1.bf16.msra.mxu0 0
        %2530 = vmatprep.subr.bf16.mxu0 0
        %2531 = vmatpush1.bf16.msra.mxu0 0
        %2532 = vmatprep.subr.bf16.mxu0 0
        %2533 = vmatpush1.bf16.msra.mxu0 0
        %2534 = vmatprep.subr.bf16.mxu0 0
        %2535 = vmatpush1.bf16.msra.mxu0 0
        %2536 = vmatprep.subr.bf16.mxu0 0
        %2537 = vmatpush1.bf16.msra.mxu0 0
        %2538 = vmatprep.subr.bf16.mxu0 0
        %2539 = vmatpush1.bf16.msra.mxu0 0
        %2540 = vmatprep.subr.bf16.mxu0 0
        %2541 = vmatpush1.bf16.msra.mxu0 0
        %2542 = vmatprep.subr.bf16.mxu0 0
        %2543 = vmatpush1.bf16.msra.mxu0 0
        %2544 = vmatprep.subr.bf16.mxu0 0
        %2545 = vmatpush1.bf16.msra.mxu0 0
        %2546 = vmatprep.subr.bf16.mxu0 0
        %2547 = vmatpush1.bf16.msra.mxu0 0
        %2548 = vmatprep.subr.bf16.mxu0 0
        %2549 = vmatpush1.bf16.msra.mxu0 0
        %2550 = vmatprep.subr.bf16.mxu0 0
        %2551 = vmatpush1.bf16.msra.mxu0 0
        %2552 = vmatprep.mubr.bf16.mxu0 0
        %2553 = vmatmul.mubr.bf16.gmra.mrb[0].mxu0 %v2518
        %v2554 = vpop.f32.mrb[0].mxu0
        %v2555 = vadd.f32 %v2511, %v2554
        %v2556 = vpop.f32.mrb[0].mxu0
        %v2557 = vpop.f32.mrb[0].mxu0
        %v2558 = vadd.f32 %v2514, %v2557
        %v2559 = vpop.f32.mrb[0].mxu0
        %2560 = vdwg.mxu0
        %2561 = vmatprep.subr.bf16.mxu0 0
        %2562 = vmatpush1.bf16.msra.mxu0 %v2448
        %2563 = vmatprep.subr.bf16.mxu0 0
        %2564 = vmatpush1.bf16.msra.mxu0 %v2449
        %2565 = vmatprep.subr.bf16.mxu0 0
        %2566 = vmatpush1.bf16.msra.mxu0 0
        %2567 = vmatprep.subr.bf16.mxu0 0
        %2568 = vmatpush1.bf16.msra.mxu0 0
        %2569 = vmatprep.subr.bf16.mxu0 0
        %2570 = vmatpush1.bf16.msra.mxu0 0
        %2571 = vmatprep.subr.bf16.mxu0 0
        %2572 = vmatpush1.bf16.msra.mxu0 0
        %2573 = vmatprep.subr.bf16.mxu0 0
        %2574 = vmatpush1.bf16.msra.mxu0 0
        %2575 = vmatprep.subr.bf16.mxu0 0
        %2576 = vmatpush1.bf16.msra.mxu0 0
        %2577 = vmatprep.subr.bf16.mxu0 0
        %2578 = vmatpush1.bf16.msra.mxu0 0
        %2579 = vmatprep.subr.bf16.mxu0 0
        %2580 = vmatpush1.bf16.msra.mxu0 0
        %2581 = vmatprep.subr.bf16.mxu0 0
        %2582 = vmatpush1.bf16.msra.mxu0 0
        %2583 = vmatprep.subr.bf16.mxu0 0
        %2584 = vmatpush1.bf16.msra.mxu0 0
        %2585 = vmatprep.subr.bf16.mxu0 0
        %2586 = vmatpush1.bf16.msra.mxu0 0
        %2587 = vmatprep.subr.bf16.mxu0 0
        %2588 = vmatpush1.bf16.msra.mxu0 0
        %2589 = vmatprep.subr.bf16.mxu0 0
        %2590 = vmatpush1.bf16.msra.mxu0 0
        %2591 = vmatprep.subr.bf16.mxu0 0
        %2592 = vmatpush1.bf16.msra.mxu0 0
        %2593 = vmatprep.mubr.bf16.mxu0 0
        %2594 = vmatmul.mubr.bf16.gmra.mrb[0].mxu0 %v2518
        %v2595 = vpop.f32.mrb[0].mxu0
        %v2596 = vadd.f32 %v2555, %v2595
        %v2597 = vpop.f32.mrb[0].mxu0
        %v2598 = vpop.f32.mrb[0].mxu0
        %v2599 = vadd.f32 %v2558, %v2598
        %v2600 = vpop.f32.mrb[0].mxu0
        %2601 = vdwg.mxu0
        %v2603 = vsel %vm2472, %v2447, 0
        %2605 = vmatprep.subr.bf16.mxu0 0
        %2606 = vmatpush1.bf16.msra.mxu0 %v2460
        %2607 = vmatprep.subr.bf16.mxu0 0
        %2608 = vmatpush1.bf16.msra.mxu0 %v2461
        %2609 = vmatprep.subr.bf16.mxu0 0
        %2610 = vmatpush1.bf16.msra.mxu0 0
        %2611 = vmatprep.subr.bf16.mxu0 0
        %2612 = vmatpush1.bf16.msra.mxu0 0
        %2613 = vmatprep.subr.bf16.mxu0 0
        %2614 = vmatpush1.bf16.msra.mxu0 0
        %2615 = vmatprep.subr.bf16.mxu0 0
        %2616 = vmatpush1.bf16.msra.mxu0 0
        %2617 = vmatprep.subr.bf16.mxu0 0
        %2618 = vmatpush1.bf16.msra.mxu0 0
        %2619 = vmatprep.subr.bf16.mxu0 0
        %2620 = vmatpush1.bf16.msra.mxu0 0
        %2621 = vmatprep.subr.bf16.mxu0 0
        %2622 = vmatpush1.bf16.msra.mxu0 0
        %2623 = vmatprep.subr.bf16.mxu0 0
        %2624 = vmatpush1.bf16.msra.mxu0 0
        %2625 = vmatprep.subr.bf16.mxu0 0
        %2626 = vmatpush1.bf16.msra.mxu0 0
        %2627 = vmatprep.subr.bf16.mxu0 0
        %2628 = vmatpush1.bf16.msra.mxu0 0
        %2629 = vmatprep.subr.bf16.mxu0 0
        %2630 = vmatpush1.bf16.msra.mxu0 0
        %2631 = vmatprep.subr.bf16.mxu0 0
        %2632 = vmatpush1.bf16.msra.mxu0 0
        %2633 = vmatprep.subr.bf16.mxu0 0
        %2634 = vmatpush1.bf16.msra.mxu0 0
        %2635 = vmatprep.subr.bf16.mxu0 0
        %2636 = vmatpush1.bf16.msra.mxu0 0
        %2637 = vmatprep.mubr.bf16.mxu0 0
        %2638 = vmatmul.mubr.bf16.gmra.mrb[0].mxu0 %v2603
        %v2639 = vpop.f32.mrb[0].mxu0
        %v2640 = vadd.f32 0.0, %v2639
        %v2641 = vpop.f32.mrb[0].mxu0
        %v2642 = vpop.f32.mrb[0].mxu0
        %v2643 = vadd.f32 0.0, %v2642
        %v2644 = vpop.f32.mrb[0].mxu0
        %2645 = vdwg.mxu0
        %v2647 = vsel %vm2472, %v2442, 0
        %2649 = vmatprep.subr.bf16.mxu0 0
        %2650 = vmatpush1.bf16.msra.mxu0 %v2470
        %2651 = vmatprep.subr.bf16.mxu0 0
        %2652 = vmatpush1.bf16.msra.mxu0 %v2471
        %2653 = vmatprep.subr.bf16.mxu0 0
        %2654 = vmatpush1.bf16.msra.mxu0 0
        %2655 = vmatprep.subr.bf16.mxu0 0
        %2656 = vmatpush1.bf16.msra.mxu0 0
        %2657 = vmatprep.subr.bf16.mxu0 0
        %2658 = vmatpush1.bf16.msra.mxu0 0
        %2659 = vmatprep.subr.bf16.mxu0 0
        %2660 = vmatpush1.bf16.msra.mxu0 0
        %2661 = vmatprep.subr.bf16.mxu0 0
        %2662 = vmatpush1.bf16.msra.mxu0 0
        %2663 = vmatprep.subr.bf16.mxu0 0
        %2664 = vmatpush1.bf16.msra.mxu0 0
        %2665 = vmatprep.subr.bf16.mxu0 0
        %2666 = vmatpush1.bf16.msra.mxu0 0
        %2667 = vmatprep.subr.bf16.mxu0 0
        %2668 = vmatpush1.bf16.msra.mxu0 0
        %2669 = vmatprep.subr.bf16.mxu0 0
        %2670 = vmatpush1.bf16.msra.mxu0 0
        %2671 = vmatprep.subr.bf16.mxu0 0
        %2672 = vmatpush1.bf16.msra.mxu0 0
        %2673 = vmatprep.subr.bf16.mxu0 0
        %2674 = vmatpush1.bf16.msra.mxu0 0
        %2675 = vmatprep.subr.bf16.mxu0 0
        %2676 = vmatpush1.bf16.msra.mxu0 0
        %2677 = vmatprep.subr.bf16.mxu0 0
        %2678 = vmatpush1.bf16.msra.mxu0 0
        %2679 = vmatprep.subr.bf16.mxu0 0
        %2680 = vmatpush1.bf16.msra.mxu0 0
        %2681 = vmatprep.mubr.bf16.mxu0 0
        %2682 = vmatmul.mubr.bf16.gmra.mrb[0].mxu0 %v2647
        %v2683 = vpop.f32.mrb[0].mxu0
        %v2684 = vadd.f32 %v2640, %v2683
        %v2685 = vpop.f32.mrb[0].mxu0
        %v2686 = vpop.f32.mrb[0].mxu0
        %v2687 = vadd.f32 %v2643, %v2686
        %v2688 = vpop.f32.mrb[0].mxu0
        %2689 = vdwg.mxu0
        %2690 = vmatprep.subr.bf16.mxu0 0
        %2691 = vmatpush1.bf16.msra.mxu0 %v2460
        %2692 = vmatprep.subr.bf16.mxu0 0
        %2693 = vmatpush1.bf16.msra.mxu0 %v2461
        %2694 = vmatprep.subr.bf16.mxu0 0
        %2695 = vmatpush1.bf16.msra.mxu0 0
        %2696 = vmatprep.subr.bf16.mxu0 0
        %2697 = vmatpush1.bf16.msra.mxu0 0
        %2698 = vmatprep.subr.bf16.mxu0 0
        %2699 = vmatpush1.bf16.msra.mxu0 0
        %2700 = vmatprep.subr.bf16.mxu0 0
        %2701 = vmatpush1.bf16.msra.mxu0 0
        %2702 = vmatprep.subr.bf16.mxu0 0
        %2703 = vmatpush1.bf16.msra.mxu0 0
        %2704 = vmatprep.subr.bf16.mxu0 0
        %2705 = vmatpush1.bf16.msra.mxu0 0
        %2706 = vmatprep.subr.bf16.mxu0 0
        %2707 = vmatpush1.bf16.msra.mxu0 0
        %2708 = vmatprep.subr.bf16.mxu0 0
        %2709 = vmatpush1.bf16.msra.mxu0 0
        %2710 = vmatprep.subr.bf16.mxu0 0
        %2711 = vmatpush1.bf16.msra.mxu0 0
        %2712 = vmatprep.subr.bf16.mxu0 0
        %2713 = vmatpush1.bf16.msra.mxu0 0
        %2714 = vmatprep.subr.bf16.mxu0 0
        %2715 = vmatpush1.bf16.msra.mxu0 0
        %2716 = vmatprep.subr.bf16.mxu0 0
        %2717 = vmatpush1.bf16.msra.mxu0 0
        %2718 = vmatprep.subr.bf16.mxu0 0
        %2719 = vmatpush1.bf16.msra.mxu0 0
        %2720 = vmatprep.subr.bf16.mxu0 0
        %2721 = vmatpush1.bf16.msra.mxu0 0
        %2722 = vmatprep.mubr.bf16.mxu0 0
        %2723 = vmatmul.mubr.bf16.gmra.mrb[0].mxu0 %v2647
        %v2724 = vpop.f32.mrb[0].mxu0
        %v2725 = vadd.f32 %v2684, %v2724
        %v2726 = vpop.f32.mrb[0].mxu0
        %v2727 = vpop.f32.mrb[0].mxu0
        %v2728 = vadd.f32 %v2687, %v2727
        %v2729 = vpop.f32.mrb[0].mxu0
        %2730 = vdwg.mxu0
        %v2731 = vsub.f32 %v2596, %v2725
        %v2732 = vsub.f32 %v2599, %v2728
        %2733 = vmatprep.subr.bf16.mxu0 0
        %2734 = vmatpush1.bf16.msra.mxu0 %v2460
        %2735 = vmatprep.subr.bf16.mxu0 0
        %2736 = vmatpush1.bf16.msra.mxu0 %v2461
        %2737 = vmatprep.subr.bf16.mxu0 0
        %2738 = vmatpush1.bf16.msra.mxu0 0
        %2739 = vmatprep.subr.bf16.mxu0 0
        %2740 = vmatpush1.bf16.msra.mxu0 0
        %2741 = vmatprep.subr.bf16.mxu0 0
        %2742 = vmatpush1.bf16.msra.mxu0 0
        %2743 = vmatprep.subr.bf16.mxu0 0
        %2744 = vmatpush1.bf16.msra.mxu0 0
        %2745 = vmatprep.subr.bf16.mxu0 0
        %2746 = vmatpush1.bf16.msra.mxu0 0
        %2747 = vmatprep.subr.bf16.mxu0 0
        %2748 = vmatpush1.bf16.msra.mxu0 0
        %2749 = vmatprep.subr.bf16.mxu0 0
        %2750 = vmatpush1.bf16.msra.mxu0 0
        %2751 = vmatprep.subr.bf16.mxu0 0
        %2752 = vmatpush1.bf16.msra.mxu0 0
        %2753 = vmatprep.subr.bf16.mxu0 0
        %2754 = vmatpush1.bf16.msra.mxu0 0
        %2755 = vmatprep.subr.bf16.mxu0 0
        %2756 = vmatpush1.bf16.msra.mxu0 0
        %2757 = vmatprep.subr.bf16.mxu0 0
        %2758 = vmatpush1.bf16.msra.mxu0 0
        %2759 = vmatprep.subr.bf16.mxu0 0
        %2760 = vmatpush1.bf16.msra.mxu0 0
        %2761 = vmatprep.subr.bf16.mxu0 0
        %2762 = vmatpush1.bf16.msra.mxu0 0
        %2763 = vmatprep.subr.bf16.mxu0 0
        %2764 = vmatpush1.bf16.msra.mxu0 0
        %2765 = vmatprep.mubr.bf16.mxu0 0
        %2766 = vmatmul.mubr.bf16.gmra.mrb[0].mxu0 %v2474
        %v2767 = vpop.f32.mrb[0].mxu0
        %v2768 = vadd.f32 0.0, %v2767
        %v2769 = vpop.f32.mrb[0].mxu0
        %v2770 = vpop.f32.mrb[0].mxu0
        %v2771 = vadd.f32 0.0, %v2770
        %v2772 = vpop.f32.mrb[0].mxu0
        %2773 = vdwg.mxu0
        %2774 = vmatprep.subr.bf16.mxu0 0
        %2775 = vmatpush1.bf16.msra.mxu0 %v2470
        %2776 = vmatprep.subr.bf16.mxu0 0
        %2777 = vmatpush1.bf16.msra.mxu0 %v2471
        %2778 = vmatprep.subr.bf16.mxu0 0
        %2779 = vmatpush1.bf16.msra.mxu0 0
        %2780 = vmatprep.subr.bf16.mxu0 0
        %2781 = vmatpush1.bf16.msra.mxu0 0
        %2782 = vmatprep.subr.bf16.mxu0 0
        %2783 = vmatpush1.bf16.msra.mxu0 0
        %2784 = vmatprep.subr.bf16.mxu0 0
        %2785 = vmatpush1.bf16.msra.mxu0 0
        %2786 = vmatprep.subr.bf16.mxu0 0
        %2787 = vmatpush1.bf16.msra.mxu0 0
        %2788 = vmatprep.subr.bf16.mxu0 0
        %2789 = vmatpush1.bf16.msra.mxu0 0
        %2790 = vmatprep.subr.bf16.mxu0 0
        %2791 = vmatpush1.bf16.msra.mxu0 0
        %2792 = vmatprep.subr.bf16.mxu0 0
        %2793 = vmatpush1.bf16.msra.mxu0 0
        %2794 = vmatprep.subr.bf16.mxu0 0
        %2795 = vmatpush1.bf16.msra.mxu0 0
        %2796 = vmatprep.subr.bf16.mxu0 0
        %2797 = vmatpush1.bf16.msra.mxu0 0
        %2798 = vmatprep.subr.bf16.mxu0 0
        %2799 = vmatpush1.bf16.msra.mxu0 0
        %2800 = vmatprep.subr.bf16.mxu0 0
        %2801 = vmatpush1.bf16.msra.mxu0 0
        %2802 = vmatprep.subr.bf16.mxu0 0
        %2803 = vmatpush1.bf16.msra.mxu0 0
        %2804 = vmatprep.subr.bf16.mxu0 0
        %2805 = vmatpush1.bf16.msra.mxu0 0
        %2806 = vmatprep.mubr.bf16.mxu0 0
        %2807 = vmatmul.mubr.bf16.gmra.mrb[0].mxu0 %v2518
        %v2808 = vpop.f32.mrb[0].mxu0
        %v2809 = vadd.f32 %v2768, %v2808
        %v2810 = vpop.f32.mrb[0].mxu0
        %v2811 = vpop.f32.mrb[0].mxu0
        %v2812 = vadd.f32 %v2771, %v2811
        %v2813 = vpop.f32.mrb[0].mxu0
        %2814 = vdwg.mxu0
        %2815 = vmatprep.subr.bf16.mxu0 0
        %2816 = vmatpush1.bf16.msra.mxu0 %v2460
        %2817 = vmatprep.subr.bf16.mxu0 0
        %2818 = vmatpush1.bf16.msra.mxu0 %v2461
        %2819 = vmatprep.subr.bf16.mxu0 0
        %2820 = vmatpush1.bf16.msra.mxu0 0
        %2821 = vmatprep.subr.bf16.mxu0 0
        %2822 = vmatpush1.bf16.msra.mxu0 0
        %2823 = vmatprep.subr.bf16.mxu0 0
        %2824 = vmatpush1.bf16.msra.mxu0 0
        %2825 = vmatprep.subr.bf16.mxu0 0
        %2826 = vmatpush1.bf16.msra.mxu0 0
        %2827 = vmatprep.subr.bf16.mxu0 0
        %2828 = vmatpush1.bf16.msra.mxu0 0
        %2829 = vmatprep.subr.bf16.mxu0 0
        %2830 = vmatpush1.bf16.msra.mxu0 0
        %2831 = vmatprep.subr.bf16.mxu0 0
        %2832 = vmatpush1.bf16.msra.mxu0 0
        %2833 = vmatprep.subr.bf16.mxu0 0
        %2834 = vmatpush1.bf16.msra.mxu0 0
        %2835 = vmatprep.subr.bf16.mxu0 0
        %2836 = vmatpush1.bf16.msra.mxu0 0
        %2837 = vmatprep.subr.bf16.mxu0 0
        %2838 = vmatpush1.bf16.msra.mxu0 0
        %2839 = vmatprep.subr.bf16.mxu0 0
        %2840 = vmatpush1.bf16.msra.mxu0 0
        %2841 = vmatprep.subr.bf16.mxu0 0
        %2842 = vmatpush1.bf16.msra.mxu0 0
        %2843 = vmatprep.subr.bf16.mxu0 0
        %2844 = vmatpush1.bf16.msra.mxu0 0
        %2845 = vmatprep.subr.bf16.mxu0 0
        %2846 = vmatpush1.bf16.msra.mxu0 0
        %2847 = vmatprep.mubr.bf16.mxu0 0
        %2848 = vmatmul.mubr.bf16.gmra.mrb[0].mxu0 %v2518
        %v2849 = vpop.f32.mrb[0].mxu0
        %v2850 = vadd.f32 %v2809, %v2849
        %v2851 = vpop.f32.mrb[0].mxu0
        %v2852 = vpop.f32.mrb[0].mxu0
        %v2853 = vadd.f32 %v2812, %v2852
        %v2854 = vpop.f32.mrb[0].mxu0
        %2855 = vdwg.mxu0
        %2856 = vmatprep.subr.bf16.mxu0 0
        %2857 = vmatpush1.bf16.msra.mxu0 %v2448
        %2858 = vmatprep.subr.bf16.mxu0 0
        %2859 = vmatpush1.bf16.msra.mxu0 %v2449
        %2860 = vmatprep.subr.bf16.mxu0 0
        %2861 = vmatpush1.bf16.msra.mxu0 0
        %2862 = vmatprep.subr.bf16.mxu0 0
        %2863 = vmatpush1.bf16.msra.mxu0 0
        %2864 = vmatprep.subr.bf16.mxu0 0
        %2865 = vmatpush1.bf16.msra.mxu0 0
        %2866 = vmatprep.subr.bf16.mxu0 0
        %2867 = vmatpush1.bf16.msra.mxu0 0
        %2868 = vmatprep.subr.bf16.mxu0 0
        %2869 = vmatpush1.bf16.msra.mxu0 0
        %2870 = vmatprep.subr.bf16.mxu0 0
        %2871 = vmatpush1.bf16.msra.mxu0 0
        %2872 = vmatprep.subr.bf16.mxu0 0
        %2873 = vmatpush1.bf16.msra.mxu0 0
        %2874 = vmatprep.subr.bf16.mxu0 0
        %2875 = vmatpush1.bf16.msra.mxu0 0
        %2876 = vmatprep.subr.bf16.mxu0 0
        %2877 = vmatpush1.bf16.msra.mxu0 0
        %2878 = vmatprep.subr.bf16.mxu0 0
        %2879 = vmatpush1.bf16.msra.mxu0 0
        %2880 = vmatprep.subr.bf16.mxu0 0
        %2881 = vmatpush1.bf16.msra.mxu0 0
        %2882 = vmatprep.subr.bf16.mxu0 0
        %2883 = vmatpush1.bf16.msra.mxu0 0
        %2884 = vmatprep.subr.bf16.mxu0 0
        %2885 = vmatpush1.bf16.msra.mxu0 0
        %2886 = vmatprep.subr.bf16.mxu0 0
        %2887 = vmatpush1.bf16.msra.mxu0 0
        %2888 = vmatprep.mubr.bf16.mxu0 0
        %2889 = vmatmul.mubr.bf16.gmra.mrb[0].mxu0 %v2603
        %v2890 = vpop.f32.mrb[0].mxu0
        %v2891 = vadd.f32 0.0, %v2890
        %v2892 = vpop.f32.mrb[0].mxu0
        %v2893 = vpop.f32.mrb[0].mxu0
        %v2894 = vadd.f32 0.0, %v2893
        %v2895 = vpop.f32.mrb[0].mxu0
        %2896 = vdwg.mxu0
        %2897 = vmatprep.subr.bf16.mxu0 0
        %2898 = vmatpush1.bf16.msra.mxu0 %v2458
        %2899 = vmatprep.subr.bf16.mxu0 0
        %2900 = vmatpush1.bf16.msra.mxu0 %v2459
        %2901 = vmatprep.subr.bf16.mxu0 0
        %2902 = vmatpush1.bf16.msra.mxu0 0
        %2903 = vmatprep.subr.bf16.mxu0 0
        %2904 = vmatpush1.bf16.msra.mxu0 0
        %2905 = vmatprep.subr.bf16.mxu0 0
        %2906 = vmatpush1.bf16.msra.mxu0 0
        %2907 = vmatprep.subr.bf16.mxu0 0
        %2908 = vmatpush1.bf16.msra.mxu0 0
        %2909 = vmatprep.subr.bf16.mxu0 0
        %2910 = vmatpush1.bf16.msra.mxu0 0
        %2911 = vmatprep.subr.bf16.mxu0 0
        %2912 = vmatpush1.bf16.msra.mxu0 0
        %2913 = vmatprep.subr.bf16.mxu0 0
        %2914 = vmatpush1.bf16.msra.mxu0 0
        %2915 = vmatprep.subr.bf16.mxu0 0
        %2916 = vmatpush1.bf16.msra.mxu0 0
        %2917 = vmatprep.subr.bf16.mxu0 0
        %2918 = vmatpush1.bf16.msra.mxu0 0
        %2919 = vmatprep.subr.bf16.mxu0 0
        %2920 = vmatpush1.bf16.msra.mxu0 0
        %2921 = vmatprep.subr.bf16.mxu0 0
        %2922 = vmatpush1.bf16.msra.mxu0 0
        %2923 = vmatprep.subr.bf16.mxu0 0
        %2924 = vmatpush1.bf16.msra.mxu0 0
        %2925 = vmatprep.subr.bf16.mxu0 0
        %2926 = vmatpush1.bf16.msra.mxu0 0
        %2927 = vmatprep.subr.bf16.mxu0 0
        %2928 = vmatpush1.bf16.msra.mxu0 0
        %2929 = vmatprep.mubr.bf16.mxu0 0
        %2930 = vmatmul.mubr.bf16.gmra.mrb[0].mxu0 %v2647
        %v2931 = vpop.f32.mrb[0].mxu0
        %v2932 = vadd.f32 %v2891, %v2931
        %v2933 = vpop.f32.mrb[0].mxu0
        %v2934 = vpop.f32.mrb[0].mxu0
        %v2935 = vadd.f32 %v2894, %v2934
        %v2936 = vpop.f32.mrb[0].mxu0
        %2937 = vdwg.mxu0
        %2938 = vmatprep.subr.bf16.mxu0 0
        %2939 = vmatpush1.bf16.msra.mxu0 %v2448
        %2940 = vmatprep.subr.bf16.mxu0 0
        %2941 = vmatpush1.bf16.msra.mxu0 %v2449
        %2942 = vmatprep.subr.bf16.mxu0 0
        %2943 = vmatpush1.bf16.msra.mxu0 0
        %2944 = vmatprep.subr.bf16.mxu0 0
        %2945 = vmatpush1.bf16.msra.mxu0 0
        %2946 = vmatprep.subr.bf16.mxu0 0
        %2947 = vmatpush1.bf16.msra.mxu0 0
        %2948 = vmatprep.subr.bf16.mxu0 0
        %2949 = vmatpush1.bf16.msra.mxu0 0
        %2950 = vmatprep.subr.bf16.mxu0 0
        %2951 = vmatpush1.bf16.msra.mxu0 0
        %2952 = vmatprep.subr.bf16.mxu0 0
        %2953 = vmatpush1.bf16.msra.mxu0 0
        %2954 = vmatprep.subr.bf16.mxu0 0
        %2955 = vmatpush1.bf16.msra.mxu0 0
        %2956 = vmatprep.subr.bf16.mxu0 0
        %2957 = vmatpush1.bf16.msra.mxu0 0
        %2958 = vmatprep.subr.bf16.mxu0 0
        %2959 = vmatpush1.bf16.msra.mxu0 0
        %2960 = vmatprep.subr.bf16.mxu0 0
        %2961 = vmatpush1.bf16.msra.mxu0 0
        %2962 = vmatprep.subr.bf16.mxu0 0
        %2963 = vmatpush1.bf16.msra.mxu0 0
        %2964 = vmatprep.subr.bf16.mxu0 0
        %2965 = vmatpush1.bf16.msra.mxu0 0
        %2966 = vmatprep.subr.bf16.mxu0 0
        %2967 = vmatpush1.bf16.msra.mxu0 0
        %2968 = vmatprep.subr.bf16.mxu0 0
        %2969 = vmatpush1.bf16.msra.mxu0 0
        %2970 = vmatprep.mubr.bf16.mxu0 0
        %2971 = vmatmul.mubr.bf16.gmra.mrb[0].mxu0 %v2647
        %v2972 = vpop.f32.mrb[0].mxu0
        %v2973 = vadd.f32 %v2932, %v2972
        %v2974 = vpop.f32.mrb[0].mxu0
        %v2975 = vpop.f32.mrb[0].mxu0
        %v2976 = vadd.f32 %v2935, %v2975
        %v2977 = vpop.f32.mrb[0].mxu0
        %2978 = vdwg.mxu0
        %v2979 = vadd.f32 %v2850, %v2973
        %v2980 = vadd.f32 %v2853, %v2976
        %v2981 = vld [vmem:[%s610] sm:$0xff]
        %v2982 = vld [vmem:[%s610 + $0x8] sm:$0xff]
        %v2983 = vld [vmem:[%s610 + $0x10] sm:$0xff]
        %v2984 = vld [vmem:[%s610 + $0x18] sm:$0xff]
        %v2985 = vld [vmem:[%s616] sm:$0xff]
        %v2986 = vld [vmem:[%s616 + $0x8] sm:$0xff]
        %v2987 = vld [vmem:[%s616 + $0x10] sm:$0xff]
        %v2988 = vld [vmem:[%s616 + $0x18] sm:$0xff]
        %v2989 = vpack.c.bf16 %v2732, %v2731
        %v2990 = vunpack.c.l.bf16 %v2989
        %v2991 = vunpack.c.h.bf16 %v2989
        %v2992 = vsub.f32 %v2731, %v2990
        %v2993 = vsub.f32 %v2732, %v2991
        %v2994 = vpack.c.bf16 %v2993, %v2992
        %v2995 = vpack.c.bf16 %v2980, %v2979
        %v2996 = vunpack.c.l.bf16 %v2995
        %v2997 = vunpack.c.h.bf16 %v2995
        %v2998 = vsub.f32 %v2979, %v2996
        %v2999 = vsub.f32 %v2980, %v2997
        %v3000 = vpack.c.bf16 %v2999, %v2998
        %v3001 = vpack.c.bf16 %v2982, %v2981
        %v3002 = vpack.c.bf16 %v2984, %v2983
        %v3003 = vunpack.c.l.bf16 %v3001
        %v3004 = vunpack.c.h.bf16 %v3001
        %v3005 = vunpack.c.l.bf16 %v3002
        %v3006 = vunpack.c.h.bf16 %v3002
        %v3007 = vsub.f32 %v2981, %v3003
        %v3008 = vsub.f32 %v2982, %v3004
        %v3009 = vsub.f32 %v2983, %v3005
        %v3010 = vsub.f32 %v2984, %v3006
        %v3011 = vpack.c.bf16 %v3008, %v3007
        %v3012 = vpack.c.bf16 %v3010, %v3009
        %v3013 = vpack.c.bf16 %v2986, %v2985
        %v3014 = vpack.c.bf16 %v2988, %v2987
        %v3015 = vunpack.c.l.bf16 %v3013
        %v3016 = vunpack.c.h.bf16 %v3013
        %v3017 = vunpack.c.l.bf16 %v3014
        %v3018 = vunpack.c.h.bf16 %v3014
        %v3019 = vsub.f32 %v2985, %v3015
        %v3020 = vsub.f32 %v2986, %v3016
        %v3021 = vsub.f32 %v2987, %v3017
        %v3022 = vsub.f32 %v2988, %v3018
        %v3023 = vpack.c.bf16 %v3020, %v3019
        %v3024 = vpack.c.bf16 %v3022, %v3021
        %v3026 = vsel %vm2472, %v2994, 0
        %3028 = vmatprep.subr.bf16.mxu0 0
        %3029 = vmatpush1.bf16.msra.mxu0 %v3001
        %3030 = vmatprep.subr.bf16.mxu0 0
        %3031 = vmatpush1.bf16.msra.mxu0 %v3002
        %3032 = vmatprep.subr.bf16.mxu0 0
        %3033 = vmatpush1.bf16.msra.mxu0 0
        %3034 = vmatprep.subr.bf16.mxu0 0
        %3035 = vmatpush1.bf16.msra.mxu0 0
        %3036 = vmatprep.subr.bf16.mxu0 0
        %3037 = vmatpush1.bf16.msra.mxu0 0
        %3038 = vmatprep.subr.bf16.mxu0 0
        %3039 = vmatpush1.bf16.msra.mxu0 0
        %3040 = vmatprep.subr.bf16.mxu0 0
        %3041 = vmatpush1.bf16.msra.mxu0 0
        %3042 = vmatprep.subr.bf16.mxu0 0
        %3043 = vmatpush1.bf16.msra.mxu0 0
        %3044 = vmatprep.subr.bf16.mxu0 0
        %3045 = vmatpush1.bf16.msra.mxu0 0
        %3046 = vmatprep.subr.bf16.mxu0 0
        %3047 = vmatpush1.bf16.msra.mxu0 0
        %3048 = vmatprep.subr.bf16.mxu0 0
        %3049 = vmatpush1.bf16.msra.mxu0 0
        %3050 = vmatprep.subr.bf16.mxu0 0
        %3051 = vmatpush1.bf16.msra.mxu0 0
        %3052 = vmatprep.subr.bf16.mxu0 0
        %3053 = vmatpush1.bf16.msra.mxu0 0
        %3054 = vmatprep.subr.bf16.mxu0 0
        %3055 = vmatpush1.bf16.msra.mxu0 0
        %3056 = vmatprep.subr.bf16.mxu0 0
        %3057 = vmatpush1.bf16.msra.mxu0 0
        %3058 = vmatprep.subr.bf16.mxu0 0
        %3059 = vmatpush1.bf16.msra.mxu0 0
        %3060 = vmatprep.mubr.bf16.mxu0 0
        %3061 = vmatmul.mubr.bf16.gmra.mrb[0].mxu0 %v3026
        %v3062 = vpop.f32.mrb[0].mxu0
        %v3063 = vadd.f32 0.0, %v3062
        %v3064 = vpop.f32.mrb[0].mxu0
        %v3065 = vpop.f32.mrb[0].mxu0
        %v3066 = vadd.f32 0.0, %v3065
        %v3067 = vpop.f32.mrb[0].mxu0
        %3068 = vdwg.mxu0
        %v3070 = vsel %vm2472, %v2989, 0
        %3072 = vmatprep.subr.bf16.mxu0 0
        %3073 = vmatpush1.bf16.msra.mxu0 %v3011
        %3074 = vmatprep.subr.bf16.mxu0 0
        %3075 = vmatpush1.bf16.msra.mxu0 %v3012
        %3076 = vmatprep.subr.bf16.mxu0 0
        %3077 = vmatpush1.bf16.msra.mxu0 0
        %3078 = vmatprep.subr.bf16.mxu0 0
        %3079 = vmatpush1.bf16.msra.mxu0 0
        %3080 = vmatprep.subr.bf16.mxu0 0
        %3081 = vmatpush1.bf16.msra.mxu0 0
        %3082 = vmatprep.subr.bf16.mxu0 0
        %3083 = vmatpush1.bf16.msra.mxu0 0
        %3084 = vmatprep.subr.bf16.mxu0 0
        %3085 = vmatpush1.bf16.msra.mxu0 0
        %3086 = vmatprep.subr.bf16.mxu0 0
        %3087 = vmatpush1.bf16.msra.mxu0 0
        %3088 = vmatprep.subr.bf16.mxu0 0
        %3089 = vmatpush1.bf16.msra.mxu0 0
        %3090 = vmatprep.subr.bf16.mxu0 0
        %3091 = vmatpush1.bf16.msra.mxu0 0
        %3092 = vmatprep.subr.bf16.mxu0 0
        %3093 = vmatpush1.bf16.msra.mxu0 0
        %3094 = vmatprep.subr.bf16.mxu0 0
        %3095 = vmatpush1.bf16.msra.mxu0 0
        %3096 = vmatprep.subr.bf16.mxu0 0
        %3097 = vmatpush1.bf16.msra.mxu0 0
        %3098 = vmatprep.subr.bf16.mxu0 0
        %3099 = vmatpush1.bf16.msra.mxu0 0
        %3100 = vmatprep.subr.bf16.mxu0 0
        %3101 = vmatpush1.bf16.msra.mxu0 0
        %3102 = vmatprep.subr.bf16.mxu0 0
        %3103 = vmatpush1.bf16.msra.mxu0 0
        %3104 = vmatprep.mubr.bf16.mxu0 0
        %3105 = vmatmul.mubr.bf16.gmra.mrb[0].mxu0 %v3070
        %v3106 = vpop.f32.mrb[0].mxu0
        %v3107 = vadd.f32 %v3063, %v3106
        %v3108 = vpop.f32.mrb[0].mxu0
        %v3109 = vpop.f32.mrb[0].mxu0
        %v3110 = vadd.f32 %v3066, %v3109
        %v3111 = vpop.f32.mrb[0].mxu0
        %3112 = vdwg.mxu0
        %3113 = vmatprep.subr.bf16.mxu0 0
        %3114 = vmatpush1.bf16.msra.mxu0 %v3001
        %3115 = vmatprep.subr.bf16.mxu0 0
        %3116 = vmatpush1.bf16.msra.mxu0 %v3002
        %3117 = vmatprep.subr.bf16.mxu0 0
        %3118 = vmatpush1.bf16.msra.mxu0 0
        %3119 = vmatprep.subr.bf16.mxu0 0
        %3120 = vmatpush1.bf16.msra.mxu0 0
        %3121 = vmatprep.subr.bf16.mxu0 0
        %3122 = vmatpush1.bf16.msra.mxu0 0
        %3123 = vmatprep.subr.bf16.mxu0 0
        %3124 = vmatpush1.bf16.msra.mxu0 0
        %3125 = vmatprep.subr.bf16.mxu0 0
        %3126 = vmatpush1.bf16.msra.mxu0 0
        %3127 = vmatprep.subr.bf16.mxu0 0
        %3128 = vmatpush1.bf16.msra.mxu0 0
        %3129 = vmatprep.subr.bf16.mxu0 0
        %3130 = vmatpush1.bf16.msra.mxu0 0
        %3131 = vmatprep.subr.bf16.mxu0 0
        %3132 = vmatpush1.bf16.msra.mxu0 0
        %3133 = vmatprep.subr.bf16.mxu0 0
        %3134 = vmatpush1.bf16.msra.mxu0 0
        %3135 = vmatprep.subr.bf16.mxu0 0
        %3136 = vmatpush1.bf16.msra.mxu0 0
        %3137 = vmatprep.subr.bf16.mxu0 0
        %3138 = vmatpush1.bf16.msra.mxu0 0
        %3139 = vmatprep.subr.bf16.mxu0 0
        %3140 = vmatpush1.bf16.msra.mxu0 0
        %3141 = vmatprep.subr.bf16.mxu0 0
        %3142 = vmatpush1.bf16.msra.mxu0 0
        %3143 = vmatprep.subr.bf16.mxu0 0
        %3144 = vmatpush1.bf16.msra.mxu0 0
        %3145 = vmatprep.mubr.bf16.mxu0 0
        %3146 = vmatmul.mubr.bf16.gmra.mrb[0].mxu0 %v3070
        %v3147 = vpop.f32.mrb[0].mxu0
        %v3148 = vadd.f32 %v3107, %v3147
        %v3149 = vpop.f32.mrb[0].mxu0
        %v3150 = vpop.f32.mrb[0].mxu0
        %v3151 = vadd.f32 %v3110, %v3150
        %v3152 = vpop.f32.mrb[0].mxu0
        %3153 = vdwg.mxu0
        %v3155 = vsel %vm2472, %v3000, 0
        %3157 = vmatprep.subr.bf16.mxu0 0
        %3158 = vmatpush1.bf16.msra.mxu0 %v3013
        %3159 = vmatprep.subr.bf16.mxu0 0
        %3160 = vmatpush1.bf16.msra.mxu0 %v3014
        %3161 = vmatprep.subr.bf16.mxu0 0
        %3162 = vmatpush1.bf16.msra.mxu0 0
        %3163 = vmatprep.subr.bf16.mxu0 0
        %3164 = vmatpush1.bf16.msra.mxu0 0
        %3165 = vmatprep.subr.bf16.mxu0 0
        %3166 = vmatpush1.bf16.msra.mxu0 0
        %3167 = vmatprep.subr.bf16.mxu0 0
        %3168 = vmatpush1.bf16.msra.mxu0 0
        %3169 = vmatprep.subr.bf16.mxu0 0
        %3170 = vmatpush1.bf16.msra.mxu0 0
        %3171 = vmatprep.subr.bf16.mxu0 0
        %3172 = vmatpush1.bf16.msra.mxu0 0
        %3173 = vmatprep.subr.bf16.mxu0 0
        %3174 = vmatpush1.bf16.msra.mxu0 0
        %3175 = vmatprep.subr.bf16.mxu0 0
        %3176 = vmatpush1.bf16.msra.mxu0 0
        %3177 = vmatprep.subr.bf16.mxu0 0
        %3178 = vmatpush1.bf16.msra.mxu0 0
        %3179 = vmatprep.subr.bf16.mxu0 0
        %3180 = vmatpush1.bf16.msra.mxu0 0
        %3181 = vmatprep.subr.bf16.mxu0 0
        %3182 = vmatpush1.bf16.msra.mxu0 0
        %3183 = vmatprep.subr.bf16.mxu0 0
        %3184 = vmatpush1.bf16.msra.mxu0 0
        %3185 = vmatprep.subr.bf16.mxu0 0
        %3186 = vmatpush1.bf16.msra.mxu0 0
        %3187 = vmatprep.subr.bf16.mxu0 0
        %3188 = vmatpush1.bf16.msra.mxu0 0
        %3189 = vmatprep.mubr.bf16.mxu0 0
        %3190 = vmatmul.mubr.bf16.gmra.mrb[0].mxu0 %v3155
        %v3191 = vpop.f32.mrb[0].mxu0
        %v3192 = vadd.f32 0.0, %v3191
        %v3193 = vpop.f32.mrb[0].mxu0
        %v3194 = vpop.f32.mrb[0].mxu0
        %v3195 = vadd.f32 0.0, %v3194
        %v3196 = vpop.f32.mrb[0].mxu0
        %3197 = vdwg.mxu0
        %v3199 = vsel %vm2472, %v2995, 0
        %3201 = vmatprep.subr.bf16.mxu0 0
        %3202 = vmatpush1.bf16.msra.mxu0 %v3023
        %3203 = vmatprep.subr.bf16.mxu0 0
        %3204 = vmatpush1.bf16.msra.mxu0 %v3024
        %3205 = vmatprep.subr.bf16.mxu0 0
        %3206 = vmatpush1.bf16.msra.mxu0 0
        %3207 = vmatprep.subr.bf16.mxu0 0
        %3208 = vmatpush1.bf16.msra.mxu0 0
        %3209 = vmatprep.subr.bf16.mxu0 0
        %3210 = vmatpush1.bf16.msra.mxu0 0
        %3211 = vmatprep.subr.bf16.mxu0 0
        %3212 = vmatpush1.bf16.msra.mxu0 0
        %3213 = vmatprep.subr.bf16.mxu0 0
        %3214 = vmatpush1.bf16.msra.mxu0 0
        %3215 = vmatprep.subr.bf16.mxu0 0
        %3216 = vmatpush1.bf16.msra.mxu0 0
        %3217 = vmatprep.subr.bf16.mxu0 0
        %3218 = vmatpush1.bf16.msra.mxu0 0
        %3219 = vmatprep.subr.bf16.mxu0 0
        %3220 = vmatpush1.bf16.msra.mxu0 0
        %3221 = vmatprep.subr.bf16.mxu0 0
        %3222 = vmatpush1.bf16.msra.mxu0 0
        %3223 = vmatprep.subr.bf16.mxu0 0
        %3224 = vmatpush1.bf16.msra.mxu0 0
        %3225 = vmatprep.subr.bf16.mxu0 0
        %3226 = vmatpush1.bf16.msra.mxu0 0
        %3227 = vmatprep.subr.bf16.mxu0 0
        %3228 = vmatpush1.bf16.msra.mxu0 0
        %3229 = vmatprep.subr.bf16.mxu0 0
        %3230 = vmatpush1.bf16.msra.mxu0 0
        %3231 = vmatprep.subr.bf16.mxu0 0
        %3232 = vmatpush1.bf16.msra.mxu0 0
        %3233 = vmatprep.mubr.bf16.mxu0 0
        %3234 = vmatmul.mubr.bf16.gmra.mrb[0].mxu0 %v3199
        %v3235 = vpop.f32.mrb[0].mxu0
        %v3236 = vadd.f32 %v3192, %v3235
        %v3237 = vpop.f32.mrb[0].mxu0
        %v3238 = vpop.f32.mrb[0].mxu0
        %v3239 = vadd.f32 %v3195, %v3238
        %v3240 = vpop.f32.mrb[0].mxu0
        %3241 = vdwg.mxu0
        %3242 = vmatprep.subr.bf16.mxu0 0
        %3243 = vmatpush1.bf16.msra.mxu0 %v3013
        %3244 = vmatprep.subr.bf16.mxu0 0
        %3245 = vmatpush1.bf16.msra.mxu0 %v3014
        %3246 = vmatprep.subr.bf16.mxu0 0
        %3247 = vmatpush1.bf16.msra.mxu0 0
        %3248 = vmatprep.subr.bf16.mxu0 0
        %3249 = vmatpush1.bf16.msra.mxu0 0
        %3250 = vmatprep.subr.bf16.mxu0 0
        %3251 = vmatpush1.bf16.msra.mxu0 0
        %3252 = vmatprep.subr.bf16.mxu0 0
        %3253 = vmatpush1.bf16.msra.mxu0 0
        %3254 = vmatprep.subr.bf16.mxu0 0
        %3255 = vmatpush1.bf16.msra.mxu0 0
        %3256 = vmatprep.subr.bf16.mxu0 0
        %3257 = vmatpush1.bf16.msra.mxu0 0
        %3258 = vmatprep.subr.bf16.mxu0 0
        %3259 = vmatpush1.bf16.msra.mxu0 0
        %3260 = vmatprep.subr.bf16.mxu0 0
        %3261 = vmatpush1.bf16.msra.mxu0 0
        %3262 = vmatprep.subr.bf16.mxu0 0
        %3263 = vmatpush1.bf16.msra.mxu0 0
        %3264 = vmatprep.subr.bf16.mxu0 0
        %3265 = vmatpush1.bf16.msra.mxu0 0
        %3266 = vmatprep.subr.bf16.mxu0 0
        %3267 = vmatpush1.bf16.msra.mxu0 0
        %3268 = vmatprep.subr.bf16.mxu0 0
        %3269 = vmatpush1.bf16.msra.mxu0 0
        %3270 = vmatprep.subr.bf16.mxu0 0
        %3271 = vmatpush1.bf16.msra.mxu0 0
        %3272 = vmatprep.subr.bf16.mxu0 0
        %3273 = vmatpush1.bf16.msra.mxu0 0
        %3274 = vmatprep.mubr.bf16.mxu0 0
        %3275 = vmatmul.mubr.bf16.gmra.mrb[0].mxu0 %v3199
        %v3276 = vpop.f32.mrb[0].mxu0
        %v3277 = vadd.f32 %v3236, %v3276
        %v3278 = vpop.f32.mrb[0].mxu0
        %v3279 = vpop.f32.mrb[0].mxu0
        %v3280 = vadd.f32 %v3239, %v3279
        %v3281 = vpop.f32.mrb[0].mxu0
        %3282 = vdwg.mxu0
        %v3283 = vsub.f32 %v3148, %v3277
        %v3284 = vsub.f32 %v3151, %v3280
        %3285 = vmatprep.subr.bf16.mxu0 0
        %3286 = vmatpush1.bf16.msra.mxu0 %v3013
        %3287 = vmatprep.subr.bf16.mxu0 0
        %3288 = vmatpush1.bf16.msra.mxu0 %v3014
        %3289 = vmatprep.subr.bf16.mxu0 0
        %3290 = vmatpush1.bf16.msra.mxu0 0
        %3291 = vmatprep.subr.bf16.mxu0 0
        %3292 = vmatpush1.bf16.msra.mxu0 0
        %3293 = vmatprep.subr.bf16.mxu0 0
        %3294 = vmatpush1.bf16.msra.mxu0 0
        %3295 = vmatprep.subr.bf16.mxu0 0
        %3296 = vmatpush1.bf16.msra.mxu0 0
        %3297 = vmatprep.subr.bf16.mxu0 0
        %3298 = vmatpush1.bf16.msra.mxu0 0
        %3299 = vmatprep.subr.bf16.mxu0 0
        %3300 = vmatpush1.bf16.msra.mxu0 0
        %3301 = vmatprep.subr.bf16.mxu0 0
        %3302 = vmatpush1.bf16.msra.mxu0 0
        %3303 = vmatprep.subr.bf16.mxu0 0
        %3304 = vmatpush1.bf16.msra.mxu0 0
        %3305 = vmatprep.subr.bf16.mxu0 0
        %3306 = vmatpush1.bf16.msra.mxu0 0
        %3307 = vmatprep.subr.bf16.mxu0 0
        %3308 = vmatpush1.bf16.msra.mxu0 0
        %3309 = vmatprep.subr.bf16.mxu0 0
        %3310 = vmatpush1.bf16.msra.mxu0 0
        %3311 = vmatprep.subr.bf16.mxu0 0
        %3312 = vmatpush1.bf16.msra.mxu0 0
        %3313 = vmatprep.subr.bf16.mxu0 0
        %3314 = vmatpush1.bf16.msra.mxu0 0
        %3315 = vmatprep.subr.bf16.mxu0 0
        %3316 = vmatpush1.bf16.msra.mxu0 0
        %3317 = vmatprep.mubr.bf16.mxu0 0
        %3318 = vmatmul.mubr.bf16.gmra.mrb[0].mxu0 %v3026
        %v3319 = vpop.f32.mrb[0].mxu0
        %v3320 = vadd.f32 0.0, %v3319
        %v3321 = vpop.f32.mrb[0].mxu0
        %v3322 = vpop.f32.mrb[0].mxu0
        %v3323 = vadd.f32 0.0, %v3322
        %v3324 = vpop.f32.mrb[0].mxu0
        %3325 = vdwg.mxu0
        %3326 = vmatprep.subr.bf16.mxu0 0
        %3327 = vmatpush1.bf16.msra.mxu0 %v3023
        %3328 = vmatprep.subr.bf16.mxu0 0
        %3329 = vmatpush1.bf16.msra.mxu0 %v3024
        %3330 = vmatprep.subr.bf16.mxu0 0
        %3331 = vmatpush1.bf16.msra.mxu0 0
        %3332 = vmatprep.subr.bf16.mxu0 0
        %3333 = vmatpush1.bf16.msra.mxu0 0
        %3334 = vmatprep.subr.bf16.mxu0 0
        %3335 = vmatpush1.bf16.msra.mxu0 0
        %3336 = vmatprep.subr.bf16.mxu0 0
        %3337 = vmatpush1.bf16.msra.mxu0 0
        %3338 = vmatprep.subr.bf16.mxu0 0
        %3339 = vmatpush1.bf16.msra.mxu0 0
        %3340 = vmatprep.subr.bf16.mxu0 0
        %3341 = vmatpush1.bf16.msra.mxu0 0
        %3342 = vmatprep.subr.bf16.mxu0 0
        %3343 = vmatpush1.bf16.msra.mxu0 0
        %3344 = vmatprep.subr.bf16.mxu0 0
        %3345 = vmatpush1.bf16.msra.mxu0 0
        %3346 = vmatprep.subr.bf16.mxu0 0
        %3347 = vmatpush1.bf16.msra.mxu0 0
        %3348 = vmatprep.subr.bf16.mxu0 0
        %3349 = vmatpush1.bf16.msra.mxu0 0
        %3350 = vmatprep.subr.bf16.mxu0 0
        %3351 = vmatpush1.bf16.msra.mxu0 0
        %3352 = vmatprep.subr.bf16.mxu0 0
        %3353 = vmatpush1.bf16.msra.mxu0 0
        %3354 = vmatprep.subr.bf16.mxu0 0
        %3355 = vmatpush1.bf16.msra.mxu0 0
        %3356 = vmatprep.subr.bf16.mxu0 0
        %3357 = vmatpush1.bf16.msra.mxu0 0
        %3358 = vmatprep.mubr.bf16.mxu0 0
        %3359 = vmatmul.mubr.bf16.gmra.mrb[0].mxu0 %v3070
        %v3360 = vpop.f32.mrb[0].mxu0
        %v3361 = vadd.f32 %v3320, %v3360
        %v3362 = vpop.f32.mrb[0].mxu0
        %v3363 = vpop.f32.mrb[0].mxu0
        %v3364 = vadd.f32 %v3323, %v3363
        %v3365 = vpop.f32.mrb[0].mxu0
        %3366 = vdwg.mxu0
        %3367 = vmatprep.subr.bf16.mxu0 0
        %3368 = vmatpush1.bf16.msra.mxu0 %v3013
        %3369 = vmatprep.subr.bf16.mxu0 0
        %3370 = vmatpush1.bf16.msra.mxu0 %v3014
        %3371 = vmatprep.subr.bf16.mxu0 0
        %3372 = vmatpush1.bf16.msra.mxu0 0
        %3373 = vmatprep.subr.bf16.mxu0 0
        %3374 = vmatpush1.bf16.msra.mxu0 0
        %3375 = vmatprep.subr.bf16.mxu0 0
        %3376 = vmatpush1.bf16.msra.mxu0 0
        %3377 = vmatprep.subr.bf16.mxu0 0
        %3378 = vmatpush1.bf16.msra.mxu0 0
        %3379 = vmatprep.subr.bf16.mxu0 0
        %3380 = vmatpush1.bf16.msra.mxu0 0
        %3381 = vmatprep.subr.bf16.mxu0 0
        %3382 = vmatpush1.bf16.msra.mxu0 0
        %3383 = vmatprep.subr.bf16.mxu0 0
        %3384 = vmatpush1.bf16.msra.mxu0 0
        %3385 = vmatprep.subr.bf16.mxu0 0
        %3386 = vmatpush1.bf16.msra.mxu0 0
        %3387 = vmatprep.subr.bf16.mxu0 0
        %3388 = vmatpush1.bf16.msra.mxu0 0
        %3389 = vmatprep.subr.bf16.mxu0 0
        %3390 = vmatpush1.bf16.msra.mxu0 0
        %3391 = vmatprep.subr.bf16.mxu0 0
        %3392 = vmatpush1.bf16.msra.mxu0 0
        %3393 = vmatprep.subr.bf16.mxu0 0
        %3394 = vmatpush1.bf16.msra.mxu0 0
        %3395 = vmatprep.subr.bf16.mxu0 0
        %3396 = vmatpush1.bf16.msra.mxu0 0
        %3397 = vmatprep.subr.bf16.mxu0 0
        %3398 = vmatpush1.bf16.msra.mxu0 0
        %3399 = vmatprep.mubr.bf16.mxu0 0
        %3400 = vmatmul.mubr.bf16.gmra.mrb[0].mxu0 %v3070
        %v3401 = vpop.f32.mrb[0].mxu0
        %v3402 = vadd.f32 %v3361, %v3401
        %v3403 = vpop.f32.mrb[0].mxu0
        %v3404 = vpop.f32.mrb[0].mxu0
        %v3405 = vadd.f32 %v3364, %v3404
        %v3406 = vpop.f32.mrb[0].mxu0
        %3407 = vdwg.mxu0
        %3408 = vmatprep.subr.bf16.mxu0 0
        %3409 = vmatpush1.bf16.msra.mxu0 %v3001
        %3410 = vmatprep.subr.bf16.mxu0 0
        %3411 = vmatpush1.bf16.msra.mxu0 %v3002
        %3412 = vmatprep.subr.bf16.mxu0 0
        %3413 = vmatpush1.bf16.msra.mxu0 0
        %3414 = vmatprep.subr.bf16.mxu0 0
        %3415 = vmatpush1.bf16.msra.mxu0 0
        %3416 = vmatprep.subr.bf16.mxu0 0
        %3417 = vmatpush1.bf16.msra.mxu0 0
        %3418 = vmatprep.subr.bf16.mxu0 0
        %3419 = vmatpush1.bf16.msra.mxu0 0
        %3420 = vmatprep.subr.bf16.mxu0 0
        %3421 = vmatpush1.bf16.msra.mxu0 0
        %3422 = vmatprep.subr.bf16.mxu0 0
        %3423 = vmatpush1.bf16.msra.mxu0 0
        %3424 = vmatprep.subr.bf16.mxu0 0
        %3425 = vmatpush1.bf16.msra.mxu0 0
        %3426 = vmatprep.subr.bf16.mxu0 0
        %3427 = vmatpush1.bf16.msra.mxu0 0
        %3428 = vmatprep.subr.bf16.mxu0 0
        %3429 = vmatpush1.bf16.msra.mxu0 0
        %3430 = vmatprep.subr.bf16.mxu0 0
        %3431 = vmatpush1.bf16.msra.mxu0 0
        %3432 = vmatprep.subr.bf16.mxu0 0
        %3433 = vmatpush1.bf16.msra.mxu0 0
        %3434 = vmatprep.subr.bf16.mxu0 0
        %3435 = vmatpush1.bf16.msra.mxu0 0
        %3436 = vmatprep.subr.bf16.mxu0 0
        %3437 = vmatpush1.bf16.msra.mxu0 0
        %3438 = vmatprep.subr.bf16.mxu0 0
        %3439 = vmatpush1.bf16.msra.mxu0 0
        %3440 = vmatprep.mubr.bf16.mxu0 0
        %3441 = vmatmul.mubr.bf16.gmra.mrb[0].mxu0 %v3155
        %v3442 = vpop.f32.mrb[0].mxu0
        %v3443 = vadd.f32 0.0, %v3442
        %v3444 = vpop.f32.mrb[0].mxu0
        %v3445 = vpop.f32.mrb[0].mxu0
        %v3446 = vadd.f32 0.0, %v3445
        %v3447 = vpop.f32.mrb[0].mxu0
        %3448 = vdwg.mxu0
        %3449 = vmatprep.subr.bf16.mxu0 0
        %3450 = vmatpush1.bf16.msra.mxu0 %v3011
        %3451 = vmatprep.subr.bf16.mxu0 0
        %3452 = vmatpush1.bf16.msra.mxu0 %v3012
        %3453 = vmatprep.subr.bf16.mxu0 0
        %3454 = vmatpush1.bf16.msra.mxu0 0
        %3455 = vmatprep.subr.bf16.mxu0 0
        %3456 = vmatpush1.bf16.msra.mxu0 0
        %3457 = vmatprep.subr.bf16.mxu0 0
        %3458 = vmatpush1.bf16.msra.mxu0 0
        %3459 = vmatprep.subr.bf16.mxu0 0
        %3460 = vmatpush1.bf16.msra.mxu0 0
        %3461 = vmatprep.subr.bf16.mxu0 0
        %3462 = vmatpush1.bf16.msra.mxu0 0
        %3463 = vmatprep.subr.bf16.mxu0 0
        %3464 = vmatpush1.bf16.msra.mxu0 0
        %3465 = vmatprep.subr.bf16.mxu0 0
        %3466 = vmatpush1.bf16.msra.mxu0 0
        %3467 = vmatprep.subr.bf16.mxu0 0
        %3468 = vmatpush1.bf16.msra.mxu0 0
        %3469 = vmatprep.subr.bf16.mxu0 0
        %3470 = vmatpush1.bf16.msra.mxu0 0
        %3471 = vmatprep.subr.bf16.mxu0 0
        %3472 = vmatpush1.bf16.msra.mxu0 0
        %3473 = vmatprep.subr.bf16.mxu0 0
        %3474 = vmatpush1.bf16.msra.mxu0 0
        %3475 = vmatprep.subr.bf16.mxu0 0
        %3476 = vmatpush1.bf16.msra.mxu0 0
        %3477 = vmatprep.subr.bf16.mxu0 0
        %3478 = vmatpush1.bf16.msra.mxu0 0
        %3479 = vmatprep.subr.bf16.mxu0 0
        %3480 = vmatpush1.bf16.msra.mxu0 0
        %3481 = vmatprep.mubr.bf16.mxu0 0
        %3482 = vmatmul.mubr.bf16.gmra.mrb[0].mxu0 %v3199
        %v3483 = vpop.f32.mrb[0].mxu0
        %v3484 = vadd.f32 %v3443, %v3483
        %v3485 = vpop.f32.mrb[0].mxu0
        %v3486 = vpop.f32.mrb[0].mxu0
        %v3487 = vadd.f32 %v3446, %v3486
        %v3488 = vpop.f32.mrb[0].mxu0
        %3489 = vdwg.mxu0
        %3490 = vmatprep.subr.bf16.mxu0 0
        %3491 = vmatpush1.bf16.msra.mxu0 %v3001
        %3492 = vmatprep.subr.bf16.mxu0 0
        %3493 = vmatpush1.bf16.msra.mxu0 %v3002
        %3494 = vmatprep.subr.bf16.mxu0 0
        %3495 = vmatpush1.bf16.msra.mxu0 0
        %3496 = vmatprep.subr.bf16.mxu0 0
        %3497 = vmatpush1.bf16.msra.mxu0 0
        %3498 = vmatprep.subr.bf16.mxu0 0
        %3499 = vmatpush1.bf16.msra.mxu0 0
        %3500 = vmatprep.subr.bf16.mxu0 0
        %3501 = vmatpush1.bf16.msra.mxu0 0
        %3502 = vmatprep.subr.bf16.mxu0 0
        %3503 = vmatpush1.bf16.msra.mxu0 0
        %3504 = vmatprep.subr.bf16.mxu0 0
        %3505 = vmatpush1.bf16.msra.mxu0 0
        %3506 = vmatprep.subr.bf16.mxu0 0
        %3507 = vmatpush1.bf16.msra.mxu0 0
        %3508 = vmatprep.subr.bf16.mxu0 0
        %3509 = vmatpush1.bf16.msra.mxu0 0
        %3510 = vmatprep.subr.bf16.mxu0 0
        %3511 = vmatpush1.bf16.msra.mxu0 0
        %3512 = vmatprep.subr.bf16.mxu0 0
        %3513 = vmatpush1.bf16.msra.mxu0 0
        %3514 = vmatprep.subr.bf16.mxu0 0
        %3515 = vmatpush1.bf16.msra.mxu0 0
        %3516 = vmatprep.subr.bf16.mxu0 0
        %3517 = vmatpush1.bf16.msra.mxu0 0
        %3518 = vmatprep.subr.bf16.mxu0 0
        %3519 = vmatpush1.bf16.msra.mxu0 0
        %3520 = vmatprep.subr.bf16.mxu0 0
        %3521 = vmatpush1.bf16.msra.mxu0 0
        %3522 = vmatprep.mubr.bf16.mxu0 0
        %3523 = vmatmul.mubr.bf16.gmra.mrb[0].mxu0 %v3199
        %v3524 = vpop.f32.mrb[0].mxu0
        %v3525 = vadd.f32 %v3484, %v3524
        %v3526 = vpop.f32.mrb[0].mxu0
        %v3527 = vpop.f32.mrb[0].mxu0
        %v3528 = vadd.f32 %v3487, %v3527
        %v3529 = vpop.f32.mrb[0].mxu0
        %3530 = vdwg.mxu0
        %v3531 = vadd.f32 %v3402, %v3525
        %v3532 = vadd.f32 %v3405, %v3528
        %v3533 = vld [vmem:[#allocation4] sm:$0xff]
        %v3534 = vld [vmem:[#allocation4 + $0x8] sm:$0xff]
        %v3535 = vadd.f32 %v3533, %v3283
        %v3536 = vadd.f32 %v3534, %v3284
        %3537 = vst.msk [vmem:[#allocation4] sm:$0xff] %vm1779, %v3535
        %3538 = vst.msk [vmem:[#allocation4 + $0x8] sm:$0xff] %vm1779, %v3536
        %v3539 = vld [vmem:[#allocation5] sm:$0xff]
        %v3540 = vld [vmem:[#allocation5 + $0x8] sm:$0xff]
        %v3541 = vadd.f32 %v3539, %v3531
        %v3542 = vadd.f32 %v3540, %v3532
        %3543 = vst.msk [vmem:[#allocation5] sm:$0xff] %vm1779, %v3541
        %3544 = vst.msk [vmem:[#allocation5 + $0x8] sm:$0xff] %vm1779, %v3542
        // Predicated region
        $region93: #{tpu_custom_call.1} parent=67 // pred_check
          %p3545 = pneg %p623
        $region94: #{tpu_custom_call.1} parent=67 // pred_check_branch
          %3547 = sbr.rel (%p3545) target = $region96
        $region95: #{tpu_custom_call.1} parent=67 // pred_region
          %v3548 = vld [vmem:[#allocation4] sm:$0xff]
          %v3549 = vld [vmem:[#allocation4 + $0x8] sm:$0xff]
          %v3550 = vld [vmem:[#allocation5] sm:$0xff]
          %v3551 = vld [vmem:[#allocation5 + $0x8] sm:$0xff]
          %v3552 = vld [vmem:[#allocation14] sm:$0xff]
          %v3553 = vld [vmem:[#allocation14 + $0x8] sm:$0xff]
          %v3554 = vmul.f32 %v3548, %v3548
          %v3555 = vmul.f32 %v3549, %v3549
          %v3556 = vmul.f32 %v3550, %v3550
          %v3557 = vmul.f32 %v3551, %v3551
          %v3558 = vadd.f32 %v3554, %v3556
          %v3559 = vadd.f32 %v3555, %v3557
          %v3560 = vadd.f32 %v3552, %v3558
          %v3561 = vadd.f32 %v3553, %v3559
          %3562 = vst.msk [vmem:[#allocation14] sm:$0xff] %vm1779, %v3560
          %3563 = vst.msk [vmem:[#allocation14 + $0x8] sm:$0xff] %vm1779, %v3561
        $region96: #{tpu_custom_call.1} parent=67 // pred_fallthru
          _
        // Predicated region
        $region97: #{tpu_custom_call.1} parent=67 // pred_check
          %p3564 = pneg %p355
        $region98: #{tpu_custom_call.1} parent=67 // pred_check_branch
          %3566 = sbr.rel (%p3564) target = $region100
        $region99: #{tpu_custom_call.1} parent=67 // pred_region
          %s3568 = ssub.s32 256, 256
          %3569 = vsyncadd [#allocation8], %s3568
          %s3570 = sshll.u32 [#allocation14], 4
          %s3571 = int_to_ptr.vmem [resolvable:$true] %s3570
          %3576 = dma.vmem_to_hbm [thread:$0]  %s3571, 256, %s12, [#allocation8], 128, 128, 8
        $region100: #{tpu_custom_call.1} parent=67 // pred_fallthru
          _
        // Predicated region
        $region101: #{tpu_custom_call.1} parent=67 // pred_check
          %p3577 = pneg %p355
        $region102: #{tpu_custom_call.1} parent=67 // pred_check_branch
          %3579 = sbr.rel (%p3577) target = $region104
        $region103: #{tpu_custom_call.1} parent=67 // pred_region
          %3580 = dma.done [#allocation8], 256
        $region104: #{tpu_custom_call.1} parent=67 // pred_fallthru
          _
      $region68: #{tpu_custom_call.1} parent=5 // pred_fallthru
        _
      %p3581 = scmp.le.s32.totalorder 2, %s22
      // Predicated region
      $region105: #{tpu_custom_call.1} parent=5 // pred_check
        %p3582 = pneg %p3581
      $region106: #{tpu_custom_call.1} parent=5 // pred_check_branch
        %3584 = sbr.rel (%p3582) target = $region108
      $region107: #{tpu_custom_call.1} parent=5 // pred_region
        %s3585 = ssub.s32 %s22, 2
      $region108: #{tpu_custom_call.1} parent=5 // pred_fallthru
        _
    $region6: #{tpu_custom_call.1} parent=1 // loop_footer
      %s26 = sadd.s32 1, %s22
    $region7: #{tpu_custom_call.1} parent=1 // loop_footer_branch
      %21 = sbr.rel target = $region3
    $region8: #{tpu_custom_call.1} parent=1 // loop_exit
      _
    %3586 = vsyncpa [#allocation7], 1
    %s3587 = scalar_lea.sflag [#allocation7], 1
    %3588 = vsyncpa %s3587, 1
    %3589 = vsyncpa [#allocation10], 1
    %3590 = vsyncpa [#allocation13], 1
    %3591 = vsyncpa [#allocation8], 1
    %s3592 = scalar_lea.sflag [#allocation8], 1
    %3593 = vsyncpa %s3592, 1

</llo_original>
